<compile_context>
chip_gen: v6e
topology: v6e:2x2x1
jax: 0.10.0
libtpu: 0.0.40
codegen_flags: <defaults>
</compile_context>

<pallas_src>
import numpy as np
import jax
import jax.numpy as jnp
from jax.experimental import pallas as pl
from jax.experimental.pallas import tpu as pltpu

LEAKY_SLOPE = 0.2
BN_EPS = 1e-5


def _leaky(x):
    return jnp.where(x > 0, x, LEAKY_SLOPE * x)


# -------------------- fused Pallas kernel (one class per grid step) ----------

def fused_dcgan_d_kernel(p1t_ref, w1t_ref, w2c_ref, st_ref, g_ref, b_ref,
                         m3t_ref, o_ref, ut_ref):
    # p1t_ref: (K1, M1)        transposed layer-1 im2col patches, M1=N*8*8 on lanes
    # w1t_ref: (ndf, K1)       layer-1 weights, feature order (kh, kw, cin)
    # w2c_ref: (16*2ndf, ndf)  layer-2 weights, rows ordered (tap j, cout)
    # st_ref : (16, M1, M2)    bf16 0/1 tap-selection matrices (shared constant)
    # g_ref  : (2ndf, 1)       BN gamma        b_ref: (2ndf, 1) BN beta
    # m3t_ref: (2ndf, M2)      layer-3 weights replicated over batch, divided by N
    # o_ref  : (1, 1)          per-class scalar output
    # ut_ref : (16*2ndf, M1)   f32 VMEM scratch for the hoisted layer-2 products

    # ---- layer 1: conv(nc->ndf,4,2,1) as one lane-dense matmul + LeakyReLU ---
    o1t = _leaky(jnp.dot(w1t_ref[...], p1t_ref[...],
                         preferred_element_type=jnp.float32))          # (ndf, M1)

    # ---- layer 2, weight side hoisted: one matmul for all 16 taps ------------
    ut_ref[...] = jnp.dot(w2c_ref[...], o1t,
                          preferred_element_type=jnp.float32)          # (16*2ndf, M1)

    n_taps = st_ref.shape[0]
    cout2 = g_ref.shape[0]

    # ---- layer 2, spatial side: per-tap selection matmuls (bf16 S -> f32) ----
    # First tap initializes the accumulator (no zero-fill + dependent add).
    acc = jnp.dot(ut_ref[0:cout2, :], st_ref[0].astype(jnp.float32),
                  preferred_element_type=jnp.float32)                  # (2ndf, M2)
    for j in range(1, n_taps):                   # static, unrolled at trace time
        acc = acc + jnp.dot(ut_ref[j * cout2:(j + 1) * cout2, :],
                            st_ref[j].astype(jnp.float32),
                            preferred_element_type=jnp.float32)

    # ---- BatchNorm2d (training-mode batch stats, biased var), one pass -------
    inv_m2 = 1.0 / acc.shape[1]
    mean = jnp.sum(acc, axis=1, keepdims=True) * inv_m2                # (2ndf, 1)
    ex2 = jnp.sum(acc * acc, axis=1, keepdims=True) * inv_m2
    var = ex2 - mean * mean
    o2 = _leaky((acc - mean) * jax.lax.rsqrt(var + BN_EPS)
                * g_ref[...] + b_ref[...])                             # (2ndf, M2)

    # ---- final conv(2ndf->1,4,1,0) + mean over batch: multiply-reduce --------
    o_ref[...] = jnp.sum(o2 * m3t_ref[...], axis=(0, 1), keepdims=True)  # (1, 1)


# -------------------- trace-time glue (plain JAX / numpy) --------------------

def im2col(x, k, s, p):
    """x: (B, H, W, C) -> (B, Ho, Wo, k*k*C); feature order (kh, kw, cin)."""
    xp = jnp.pad(x, ((0, 0), (p, p), (p, p), (0, 0)))
    B, Hp, Wp, C = xp.shape
    Ho = (Hp - k) // s + 1
    Wo = (Wp - k) // s + 1
    cols = []
    for kh in range(k):
        for kw in range(k):
            cols.append(xp[:, kh:kh + (Ho - 1) * s + 1:s,
                           kw:kw + (Wo - 1) * s + 1:s, :])
    patches = jnp.stack(cols, axis=3)                # (B, Ho, Wo, k*k, C)
    return patches.reshape(B, Ho, Wo, k * k * C)


def w_to_mat(w):
    """Per-class conv weight (n_cls, Cout, Cin, kh, kw) -> (n_cls, kh*kw*Cin, Cout)."""
    n_cls, cout, cin, kh, kw = w.shape
    return jnp.transpose(w, (0, 3, 4, 2, 1)).reshape(n_cls, kh * kw * cin, cout)


def build_tap_selection_t(N, H1, W1, H2, W2, k, s, p):
    """Constant 0/1 matrices S[j, m1, m2] (already transposed): output column
    m2=(n,oh,ow) gathers input row m1=(n,ih,iw) for kernel tap j=(kh,kw);
    missing entries encode zero padding."""
    M1 = N * H1 * W1
    M2 = N * H2 * W2
    sel = np.zeros((k * k, M1, M2), np.float32)
    for n in range(N):
        for oh in range(H2):
            for ow in range(W2):
                m2 = (n * H2 + oh) * W2 + ow
                for kh in range(k):
                    for kw in range(k):
                        ih = oh * s + kh - p
                        iw = ow * s + kw - p
                        if 0 <= ih < H1 and 0 <= iw < W1:
                            m1 = (n * H1 + ih) * W1 + iw
                            sel[kh * k + kw, m1, m2] = 1.0
    return sel


def dcgan_d_starshaped_forward(x, params):
    """x: (n_classes, N, nc, isize, isize) NCHW per class -> (n_classes, 1)."""
    w1, w2, gamma2, beta2, w3 = params
    n_cls, N, C, H, W = x.shape
    ndf = w1.shape[1]
    cout2 = w2.shape[1]
    k = 4
    x = jnp.transpose(x, (0, 1, 3, 4, 2)).astype(jnp.float32)            # NHWC

    # layer-1 im2col (input-side data movement only; everything else in-kernel)
    # TODO(synk): input patch extraction (im2col) stays as XLA data-movement glue.
    p1 = jax.vmap(lambda xi: im2col(xi, k, 2, 1))(x)                     # (cls, N, 8, 8, K1)
    _, _, H1, W1, K1 = p1.shape
    M1 = N * H1 * W1
    p1t = jnp.transpose(p1.reshape(n_cls, M1, K1), (0, 2, 1))            # (cls, K1, M1)

    H2 = (H1 + 2 * 1 - k) // 2 + 1
    W2sp = (W1 + 2 * 1 - k) // 2 + 1
    M2 = N * H2 * W2sp

    # parameter re-packing (trace-time constants / tiny transposes)
    w1t = jnp.transpose(w_to_mat(w1), (0, 2, 1))                         # (cls, ndf, K1)
    # layer-2 weights with rows ordered (tap j = kh*4+kw, cout):
    w2c = jnp.transpose(w2, (0, 3, 4, 1, 2)).reshape(n_cls, k * k * cout2, ndf)
    # 0/1 selection constant, transposed and shipped as bf16 (exact values):
    st = jnp.asarray(build_tap_selection_t(N, H1, W1, H2, W2sp, k, 2, 1),
                     dtype=jnp.bfloat16)                                 # (16, M1, M2)
    g = gamma2.reshape(n_cls, cout2, 1).astype(jnp.float32)
    b = beta2.reshape(n_cls, cout2, 1).astype(jnp.float32)
    # layer-3 weights as a (2ndf, M2) multiply-reduce matrix, pre-divided by N
    m3t = jnp.tile(w3[:, 0].reshape(n_cls, cout2, H2 * W2sp), (1, 1, N)) / N

    def cls_spec(tail):
        return pl.BlockSpec((None,) + tail, lambda c: (c,) + (0,) * len(tail))

    out = pl.pallas_call(
        fused_dcgan_d_kernel,
        out_shape=jax.ShapeDtypeStruct((n_cls, 1, 1), jnp.float32),
        grid=(n_cls,),
        in_specs=[
            cls_spec((K1, M1)),                                          # p1t
            cls_spec((ndf, K1)),                                         # w1t
            cls_spec((k * k * cout2, ndf)),                              # w2c
            pl.BlockSpec((k * k, M1, M2), lambda c: (0, 0, 0)),          # st (shared)
            cls_spec((cout2, 1)),                                        # gamma
            cls_spec((cout2, 1)),                                        # beta
            cls_spec((cout2, M2)),                                       # m3t
        ],
        out_specs=cls_spec((1, 1)),
        scratch_shapes=[pltpu.VMEM((k * k * cout2, M1), jnp.float32)],
        compiler_params=pltpu.CompilerParams(
            dimension_semantics=("parallel",),   # v7x: one class per TensorCore
            vmem_limit_bytes=32 * 1024 * 1024,
        ),
    )(p1t, w1t, w2c, st, g, b, m3t)
    return out.reshape(n_cls, 1)                                         # == torch.stack(outputs, 0)


# -------------------- pure-JAX reference (for verification only) -------------

def reference_forward(x, params):
    w1, w2, gamma2, beta2, w3 = params
    n_cls, N, C, H, W = x.shape
    x = jnp.transpose(x, (0, 1, 3, 4, 2)).astype(jnp.float32)

    p1 = jax.vmap(lambda xi: im2col(xi, 4, 2, 1))(x)
    y1 = _leaky(jnp.einsum('cnhwk,cko->cnhwo', p1, w_to_mat(w1),
                           precision=jax.lax.Precision.HIGHEST))
    p2 = jax.vmap(lambda xi: im2col(xi, 4, 2, 1))(y1)
    y2 = jnp.einsum('cnhwk,cko->cnhwo', p2, w_to_mat(w2),
                    precision=jax.lax.Precision.HIGHEST)
    mean = jnp.mean(y2, axis=(1, 2, 3), keepdims=True)
    var = jnp.mean((y2 - mean) ** 2, axis=(1, 2, 3), keepdims=True)
    y2 = (y2 - mean) * jax.lax.rsqrt(var + BN_EPS)
    y2 = _leaky(y2 * gamma2[:, None, None, None, :] + beta2[:, None, None, None, :])
    p3 = jax.vmap(lambda xi: im2col(xi, 4, 1, 0))(y2)
    y3 = jnp.einsum('cnhwk,cko->cnhwo', p3, w_to_mat(w3),
                    precision=jax.lax.Precision.HIGHEST)                 # (cls, N, 1, 1, 1)
    return jnp.mean(y3, axis=1).reshape(n_cls, 1)


# -------------------- main --------------------

if __name__ == "__main__":
    n_classes, batch, nc, isize, ndf = 2, 2, 3, 16, 8

    key = jax.random.PRNGKey(0)
    k0, k1, k2, k3, k4, k5 = jax.random.split(key, 6)
    # Deterministic synthetic parameters (DCGAN-style N(0, 0.02) conv init).
    w1 = 0.02 * jax.random.normal(k0, (n_classes, ndf, nc, 4, 4), jnp.float32)
    w2 = 0.02 * jax.random.normal(k1, (n_classes, 2 * ndf, ndf, 4, 4), jnp.float32)
    gamma2 = 1.0 + 0.02 * jax.random.normal(k2, (n_classes, 2 * ndf), jnp.float32)
    beta2 = 0.02 * jax.random.normal(k3, (n_classes, 2 * ndf), jnp.float32)
    w3 = 0.02 * jax.random.normal(k4, (n_classes, 1, 2 * ndf, 4, 4), jnp.float32)
    params = (w1, w2, gamma2, beta2, w3)

    x = jax.random.normal(k5, (n_classes, batch, nc, isize, isize), jnp.float32)

    out = jax.jit(dcgan_d_starshaped_forward)(x, params)
    out = jax.block_until_ready(out)

    ref = reference_forward(x, params)
    assert out.shape == (n_classes, 1), out.shape
    assert jnp.allclose(out, ref, atol=3e-3, rtol=3e-2), (out, ref)

    print("KERNEL_OK")
</pallas_src>

<mosaic_0001>
module attributes {stable_mosaic.version = 11 : i64} {
  func.func @fused_dcgan_d_kernel(%arg0: i32, %arg1: memref<1x48x128xf32, #tpu.memory_space<vmem>>, %arg2: memref<1x8x48xf32, #tpu.memory_space<vmem>>, %arg3: memref<1x256x8xf32, #tpu.memory_space<vmem>>, %arg4: memref<16x128x32xbf16, #tpu.memory_space<vmem>>, %arg5: memref<1x16x1xf32, #tpu.memory_space<vmem>>, %arg6: memref<1x16x1xf32, #tpu.memory_space<vmem>>, %arg7: memref<1x16x32xf32, #tpu.memory_space<vmem>>, %arg8: memref<1x1x1xf32, #tpu.memory_space<vmem>>, %arg9: memref<256x128xf32, #tpu.memory_space<vmem>>) attributes {dimension_semantics = [#tpu.dimension_semantics<parallel>], iteration_bounds = array<i64: 2>, scalar_prefetch = 0 : i64, scratch_operands = 1 : i64, tpu.core_type = #tpu.core_type<tc>, window_params = [{transform_indices = @transform_0, window_bounds = array<i64: 1, 48, 128>}, {transform_indices = @transform_1, window_bounds = array<i64: 1, 8, 48>}, {transform_indices = @transform_2, window_bounds = array<i64: 1, 256, 8>}, {pipeline_mode = #tpu.pipeline_mode<synchronous>, transform_indices = @transform_3, window_bounds = array<i64: 16, 128, 32>}, {transform_indices = @transform_4, window_bounds = array<i64: 1, 16, 1>}, {transform_indices = @transform_5, window_bounds = array<i64: 1, 16, 1>}, {transform_indices = @transform_6, window_bounds = array<i64: 1, 16, 32>}, {transform_indices = @transform_7, window_bounds = array<i64: 1, 1, 1>}]} {
    %c0 = arith.constant 0 : index
    %c0_0 = arith.constant 0 : index
    %c0_1 = arith.constant 0 : index
    %0 = vector.load %arg2[%c0, %c0_0, %c0_1] : memref<1x8x48xf32, #tpu.memory_space<vmem>>, vector<1x8x48xf32>
    %1 = vector.shape_cast %0 : vector<1x8x48xf32> to vector<8x48xf32>
    %c0_2 = arith.constant 0 : index
    %c0_3 = arith.constant 0 : index
    %c0_4 = arith.constant 0 : index
    %2 = vector.load %arg1[%c0_2, %c0_3, %c0_4] : memref<1x48x128xf32, #tpu.memory_space<vmem>>, vector<1x48x128xf32>
    %3 = vector.shape_cast %2 : vector<1x48x128xf32> to vector<48x128xf32>
    %cst = arith.constant dense<0.000000e+00> : vector<8x128xf32>
    %4 = tpu.matmul %1, %3, %cst {dimension_numbers = #tpu.dot_dimension_numbers<[1], [0], [0], [1], [0, 0, 1, 1], [], []>} : vector<8x48xf32>, vector<48x128xf32>, vector<8x128xf32> -> vector<8x128xf32>
    %cst_5 = arith.constant 0.000000e+00 : f32
    %5 = vector.broadcast %cst_5 : f32 to vector<8x128xf32>
    %6 = arith.cmpf ogt, %4, %5 : vector<8x128xf32>
    %cst_6 = arith.constant 2.000000e-01 : f32
    %7 = vector.broadcast %cst_6 : f32 to vector<8x128xf32>
    %8 = arith.mulf %7, %4 : vector<8x128xf32>
    %9 = arith.select %6, %4, %8 : vector<8x128xi1>, vector<8x128xf32>
    %c0_7 = arith.constant 0 : index
    %c0_8 = arith.constant 0 : index
    %c0_9 = arith.constant 0 : index
    %10 = vector.load %arg3[%c0_7, %c0_8, %c0_9] : memref<1x256x8xf32, #tpu.memory_space<vmem>>, vector<1x256x8xf32>
    %11 = vector.shape_cast %10 : vector<1x256x8xf32> to vector<256x8xf32>
    %cst_10 = arith.constant dense<0.000000e+00> : vector<256x128xf32>
    %12 = tpu.matmul %11, %9, %cst_10 {dimension_numbers = #tpu.dot_dimension_numbers<[1], [0], [0], [1], [0, 0, 1, 1], [], []>} : vector<256x8xf32>, vector<8x128xf32>, vector<256x128xf32> -> vector<256x128xf32>
    %c0_11 = arith.constant 0 : index
    %c0_12 = arith.constant 0 : index
    %13 = vector.load %arg9[%c0_11, %c0_12] : memref<256x128xf32, #tpu.memory_space<vmem>>, vector<256x128xf32>
    tpu.vector_store %arg9[%c0_11, %c0_12], %12 {strides = array<i32>} : memref<256x128xf32, #tpu.memory_space<vmem>>, vector<256x128xf32>,
    %c0_13 = arith.constant 0 : index
    %c0_14 = arith.constant 0 : index
    %14 = vector.load %arg9[%c0_13, %c0_14] : memref<256x128xf32, #tpu.memory_space<vmem>>, vector<16x128xf32>
    %c0_15 = arith.constant 0 : index
    %c0_16 = arith.constant 0 : index
    %c0_17 = arith.constant 0 : index
    %15 = vector.load %arg4[%c0_15, %c0_16, %c0_17] : memref<16x128x32xbf16, #tpu.memory_space<vmem>>, vector<1x128x32xbf16>
    %16 = vector.shape_cast %15 : vector<1x128x32xbf16> to vector<128x32xbf16>
    %17 = arith.extf %16 : vector<128x32xbf16> to vector<128x32xf32>
    %cst_18 = arith.constant dense<0.000000e+00> : vector<16x32xf32>
    %18 = tpu.matmul %14, %17, %cst_18 {dimension_numbers = #tpu.dot_dimension_numbers<[1], [0], [0], [1], [0, 0, 1, 1], [], []>} : vector<16x128xf32>, vector<128x32xf32>, vector<16x32xf32> -> vector<16x32xf32>
    %c16 = arith.constant 16 : index
    %c0_19 = arith.constant 0 : index
    %19 = vector.load %arg9[%c16, %c0_19] : memref<256x128xf32, #tpu.memory_space<vmem>>, vector<16x128xf32>
    %c1 = arith.constant 1 : index
    %c0_20 = arith.constant 0 : index
    %c0_21 = arith.constant 0 : index
    %20 = vector.load %arg4[%c1, %c0_20, %c0_21] : memref<16x128x32xbf16, #tpu.memory_space<vmem>>, vector<1x128x32xbf16>
    %21 = vector.shape_cast %20 : vector<1x128x32xbf16> to vector<128x32xbf16>
    %22 = arith.extf %21 : vector<128x32xbf16> to vector<128x32xf32>
    %cst_22 = arith.constant dense<0.000000e+00> : vector<16x32xf32>
    %23 = tpu.matmul %19, %22, %cst_22 {dimension_numbers = #tpu.dot_dimension_numbers<[1], [0], [0], [1], [0, 0, 1, 1], [], []>} : vector<16x128xf32>, vector<128x32xf32>, vector<16x32xf32> -> vector<16x32xf32>
    %24 = arith.addf %18, %23 : vector<16x32xf32>
    %c32 = arith.constant 32 : index
    %c0_23 = arith.constant 0 : index
    %25 = vector.load %arg9[%c32, %c0_23] : memref<256x128xf32, #tpu.memory_space<vmem>>, vector<16x128xf32>
    %c2 = arith.constant 2 : index
    %c0_24 = arith.constant 0 : index
    %c0_25 = arith.constant 0 : index
    %26 = vector.load %arg4[%c2, %c0_24, %c0_25] : memref<16x128x32xbf16, #tpu.memory_space<vmem>>, vector<1x128x32xbf16>
    %27 = vector.shape_cast %26 : vector<1x128x32xbf16> to vector<128x32xbf16>
    %28 = arith.extf %27 : vector<128x32xbf16> to vector<128x32xf32>
    %cst_26 = arith.constant dense<0.000000e+00> : vector<16x32xf32>
    %29 = tpu.matmul %25, %28, %cst_26 {dimension_numbers = #tpu.dot_dimension_numbers<[1], [0], [0], [1], [0, 0, 1, 1], [], []>} : vector<16x128xf32>, vector<128x32xf32>, vector<16x32xf32> -> vector<16x32xf32>
    %30 = arith.addf %24, %29 : vector<16x32xf32>
    %c48 = arith.constant 48 : index
    %c0_27 = arith.constant 0 : index
    %31 = vector.load %arg9[%c48, %c0_27] : memref<256x128xf32, #tpu.memory_space<vmem>>, vector<16x128xf32>
    %c3 = arith.constant 3 : index
    %c0_28 = arith.constant 0 : index
    %c0_29 = arith.constant 0 : index
    %32 = vector.load %arg4[%c3, %c0_28, %c0_29] : memref<16x128x32xbf16, #tpu.memory_space<vmem>>, vector<1x128x32xbf16>
    %33 = vector.shape_cast %32 : vector<1x128x32xbf16> to vector<128x32xbf16>
    %34 = arith.extf %33 : vector<128x32xbf16> to vector<128x32xf32>
    %cst_30 = arith.constant dense<0.000000e+00> : vector<16x32xf32>
    %35 = tpu.matmul %31, %34, %cst_30 {dimension_numbers = #tpu.dot_dimension_numbers<[1], [0], [0], [1], [0, 0, 1, 1], [], []>} : vector<16x128xf32>, vector<128x32xf32>, vector<16x32xf32> -> vector<16x32xf32>
    %36 = arith.addf %30, %35 : vector<16x32xf32>
    %c64 = arith.constant 64 : index
    %c0_31 = arith.constant 0 : index
    %37 = vector.load %arg9[%c64, %c0_31] : memref<256x128xf32, #tpu.memory_space<vmem>>, vector<16x128xf32>
    %c4 = arith.constant 4 : index
    %c0_32 = arith.constant 0 : index
    %c0_33 = arith.constant 0 : index
    %38 = vector.load %arg4[%c4, %c0_32, %c0_33] : memref<16x128x32xbf16, #tpu.memory_space<vmem>>, vector<1x128x32xbf16>
    %39 = vector.shape_cast %38 : vector<1x128x32xbf16> to vector<128x32xbf16>
    %40 = arith.extf %39 : vector<128x32xbf16> to vector<128x32xf32>
    %cst_34 = arith.constant dense<0.000000e+00> : vector<16x32xf32>
    %41 = tpu.matmul %37, %40, %cst_34 {dimension_numbers = #tpu.dot_dimension_numbers<[1], [0], [0], [1], [0, 0, 1, 1], [], []>} : vector<16x128xf32>, vector<128x32xf32>, vector<16x32xf32> -> vector<16x32xf32>
    %42 = arith.addf %36, %41 : vector<16x32xf32>
    %c80 = arith.constant 80 : index
    %c0_35 = arith.constant 0 : index
    %43 = vector.load %arg9[%c80, %c0_35] : memref<256x128xf32, #tpu.memory_space<vmem>>, vector<16x128xf32>
    %c5 = arith.constant 5 : index
    %c0_36 = arith.constant 0 : index
    %c0_37 = arith.constant 0 : index
    %44 = vector.load %arg4[%c5, %c0_36, %c0_37] : memref<16x128x32xbf16, #tpu.memory_space<vmem>>, vector<1x128x32xbf16>
    %45 = vector.shape_cast %44 : vector<1x128x32xbf16> to vector<128x32xbf16>
    %46 = arith.extf %45 : vector<128x32xbf16> to vector<128x32xf32>
    %cst_38 = arith.constant dense<0.000000e+00> : vector<16x32xf32>
    %47 = tpu.matmul %43, %46, %cst_38 {dimension_numbers = #tpu.dot_dimension_numbers<[1], [0], [0], [1], [0, 0, 1, 1], [], []>} : vector<16x128xf32>, vector<128x32xf32>, vector<16x32xf32> -> vector<16x32xf32>
    %48 = arith.addf %42, %47 : vector<16x32xf32>
    %c96 = arith.constant 96 : index
    %c0_39 = arith.constant 0 : index
    %49 = vector.load %arg9[%c96, %c0_39] : memref<256x128xf32, #tpu.memory_space<vmem>>, vector<16x128xf32>
    %c6 = arith.constant 6 : index
    %c0_40 = arith.constant 0 : index
    %c0_41 = arith.constant 0 : index
    %50 = vector.load %arg4[%c6, %c0_40, %c0_41] : memref<16x128x32xbf16, #tpu.memory_space<vmem>>, vector<1x128x32xbf16>
    %51 = vector.shape_cast %50 : vector<1x128x32xbf16> to vector<128x32xbf16>
    %52 = arith.extf %51 : vector<128x32xbf16> to vector<128x32xf32>
    %cst_42 = arith.constant dense<0.000000e+00> : vector<16x32xf32>
    %53 = tpu.matmul %49, %52, %cst_42 {dimension_numbers = #tpu.dot_dimension_numbers<[1], [0], [0], [1], [0, 0, 1, 1], [], []>} : vector<16x128xf32>, vector<128x32xf32>, vector<16x32xf32> -> vector<16x32xf32>
    %54 = arith.addf %48, %53 : vector<16x32xf32>
    %c112 = arith.constant 112 : index
    %c0_43 = arith.constant 0 : index
    %55 = vector.load %arg9[%c112, %c0_43] : memref<256x128xf32, #tpu.memory_space<vmem>>, vector<16x128xf32>
    %c7 = arith.constant 7 : index
    %c0_44 = arith.constant 0 : index
    %c0_45 = arith.constant 0 : index
    %56 = vector.load %arg4[%c7, %c0_44, %c0_45] : memref<16x128x32xbf16, #tpu.memory_space<vmem>>, vector<1x128x32xbf16>
    %57 = vector.shape_cast %56 : vector<1x128x32xbf16> to vector<128x32xbf16>
    %58 = arith.extf %57 : vector<128x32xbf16> to vector<128x32xf32>
    %cst_46 = arith.constant dense<0.000000e+00> : vector<16x32xf32>
    %59 = tpu.matmul %55, %58, %cst_46 {dimension_numbers = #tpu.dot_dimension_numbers<[1], [0], [0], [1], [0, 0, 1, 1], [], []>} : vector<16x128xf32>, vector<128x32xf32>, vector<16x32xf32> -> vector<16x32xf32>
    %60 = arith.addf %54, %59 : vector<16x32xf32>
    %c128 = arith.constant 128 : index
    %c0_47 = arith.constant 0 : index
    %61 = vector.load %arg9[%c128, %c0_47] : memref<256x128xf32, #tpu.memory_space<vmem>>, vector<16x128xf32>
    %c8 = arith.constant 8 : index
    %c0_48 = arith.constant 0 : index
    %c0_49 = arith.constant 0 : index
    %62 = vector.load %arg4[%c8, %c0_48, %c0_49] : memref<16x128x32xbf16, #tpu.memory_space<vmem>>, vector<1x128x32xbf16>
    %63 = vector.shape_cast %62 : vector<1x128x32xbf16> to vector<128x32xbf16>
    %64 = arith.extf %63 : vector<128x32xbf16> to vector<128x32xf32>
    %cst_50 = arith.constant dense<0.000000e+00> : vector<16x32xf32>
    %65 = tpu.matmul %61, %64, %cst_50 {dimension_numbers = #tpu.dot_dimension_numbers<[1], [0], [0], [1], [0, 0, 1, 1], [], []>} : vector<16x128xf32>, vector<128x32xf32>, vector<16x32xf32> -> vector<16x32xf32>
    %66 = arith.addf %60, %65 : vector<16x32xf32>
    %c144 = arith.constant 144 : index
    %c0_51 = arith.constant 0 : index
    %67 = vector.load %arg9[%c144, %c0_51] : memref<256x128xf32, #tpu.memory_space<vmem>>, vector<16x128xf32>
    %c9 = arith.constant 9 : index
    %c0_52 = arith.constant 0 : index
    %c0_53 = arith.constant 0 : index
    %68 = vector.load %arg4[%c9, %c0_52, %c0_53] : memref<16x128x32xbf16, #tpu.memory_space<vmem>>, vector<1x128x32xbf16>
    %69 = vector.shape_cast %68 : vector<1x128x32xbf16> to vector<128x32xbf16>
    %70 = arith.extf %69 : vector<128x32xbf16> to vector<128x32xf32>
    %cst_54 = arith.constant dense<0.000000e+00> : vector<16x32xf32>
    %71 = tpu.matmul %67, %70, %cst_54 {dimension_numbers = #tpu.dot_dimension_numbers<[1], [0], [0], [1], [0, 0, 1, 1], [], []>} : vector<16x128xf32>, vector<128x32xf32>, vector<16x32xf32> -> vector<16x32xf32>
    %72 = arith.addf %66, %71 : vector<16x32xf32>
    %c160 = arith.constant 160 : index
    %c0_55 = arith.constant 0 : index
    %73 = vector.load %arg9[%c160, %c0_55] : memref<256x128xf32, #tpu.memory_space<vmem>>, vector<16x128xf32>
    %c10 = arith.constant 10 : index
    %c0_56 = arith.constant 0 : index
    %c0_57 = arith.constant 0 : index
    %74 = vector.load %arg4[%c10, %c0_56, %c0_57] : memref<16x128x32xbf16, #tpu.memory_space<vmem>>, vector<1x128x32xbf16>
    %75 = vector.shape_cast %74 : vector<1x128x32xbf16> to vector<128x32xbf16>
    %76 = arith.extf %75 : vector<128x32xbf16> to vector<128x32xf32>
    %cst_58 = arith.constant dense<0.000000e+00> : vector<16x32xf32>
    %77 = tpu.matmul %73, %76, %cst_58 {dimension_numbers = #tpu.dot_dimension_numbers<[1], [0], [0], [1], [0, 0, 1, 1], [], []>} : vector<16x128xf32>, vector<128x32xf32>, vector<16x32xf32> -> vector<16x32xf32>
    %78 = arith.addf %72, %77 : vector<16x32xf32>
    %c176 = arith.constant 176 : index
    %c0_59 = arith.constant 0 : index
    %79 = vector.load %arg9[%c176, %c0_59] : memref<256x128xf32, #tpu.memory_space<vmem>>, vector<16x128xf32>
    %c11 = arith.constant 11 : index
    %c0_60 = arith.constant 0 : index
    %c0_61 = arith.constant 0 : index
    %80 = vector.load %arg4[%c11, %c0_60, %c0_61] : memref<16x128x32xbf16, #tpu.memory_space<vmem>>, vector<1x128x32xbf16>
    %81 = vector.shape_cast %80 : vector<1x128x32xbf16> to vector<128x32xbf16>
    %82 = arith.extf %81 : vector<128x32xbf16> to vector<128x32xf32>
    %cst_62 = arith.constant dense<0.000000e+00> : vector<16x32xf32>
    %83 = tpu.matmul %79, %82, %cst_62 {dimension_numbers = #tpu.dot_dimension_numbers<[1], [0], [0], [1], [0, 0, 1, 1], [], []>} : vector<16x128xf32>, vector<128x32xf32>, vector<16x32xf32> -> vector<16x32xf32>
    %84 = arith.addf %78, %83 : vector<16x32xf32>
    %c192 = arith.constant 192 : index
    %c0_63 = arith.constant 0 : index
    %85 = vector.load %arg9[%c192, %c0_63] : memref<256x128xf32, #tpu.memory_space<vmem>>, vector<16x128xf32>
    %c12 = arith.constant 12 : index
    %c0_64 = arith.constant 0 : index
    %c0_65 = arith.constant 0 : index
    %86 = vector.load %arg4[%c12, %c0_64, %c0_65] : memref<16x128x32xbf16, #tpu.memory_space<vmem>>, vector<1x128x32xbf16>
    %87 = vector.shape_cast %86 : vector<1x128x32xbf16> to vector<128x32xbf16>
    %88 = arith.extf %87 : vector<128x32xbf16> to vector<128x32xf32>
    %cst_66 = arith.constant dense<0.000000e+00> : vector<16x32xf32>
    %89 = tpu.matmul %85, %88, %cst_66 {dimension_numbers = #tpu.dot_dimension_numbers<[1], [0], [0], [1], [0, 0, 1, 1], [], []>} : vector<16x128xf32>, vector<128x32xf32>, vector<16x32xf32> -> vector<16x32xf32>
    %90 = arith.addf %84, %89 : vector<16x32xf32>
    %c208 = arith.constant 208 : index
    %c0_67 = arith.constant 0 : index
    %91 = vector.load %arg9[%c208, %c0_67] : memref<256x128xf32, #tpu.memory_space<vmem>>, vector<16x128xf32>
    %c13 = arith.constant 13 : index
    %c0_68 = arith.constant 0 : index
    %c0_69 = arith.constant 0 : index
    %92 = vector.load %arg4[%c13, %c0_68, %c0_69] : memref<16x128x32xbf16, #tpu.memory_space<vmem>>, vector<1x128x32xbf16>
    %93 = vector.shape_cast %92 : vector<1x128x32xbf16> to vector<128x32xbf16>
    %94 = arith.extf %93 : vector<128x32xbf16> to vector<128x32xf32>
    %cst_70 = arith.constant dense<0.000000e+00> : vector<16x32xf32>
    %95 = tpu.matmul %91, %94, %cst_70 {dimension_numbers = #tpu.dot_dimension_numbers<[1], [0], [0], [1], [0, 0, 1, 1], [], []>} : vector<16x128xf32>, vector<128x32xf32>, vector<16x32xf32> -> vector<16x32xf32>
    %96 = arith.addf %90, %95 : vector<16x32xf32>
    %c224 = arith.constant 224 : index
    %c0_71 = arith.constant 0 : index
    %97 = vector.load %arg9[%c224, %c0_71] : memref<256x128xf32, #tpu.memory_space<vmem>>, vector<16x128xf32>
    %c14 = arith.constant 14 : index
    %c0_72 = arith.constant 0 : index
    %c0_73 = arith.constant 0 : index
    %98 = vector.load %arg4[%c14, %c0_72, %c0_73] : memref<16x128x32xbf16, #tpu.memory_space<vmem>>, vector<1x128x32xbf16>
    %99 = vector.shape_cast %98 : vector<1x128x32xbf16> to vector<128x32xbf16>
    %100 = arith.extf %99 : vector<128x32xbf16> to vector<128x32xf32>
    %cst_74 = arith.constant dense<0.000000e+00> : vector<16x32xf32>
    %101 = tpu.matmul %97, %100, %cst_74 {dimension_numbers = #tpu.dot_dimension_numbers<[1], [0], [0], [1], [0, 0, 1, 1], [], []>} : vector<16x128xf32>, vector<128x32xf32>, vector<16x32xf32> -> vector<16x32xf32>
    %102 = arith.addf %96, %101 : vector<16x32xf32>
    %c240 = arith.constant 240 : index
    %c0_75 = arith.constant 0 : index
    %103 = vector.load %arg9[%c240, %c0_75] : memref<256x128xf32, #tpu.memory_space<vmem>>, vector<16x128xf32>
    %c15 = arith.constant 15 : index
    %c0_76 = arith.constant 0 : index
    %c0_77 = arith.constant 0 : index
    %104 = vector.load %arg4[%c15, %c0_76, %c0_77] : memref<16x128x32xbf16, #tpu.memory_space<vmem>>, vector<1x128x32xbf16>
    %105 = vector.shape_cast %104 : vector<1x128x32xbf16> to vector<128x32xbf16>
    %106 = arith.extf %105 : vector<128x32xbf16> to vector<128x32xf32>
    %cst_78 = arith.constant dense<0.000000e+00> : vector<16x32xf32>
    %107 = tpu.matmul %103, %106, %cst_78 {dimension_numbers = #tpu.dot_dimension_numbers<[1], [0], [0], [1], [0, 0, 1, 1], [], []>} : vector<16x128xf32>, vector<128x32xf32>, vector<16x32xf32> -> vector<16x32xf32>
    %108 = arith.addf %102, %107 : vector<16x32xf32>
    %cst_79 = arith.constant dense<0.000000e+00> : vector<16xf32>
    %109 = vector.multi_reduction <add>, %108, %cst_79 [1] : vector<16x32xf32> to vector<16xf32>
    %110 = vector.shape_cast %109 : vector<16xf32> to vector<16x1xf32>
    %cst_80 = arith.constant 3.125000e-02 : f32
    %111 = vector.broadcast %cst_80 : f32 to vector<16x1xf32>
    %112 = arith.mulf %110, %111 : vector<16x1xf32>
    %113 = arith.mulf %108, %108 : vector<16x32xf32>
    %cst_81 = arith.constant dense<0.000000e+00> : vector<16xf32>
    %114 = vector.multi_reduction <add>, %113, %cst_81 [1] : vector<16x32xf32> to vector<16xf32>
    %115 = vector.shape_cast %114 : vector<16xf32> to vector<16x1xf32>
    %cst_82 = arith.constant 3.125000e-02 : f32
    %116 = vector.broadcast %cst_82 : f32 to vector<16x1xf32>
    %117 = arith.mulf %115, %116 : vector<16x1xf32>
    %118 = arith.mulf %112, %112 : vector<16x1xf32>
    %119 = arith.subf %117, %118 : vector<16x1xf32>
    %120 = vector.broadcast %112 : vector<16x1xf32> to vector<16x32xf32>
    %121 = arith.subf %108, %120 : vector<16x32xf32>
    %cst_83 = arith.constant 9.99999974E-6 : f32
    %122 = vector.broadcast %cst_83 : f32 to vector<16x1xf32>
    %123 = arith.addf %119, %122 : vector<16x1xf32>
    %124 = math.rsqrt %123 : vector<16x1xf32>
    %125 = vector.broadcast %124 : vector<16x1xf32> to vector<16x32xf32>
    %126 = arith.mulf %121, %125 : vector<16x32xf32>
    %c0_84 = arith.constant 0 : index
    %c0_85 = arith.constant 0 : index
    %c0_86 = arith.constant 0 : index
    %127 = vector.load %arg5[%c0_84, %c0_85, %c0_86] : memref<1x16x1xf32, #tpu.memory_space<vmem>>, vector<1x16x1xf32>
    %128 = vector.shape_cast %127 : vector<1x16x1xf32> to vector<16x1xf32>
    %129 = vector.broadcast %128 : vector<16x1xf32> to vector<16x32xf32>
    %130 = arith.mulf %126, %129 : vector<16x32xf32>
    %c0_87 = arith.constant 0 : index
    %c0_88 = arith.constant 0 : index
    %c0_89 = arith.constant 0 : index
    %131 = vector.load %arg6[%c0_87, %c0_88, %c0_89] : memref<1x16x1xf32, #tpu.memory_space<vmem>>, vector<1x16x1xf32>
    %132 = vector.shape_cast %131 : vector<1x16x1xf32> to vector<16x1xf32>
    %133 = vector.broadcast %132 : vector<16x1xf32> to vector<16x32xf32>
    %134 = arith.addf %130, %133 : vector<16x32xf32>
    %cst_90 = arith.constant 0.000000e+00 : f32
    %135 = vector.broadcast %cst_90 : f32 to vector<16x32xf32>
    %136 = arith.cmpf ogt, %134, %135 : vector<16x32xf32>
    %cst_91 = arith.constant 2.000000e-01 : f32
    %137 = vector.broadcast %cst_91 : f32 to vector<16x32xf32>
    %138 = arith.mulf %137, %134 : vector<16x32xf32>
    %139 = arith.select %136, %134, %138 : vector<16x32xi1>, vector<16x32xf32>
    %c0_92 = arith.constant 0 : index
    %c0_93 = arith.constant 0 : index
    %c0_94 = arith.constant 0 : index
    %140 = vector.load %arg7[%c0_92, %c0_93, %c0_94] : memref<1x16x32xf32, #tpu.memory_space<vmem>>, vector<1x16x32xf32>
    %141 = vector.shape_cast %140 : vector<1x16x32xf32> to vector<16x32xf32>
    %142 = arith.mulf %139, %141 : vector<16x32xf32>
    %143 = vector.shape_cast %142 : vector<16x32xf32> to vector<1x16x32xf32>
    %cst_95 = arith.constant dense<0.000000e+00> : vector<1xf32>
    %144 = vector.multi_reduction <add>, %143, %cst_95 [1, 2] : vector<1x16x32xf32> to vector<1xf32>
    %145 = vector.shape_cast %144 : vector<1xf32> to vector<1x1x1xf32>
    %146 = vector.extract %145[0, 0, 0] : f32 from vector<1x1x1xf32>
    %147 = vector.broadcast %146 : f32 to vector<1x1xf32>
    %c0_96 = arith.constant 0 : index
    %c0_97 = arith.constant 0 : index
    %c0_98 = arith.constant 0 : index
    %148 = vector.load %arg8[%c0_96, %c0_97, %c0_98] : memref<1x1x1xf32, #tpu.memory_space<vmem>>, vector<1x1x1xf32>
    %149 = vector.shape_cast %148 : vector<1x1x1xf32> to vector<1x1xf32>
    %150 = vector.shape_cast %147 : vector<1x1xf32> to vector<1x1x1xf32>
    tpu.vector_store %arg8[%c0_96, %c0_97, %c0_98], %150 {strides = array<i32>} : memref<1x1x1xf32, #tpu.memory_space<vmem>>, vector<1x1x1xf32>,
    return
  }
  func.func @transform_0(%arg0: i32) -> (i32, i32, i32) {
    %c0_i32 = arith.constant 0 : i32
    %c0_i32_0 = arith.constant 0 : i32
    %c0_i32_1 = arith.constant 0 : i32
    return %arg0, %c0_i32, %c0_i32_0 : i32, i32, i32
  }
  func.func @transform_1(%arg0: i32) -> (i32, i32, i32) {
    %c0_i32 = arith.constant 0 : i32
    %c0_i32_0 = arith.constant 0 : i32
    %c0_i32_1 = arith.constant 0 : i32
    return %arg0, %c0_i32, %c0_i32_0 : i32, i32, i32
  }
  func.func @transform_2(%arg0: i32) -> (i32, i32, i32) {
    %c0_i32 = arith.constant 0 : i32
    %c0_i32_0 = arith.constant 0 : i32
    %c0_i32_1 = arith.constant 0 : i32
    return %arg0, %c0_i32, %c0_i32_0 : i32, i32, i32
  }
  func.func @transform_3(%arg0: i32) -> (i32, i32, i32) {
    %c0_i32 = arith.constant 0 : i32
    %c0_i32_0 = arith.constant 0 : i32
    %c0_i32_1 = arith.constant 0 : i32
    %c0_i32_2 = arith.constant 0 : i32
    return %c0_i32, %c0_i32_0, %c0_i32_1 : i32, i32, i32
  }
  func.func @transform_4(%arg0: i32) -> (i32, i32, i32) {
    %c0_i32 = arith.constant 0 : i32
    %c0_i32_0 = arith.constant 0 : i32
    %c0_i32_1 = arith.constant 0 : i32
    return %arg0, %c0_i32, %c0_i32_0 : i32, i32, i32
  }
  func.func @transform_5(%arg0: i32) -> (i32, i32, i32) {
    %c0_i32 = arith.constant 0 : i32
    %c0_i32_0 = arith.constant 0 : i32
    %c0_i32_1 = arith.constant 0 : i32
    return %arg0, %c0_i32, %c0_i32_0 : i32, i32, i32
  }
  func.func @transform_6(%arg0: i32) -> (i32, i32, i32) {
    %c0_i32 = arith.constant 0 : i32
    %c0_i32_0 = arith.constant 0 : i32
    %c0_i32_1 = arith.constant 0 : i32
    return %arg0, %c0_i32, %c0_i32_0 : i32, i32, i32
  }
  func.func @transform_7(%arg0: i32) -> (i32, i32, i32) {
    %c0_i32 = arith.constant 0 : i32
    %c0_i32_0 = arith.constant 0 : i32
    %c0_i32_1 = arith.constant 0 : i32
    return %arg0, %c0_i32, %c0_i32_0 : i32, i32, i32
  }
}

</mosaic_0001>

<llo_original>
// kernel: dcgan_d_starshaped_forward.1
$region0: #{dcgan_d_starshaped_forward.1}
  #allocation0 [shape = 'u32[]', space=smem, size = 0x4, offset = 0x4, fixed_abs, tag = 'smem constant byte address 0x4 - core index']
  #allocation1 [shape = 'u32[144,128]{1,0:T(1,128)}', space=vmem, size = 0x12000, scoped, tag = 'internal scratch']
  #allocation2 [shape = 'f32[256,128]{1,0:T(8,128)}', space=vmem, size = 0x20000, scoped, tag = 'scratch operand']
  %s0 = inlined_call_operand.vmem [shape: f32[2,48,128], index: 0, kind: input, shape index: {}]
  %s1 = inlined_call_operand.vmem [shape: f32[2,8,48], index: 1, kind: input, shape index: {}]
  %s2 = inlined_call_operand.vmem [shape: f32[2,256,8], index: 2, kind: input, shape index: {}]
  %s3 = inlined_call_operand.vmem [shape: bf16[16,128,32], index: 3, kind: input, shape index: {}]
  %s4 = inlined_call_operand.vmem [shape: f32[2,16,1], index: 4, kind: input, shape index: {}]
  %s5 = inlined_call_operand.vmem [shape: f32[2,16,1], index: 5, kind: input, shape index: {}]
  %s6 = inlined_call_operand.vmem [shape: f32[2,16,32], index: 6, kind: input, shape index: {}]
  %s7 = inlined_call_operand.vmem [shape: f32[2,1,1], index: 7, kind: output, shape index: {}]
  %s8 = sld [smem:[#allocation0]]
  $region61: #{dcgan_d_starshaped_forward.1} parent=0
    _
  %s10 = ssub.s32 1, %s8
  %s11 = scalar_select 0, %s10, %s8
  loop: start=0, step=1, limit=4
  $region2: #{dcgan_d_starshaped_forward.1} parent=0 // loop_pre_header
    _
  $region3: #{dcgan_d_starshaped_forward.1} parent=0 // loop_header
    %s13 = sphi 0, %s17
    %p14 = scmp.ge.s32.totalorder %s13, 4
    %s23 = sphi 0, %s25
    %s26 = sphi 0, %s23
    %s27 = sphi 0, %s26
    %s43 = sphi 0, %s27
    %s49 = sphi 0, %s51
    %s52 = sphi 0, %s49
    %s53 = sphi 0, %s52
    %s69 = sphi 0, %s53
    %s75 = sphi 0, %s77
    %s78 = sphi 0, %s75
    %s79 = sphi 0, %s78
    %s95 = sphi 0, %s79
    %s99 = sphi 0, %s99
    %s101 = sphi 0, %s99
    %s102 = sphi 0, %s101
    %s116 = sphi 0, %s102
    %s122 = sphi 0, %s124
    %s125 = sphi 0, %s122
    %s126 = sphi 0, %s125
    %s142 = sphi 0, %s126
    %s148 = sphi 0, %s150
    %s151 = sphi 0, %s148
    %s152 = sphi 0, %s151
    %s168 = sphi 0, %s152
    %s174 = sphi 0, %s176
    %s177 = sphi 0, %s174
    %s178 = sphi 0, %s177
    %s194 = sphi 0, %s178
    %s200 = sphi 0, %s202
    %s203 = sphi 0, %s200
    %s204 = sphi 0, %s203
    %s220 = sphi 0, %s204
  $region4: #{dcgan_d_starshaped_forward.1} parent=0 // loop_header_branch
    %16 = sbr.rel (%p14) target = $region8
  $region5: #{dcgan_d_starshaped_forward.1} parent=0 // loop_body
    %s18 = ssub.s32 %s13, 1
    %s19 = ssub.s32 %s13, 2
    %s20 = sadd.s32 %s13, 1
    %s21 = ssub.s32 %s13, %s20
    %p22 = scmp.eq.s32.totalorder %s21, 0
    %s24 = sadd.s32 %s23, 1
    %s25 = scalar_select %p22, %s23, %s24
    %p28 = pneg %p22
    %p29 = scmp.eq.s32.totalorder %s13, 1
    %p30 = por %p28, %p29
    %p31 = scmp.ne.s32.totalorder %s23, %s26
    %p32 = scmp.eq.s32.totalorder %s13, 0
    %p33 = por %p31, %p32
    %p34 = scmp.ne.s32.totalorder %s23, %s26
    %p35 = scmp.eq.s32.totalorder %s18, 1
    %p36 = por %p34, %p35
    %p37 = scmp.ne.s32.totalorder %s26, %s27
    %p38 = scmp.eq.s32.totalorder %s18, 0
    %p39 = por %p37, %p38
    %p40 = scmp.ne.s32.totalorder %s26, %s27
    %p41 = scmp.eq.s32.totalorder %s19, 1
    %p42 = por %p40, %p41
    %p44 = scmp.ne.s32.totalorder %s27, %s43
    %p45 = scmp.eq.s32.totalorder %s19, 0
    %p46 = por %p44, %p45
    %s47 = ssub.s32 %s13, %s20
    %p48 = scmp.eq.s32.totalorder %s47, 0
    %s50 = sadd.s32 %s49, 1
    %s51 = scalar_select %p48, %s49, %s50
    %p54 = pneg %p48
    %p55 = scmp.eq.s32.totalorder %s13, 1
    %p56 = por %p54, %p55
    %p57 = scmp.ne.s32.totalorder %s49, %s52
    %p58 = scmp.eq.s32.totalorder %s13, 0
    %p59 = por %p57, %p58
    %p60 = scmp.ne.s32.totalorder %s49, %s52
    %p61 = scmp.eq.s32.totalorder %s18, 1
    %p62 = por %p60, %p61
    %p63 = scmp.ne.s32.totalorder %s52, %s53
    %p64 = scmp.eq.s32.totalorder %s18, 0
    %p65 = por %p63, %p64
    %p66 = scmp.ne.s32.totalorder %s52, %s53
    %p67 = scmp.eq.s32.totalorder %s19, 1
    %p68 = por %p66, %p67
    %p70 = scmp.ne.s32.totalorder %s53, %s69
    %p71 = scmp.eq.s32.totalorder %s19, 0
    %p72 = por %p70, %p71
    %s73 = ssub.s32 %s13, %s20
    %p74 = scmp.eq.s32.totalorder %s73, 0
    %s76 = sadd.s32 %s75, 1
    %s77 = scalar_select %p74, %s75, %s76
    %p80 = pneg %p74
    %p81 = scmp.eq.s32.totalorder %s13, 1
    %p82 = por %p80, %p81
    %p83 = scmp.ne.s32.totalorder %s75, %s78
    %p84 = scmp.eq.s32.totalorder %s13, 0
    %p85 = por %p83, %p84
    %p86 = scmp.ne.s32.totalorder %s75, %s78
    %p87 = scmp.eq.s32.totalorder %s18, 1
    %p88 = por %p86, %p87
    %p89 = scmp.ne.s32.totalorder %s78, %s79
    %p90 = scmp.eq.s32.totalorder %s18, 0
    %p91 = por %p89, %p90
    %p92 = scmp.ne.s32.totalorder %s78, %s79
    %p93 = scmp.eq.s32.totalorder %s19, 1
    %p94 = por %p92, %p93
    %p96 = scmp.ne.s32.totalorder %s79, %s95
    %p97 = scmp.eq.s32.totalorder %s19, 0
    %p98 = por %p96, %p97
    %s100 = sadd.s32 %s99, 1
    %p103 = scmp.eq.s32.totalorder %s13, 1
    %p104 = scmp.ne.s32.totalorder %s99, %s101
    %p105 = scmp.eq.s32.totalorder %s13, 0
    %p106 = por %p104, %p105
    %p107 = scmp.ne.s32.totalorder %s99, %s101
    %p108 = scmp.eq.s32.totalorder %s18, 1
    %p109 = por %p107, %p108
    %p110 = scmp.ne.s32.totalorder %s101, %s102
    %p111 = scmp.eq.s32.totalorder %s18, 0
    %p112 = por %p110, %p111
    %p113 = scmp.ne.s32.totalorder %s101, %s102
    %p114 = scmp.eq.s32.totalorder %s19, 1
    %p115 = por %p113, %p114
    %p117 = scmp.ne.s32.totalorder %s102, %s116
    %p118 = scmp.eq.s32.totalorder %s19, 0
    %p119 = por %p117, %p118
    %s120 = ssub.s32 %s13, %s20
    %p121 = scmp.eq.s32.totalorder %s120, 0
    %s123 = sadd.s32 %s122, 1
    %s124 = scalar_select %p121, %s122, %s123
    %p127 = pneg %p121
    %p128 = scmp.eq.s32.totalorder %s13, 1
    %p129 = por %p127, %p128
    %p130 = scmp.ne.s32.totalorder %s122, %s125
    %p131 = scmp.eq.s32.totalorder %s13, 0
    %p132 = por %p130, %p131
    %p133 = scmp.ne.s32.totalorder %s122, %s125
    %p134 = scmp.eq.s32.totalorder %s18, 1
    %p135 = por %p133, %p134
    %p136 = scmp.ne.s32.totalorder %s125, %s126
    %p137 = scmp.eq.s32.totalorder %s18, 0
    %p138 = por %p136, %p137
    %p139 = scmp.ne.s32.totalorder %s125, %s126
    %p140 = scmp.eq.s32.totalorder %s19, 1
    %p141 = por %p139, %p140
    %p143 = scmp.ne.s32.totalorder %s126, %s142
    %p144 = scmp.eq.s32.totalorder %s19, 0
    %p145 = por %p143, %p144
    %s146 = ssub.s32 %s13, %s20
    %p147 = scmp.eq.s32.totalorder %s146, 0
    %s149 = sadd.s32 %s148, 1
    %s150 = scalar_select %p147, %s148, %s149
    %p153 = pneg %p147
    %p154 = scmp.eq.s32.totalorder %s13, 1
    %p155 = por %p153, %p154
    %p156 = scmp.ne.s32.totalorder %s148, %s151
    %p157 = scmp.eq.s32.totalorder %s13, 0
    %p158 = por %p156, %p157
    %p159 = scmp.ne.s32.totalorder %s148, %s151
    %p160 = scmp.eq.s32.totalorder %s18, 1
    %p161 = por %p159, %p160
    %p162 = scmp.ne.s32.totalorder %s151, %s152
    %p163 = scmp.eq.s32.totalorder %s18, 0
    %p164 = por %p162, %p163
    %p165 = scmp.ne.s32.totalorder %s151, %s152
    %p166 = scmp.eq.s32.totalorder %s19, 1
    %p167 = por %p165, %p166
    %p169 = scmp.ne.s32.totalorder %s152, %s168
    %p170 = scmp.eq.s32.totalorder %s19, 0
    %p171 = por %p169, %p170
    %s172 = ssub.s32 %s13, %s20
    %p173 = scmp.eq.s32.totalorder %s172, 0
    %s175 = sadd.s32 %s174, 1
    %s176 = scalar_select %p173, %s174, %s175
    %p179 = pneg %p173
    %p180 = scmp.eq.s32.totalorder %s13, 1
    %p181 = por %p179, %p180
    %p182 = scmp.ne.s32.totalorder %s174, %s177
    %p183 = scmp.eq.s32.totalorder %s13, 0
    %p184 = por %p182, %p183
    %p185 = scmp.ne.s32.totalorder %s174, %s177
    %p186 = scmp.eq.s32.totalorder %s18, 1
    %p187 = por %p185, %p186
    %p188 = scmp.ne.s32.totalorder %s177, %s178
    %p189 = scmp.eq.s32.totalorder %s18, 0
    %p190 = por %p188, %p189
    %p191 = scmp.ne.s32.totalorder %s177, %s178
    %p192 = scmp.eq.s32.totalorder %s19, 1
    %p193 = por %p191, %p192
    %p195 = scmp.ne.s32.totalorder %s178, %s194
    %p196 = scmp.eq.s32.totalorder %s19, 0
    %p197 = por %p195, %p196
    %s198 = ssub.s32 %s13, %s20
    %p199 = scmp.eq.s32.totalorder %s198, 0
    %s201 = sadd.s32 %s200, 1
    %s202 = scalar_select %p199, %s200, %s201
    %p205 = pneg %p199
    %p206 = scmp.eq.s32.totalorder %s13, 1
    %p207 = por %p205, %p206
    %p208 = scmp.ne.s32.totalorder %s200, %s203
    %p209 = scmp.eq.s32.totalorder %s13, 0
    %p210 = por %p208, %p209
    %p211 = scmp.ne.s32.totalorder %s200, %s203
    %p212 = scmp.eq.s32.totalorder %s18, 1
    %p213 = por %p211, %p212
    %p214 = scmp.ne.s32.totalorder %s203, %s204
    %p215 = scmp.eq.s32.totalorder %s18, 0
    %p216 = por %p214, %p215
    %p217 = scmp.ne.s32.totalorder %s203, %s204
    %p218 = scmp.eq.s32.totalorder %s19, 1
    %p219 = por %p217, %p218
    %p221 = scmp.ne.s32.totalorder %s204, %s220
    %p222 = scmp.eq.s32.totalorder %s19, 0
    %p223 = por %p221, %p222
    %p224 = scmp.le.s32.totalorder 1, %s13
    %p225 = scmp.lt.s32.totalorder %s13, 3
    %p226 = pnand %p224, %p225
    %p227 = pneg %p226
    // Predicated region
    $region9: #{dcgan_d_starshaped_forward.1} parent=5 // pred_check
      _
    $region10: #{dcgan_d_starshaped_forward.1} parent=5 // pred_check_branch
      %229 = sbr.rel (%p226) target = $region12
    $region11: #{dcgan_d_starshaped_forward.1} parent=5 // pred_region
      %s230 = ssub.s32 %s13, 1
      // Predicated region
      $region13: #{dcgan_d_starshaped_forward.1} parent=11 // pred_check
        %p231 = pneg %p112
      $region14: #{dcgan_d_starshaped_forward.1} parent=11 // pred_check_branch
        %233 = sbr.rel (%p231) target = $region16
      $region15: #{dcgan_d_starshaped_forward.1} parent=11 // pred_region
        _
      $region16: #{dcgan_d_starshaped_forward.1} parent=11 // pred_fallthru
        _
    $region12: #{dcgan_d_starshaped_forward.1} parent=5 // pred_fallthru
      _
    %p234 = scmp.lt.s32.totalorder %s13, 2
    // Predicated region
    $region17: #{dcgan_d_starshaped_forward.1} parent=5 // pred_check
      %p235 = pneg %p234
    $region18: #{dcgan_d_starshaped_forward.1} parent=5 // pred_check_branch
      %237 = sbr.rel (%p235) target = $region20
    $region19: #{dcgan_d_starshaped_forward.1} parent=5 // pred_region
      // Predicated region
      $region21: #{dcgan_d_starshaped_forward.1} parent=19 // pred_check
        %p238 = pneg %p33
      $region22: #{dcgan_d_starshaped_forward.1} parent=19 // pred_check_branch
        %240 = sbr.rel (%p238) target = $region24
      $region23: #{dcgan_d_starshaped_forward.1} parent=19 // pred_region
        %p241 = scmp.lt.s32.totalorder %s13, 1
        %s242 = scalar_select %p241, %s13, 1
        %s243 = smul.addr %s242, 6
        %s244 = smul.addr %s243, 8
        %s245 = scalar_lea.vmem %s0, %s244
      $region24: #{dcgan_d_starshaped_forward.1} parent=19 // pred_fallthru
        _
      // Predicated region
      $region25: #{dcgan_d_starshaped_forward.1} parent=19 // pred_check
        %p246 = pneg %p59
      $region26: #{dcgan_d_starshaped_forward.1} parent=19 // pred_check_branch
        %248 = sbr.rel (%p246) target = $region28
      $region27: #{dcgan_d_starshaped_forward.1} parent=19 // pred_region
        %p249 = scmp.lt.s32.totalorder %s13, 1
        %s250 = scalar_select %p249, %s13, 1
        %s251 = smul.addr %s250, 8
        %s252 = scalar_lea.vmem %s1, %s251
      $region28: #{dcgan_d_starshaped_forward.1} parent=19 // pred_fallthru
        _
      // Predicated region
      $region29: #{dcgan_d_starshaped_forward.1} parent=19 // pred_check
        %p253 = pneg %p85
      $region30: #{dcgan_d_starshaped_forward.1} parent=19 // pred_check_branch
        %255 = sbr.rel (%p253) target = $region32
      $region31: #{dcgan_d_starshaped_forward.1} parent=19 // pred_region
        %p256 = scmp.lt.s32.totalorder %s13, 1
        %s257 = scalar_select %p256, %s13, 1
        %s258 = smul.addr %s257, 32
        %s259 = smul.addr %s258, 8
        %s260 = scalar_lea.vmem %s2, %s259
      $region32: #{dcgan_d_starshaped_forward.1} parent=19 // pred_fallthru
        _
      // Predicated region
      $region33: #{dcgan_d_starshaped_forward.1} parent=19 // pred_check
        %p261 = pneg %p132
      $region34: #{dcgan_d_starshaped_forward.1} parent=19 // pred_check_branch
        %263 = sbr.rel (%p261) target = $region36
      $region35: #{dcgan_d_starshaped_forward.1} parent=19 // pred_region
        %p264 = scmp.lt.s32.totalorder %s13, 1
        %s265 = scalar_select %p264, %s13, 1
        %s266 = smul.addr %s265, 2
        %s267 = smul.addr %s266, 8
        %s268 = scalar_lea.vmem %s4, %s267
      $region36: #{dcgan_d_starshaped_forward.1} parent=19 // pred_fallthru
        _
      // Predicated region
      $region37: #{dcgan_d_starshaped_forward.1} parent=19 // pred_check
        %p269 = pneg %p158
      $region38: #{dcgan_d_starshaped_forward.1} parent=19 // pred_check_branch
        %271 = sbr.rel (%p269) target = $region40
      $region39: #{dcgan_d_starshaped_forward.1} parent=19 // pred_region
        %p272 = scmp.lt.s32.totalorder %s13, 1
        %s273 = scalar_select %p272, %s13, 1
        %s274 = smul.addr %s273, 2
        %s275 = smul.addr %s274, 8
        %s276 = scalar_lea.vmem %s5, %s275
      $region40: #{dcgan_d_starshaped_forward.1} parent=19 // pred_fallthru
        _
      // Predicated region
      $region41: #{dcgan_d_starshaped_forward.1} parent=19 // pred_check
        %p277 = pneg %p184
      $region42: #{dcgan_d_starshaped_forward.1} parent=19 // pred_check_branch
        %279 = sbr.rel (%p277) target = $region44
      $region43: #{dcgan_d_starshaped_forward.1} parent=19 // pred_region
        %p280 = scmp.lt.s32.totalorder %s13, 1
        %s281 = scalar_select %p280, %s13, 1
        %s282 = smul.addr %s281, 2
        %s283 = smul.addr %s282, 8
        %s284 = scalar_lea.vmem %s6, %s283
      $region44: #{dcgan_d_starshaped_forward.1} parent=19 // pred_fallthru
        _
    $region20: #{dcgan_d_starshaped_forward.1} parent=5 // pred_fallthru
      _
    %p285 = scmp.le.s32.totalorder 1, %s13
    %p286 = scmp.lt.s32.totalorder %s13, 3
    %p287 = pnand %p285, %p286
    %p288 = pneg %p287
    // Predicated region
    $region45: #{dcgan_d_starshaped_forward.1} parent=5 // pred_check
      _
    $region46: #{dcgan_d_starshaped_forward.1} parent=5 // pred_check_branch
      %290 = sbr.rel (%p287) target = $region48
    $region47: #{dcgan_d_starshaped_forward.1} parent=5 // pred_region
      %s291 = ssub.s32 %s13, 1
      %p292 = scmp.lt.s32.totalorder %s18, 1
      %s293 = scalar_select %p292, %s18, 1
      %s294 = smul.addr %s293, 6
      %s295 = smul.addr %s294, 8
      %s296 = scalar_lea.vmem %s0, %s295
      %p297 = pneg %p39
      %p298 = pneg %p36
      %p299 = scmp.lt.s32.totalorder %s18, 1
      %s300 = scalar_select %p299, %s18, 1
      %s301 = smul.addr %s300, 8
      %s302 = scalar_lea.vmem %s1, %s301
      %p303 = pneg %p65
      %p304 = pneg %p62
      %p305 = scmp.lt.s32.totalorder %s18, 1
      %s306 = scalar_select %p305, %s18, 1
      %s307 = smul.addr %s306, 32
      %s308 = smul.addr %s307, 8
      %s309 = scalar_lea.vmem %s2, %s308
      %p310 = pneg %p91
      %p311 = pneg %p88
      %p312 = pneg %p112
      %p313 = pneg %p109
      %p314 = scmp.lt.s32.totalorder %s18, 1
      %s315 = scalar_select %p314, %s18, 1
      %s316 = smul.addr %s315, 2
      %s317 = smul.addr %s316, 8
      %s318 = scalar_lea.vmem %s4, %s317
      %p319 = pneg %p138
      %p320 = pneg %p135
      %p321 = scmp.lt.s32.totalorder %s18, 1
      %s322 = scalar_select %p321, %s18, 1
      %s323 = smul.addr %s322, 2
      %s324 = smul.addr %s323, 8
      %s325 = scalar_lea.vmem %s5, %s324
      %p326 = pneg %p164
      %p327 = pneg %p161
      %p328 = scmp.lt.s32.totalorder %s18, 1
      %s329 = scalar_select %p328, %s18, 1
      %s330 = smul.addr %s329, 2
      %s331 = smul.addr %s330, 8
      %s332 = scalar_lea.vmem %s6, %s331
      %p333 = pneg %p190
      %p334 = pneg %p187
      %p335 = pneg %p216
      %p336 = pneg %p213
      %p337 = scmp.lt.s32.totalorder %s18, 1
      %s338 = scalar_select %p337, %s18, 1
      %s339 = scalar_lea.vmem %s7, %s338
      %p340 = scmp.lt.s32.totalorder %s18, 1
      %s341 = scalar_select %p340, %s18, 1
      %s342 = smul.addr %s341, 6
      %s343 = smul.addr %s342, 8
      %s344 = scalar_lea.vmem %s0, %s343
      %p345 = scmp.lt.s32.totalorder %s18, 1
      %s346 = scalar_select %p345, %s18, 1
      %s347 = smul.addr %s346, 8
      %s348 = scalar_lea.vmem %s1, %s347
      %p349 = scmp.lt.s32.totalorder %s18, 1
      %s350 = scalar_select %p349, %s18, 1
      %s351 = smul.addr %s350, 32
      %s352 = smul.addr %s351, 8
      %s353 = scalar_lea.vmem %s2, %s352
      %p354 = scmp.lt.s32.totalorder %s18, 1
      %s355 = scalar_select %p354, %s18, 1
      %s356 = smul.addr %s355, 2
      %s357 = smul.addr %s356, 8
      %s358 = scalar_lea.vmem %s4, %s357
      %p359 = scmp.lt.s32.totalorder %s18, 1
      %s360 = scalar_select %p359, %s18, 1
      %s361 = smul.addr %s360, 2
      %s362 = smul.addr %s361, 8
      %s363 = scalar_lea.vmem %s5, %s362
      %p364 = scmp.lt.s32.totalorder %s18, 1
      %s365 = scalar_select %p364, %s18, 1
      %s366 = smul.addr %s365, 2
      %s367 = smul.addr %s366, 8
      %s368 = scalar_lea.vmem %s6, %s367
      %p369 = scmp.lt.s32.totalorder %s18, 1
      %s370 = scalar_select %p369, %s18, 1
      %s371 = scalar_lea.vmem %s7, %s370
      %v372 = vld [vmem:[%s348] sm:$0xff]
      %v373 = vld [vmem:[%s344] sm:$0xff]
      %v374 = vld [vmem:[%s344 + $0x8] sm:$0xff]
      %v375 = vld [vmem:[%s344 + $0x10] sm:$0xff]
      %v376 = vld [vmem:[%s344 + $0x18] sm:$0xff]
      %v377 = vld [vmem:[%s344 + $0x20] sm:$0xff]
      %v378 = vld [vmem:[%s344 + $0x28] sm:$0xff]
      %vm379 = vcmask 392192
      %v381 = vsel %vm379, %v372, 0
      %383 = vmatprep.subr.mxu0 0.0
      %384 = vmatpush1.msra.mxu0 0.0
      %385 = vmatprep.subr.mxu0 0.0
      %386 = vmatpush1.msra.mxu0 0.0
      %387 = vmatprep.subr.mxu0 0.0
      %388 = vmatpush1.msra.mxu0 0.0
      %389 = vmatprep.subr.mxu0 0.0
      %390 = vmatpush1.msra.mxu0 0.0
      %391 = vmatprep.subr.mxu0 0.0
      %392 = vmatpush1.msra.mxu0 0.0
      %393 = vmatprep.subr.mxu0 0.0
      %394 = vmatpush1.msra.mxu0 0.0
      %395 = vmatprep.subr.mxu0 0.0
      %396 = vmatpush1.msra.mxu0 0.0
      %397 = vmatprep.subr.mxu0 0.0
      %398 = vmatpush1.msra.mxu0 0.0
      %399 = vmatprep.subr.mxu0 0.0
      %400 = vmatpush1.msra.mxu0 0.0
      %401 = vmatprep.subr.mxu0 0.0
      %402 = vmatpush1.msra.mxu0 0.0
      %403 = vmatprep.subr.mxu0 0.0
      %404 = vmatpush1.msra.mxu0 %v378
      %405 = vmatprep.subr.mxu0 0.0
      %406 = vmatpush1.msra.mxu0 %v377
      %407 = vmatprep.subr.mxu0 0.0
      %408 = vmatpush1.msra.mxu0 %v376
      %409 = vmatprep.subr.mxu0 0.0
      %410 = vmatpush1.msra.mxu0 %v375
      %411 = vmatprep.subr.mxu0 0.0
      %412 = vmatpush1.msra.mxu0 %v374
      %413 = vmatprep.subr.mxu0 0.0
      %414 = vmatpush1.msra.mxu0 %v373
      %415 = vmatprep.subr.mxu0 0.0
      %416 = vmatpush2.msra.mxu0 0.0
      %417 = vmatprep.subr.mxu0 0.0
      %418 = vmatpush2.msra.mxu0 0.0
      %419 = vmatprep.subr.mxu0 0.0
      %420 = vmatpush2.msra.mxu0 0.0
      %421 = vmatprep.subr.mxu0 0.0
      %422 = vmatpush2.msra.mxu0 0.0
      %423 = vmatprep.subr.mxu0 0.0
      %424 = vmatpush2.msra.mxu0 0.0
      %425 = vmatprep.subr.mxu0 0.0
      %426 = vmatpush2.msra.mxu0 0.0
      %427 = vmatprep.subr.mxu0 0.0
      %428 = vmatpush2.msra.mxu0 0.0
      %429 = vmatprep.subr.mxu0 0.0
      %430 = vmatpush2.msra.mxu0 0.0
      %431 = vmatprep.subr.mxu0 0.0
      %432 = vmatpush2.msra.mxu0 0.0
      %433 = vmatprep.subr.mxu0 0.0
      %434 = vmatpush2.msra.mxu0 0.0
      %435 = vmatprep.subr.mxu0 0.0
      %436 = vmatpush2.msra.mxu0 0.0
      %437 = vmatprep.subr.mxu0 0.0
      %438 = vmatpush2.msra.mxu0 0.0
      %439 = vmatprep.subr.mxu0 0.0
      %440 = vmatpush2.msra.mxu0 0.0
      %441 = vmatprep.subr.mxu0 0.0
      %442 = vmatpush2.msra.mxu0 0.0
      %443 = vmatprep.subr.mxu0 0.0
      %444 = vmatpush2.msra.mxu0 0.0
      %445 = vmatprep.subr.mxu0 0.0
      %446 = vmatpush2.msra.mxu0 0.0
      %447 = vmatprep.mubr.f32.mxu0 0.0
      %448 = vmatmul.mubr.f32.gmra.mxu0 %v381
      %v449 = vpop.f32.mrf.mxu0
      %v450 = vadd.f32 0.0, %v449
      %v451 = vpop.f32.mrf.mxu0
      %452 = vdwg.mxu0
      %vm453 = vcmp.gt.f32.partialorder %v450, 0.0
      %v454 = vmul.f32 %v450, 0.2
      %v455 = vsel %vm453, %v450, %v454
      %v456 = vld [vmem:[%s353] sm:$0xff]
      %v457 = vld [vmem:[%s353 + $0x8] sm:$0xff]
      %v458 = vld [vmem:[%s353 + $0x10] sm:$0xff]
      %v459 = vld [vmem:[%s353 + $0x18] sm:$0xff]
      %v460 = vld [vmem:[%s353 + $0x20] sm:$0xff]
      %v461 = vld [vmem:[%s353 + $0x28] sm:$0xff]
      %v462 = vld [vmem:[%s353 + $0x30] sm:$0xff]
      %v463 = vld [vmem:[%s353 + $0x38] sm:$0xff]
      %v464 = vld [vmem:[%s353 + $0x40] sm:$0xff]
      %v465 = vld [vmem:[%s353 + $0x48] sm:$0xff]
      %v466 = vld [vmem:[%s353 + $0x50] sm:$0xff]
      %v467 = vld [vmem:[%s353 + $0x58] sm:$0xff]
      %v468 = vld [vmem:[%s353 + $0x60] sm:$0xff]
      %v469 = vld [vmem:[%s353 + $0x68] sm:$0xff]
      %v470 = vld [vmem:[%s353 + $0x70] sm:$0xff]
      %v471 = vld [vmem:[%s353 + $0x78] sm:$0xff]
      %v472 = vld [vmem:[%s353 + $0x80] sm:$0xff]
      %v473 = vld [vmem:[%s353 + $0x88] sm:$0xff]
      %v474 = vld [vmem:[%s353 + $0x90] sm:$0xff]
      %v475 = vld [vmem:[%s353 + $0x98] sm:$0xff]
      %v476 = vld [vmem:[%s353 + $0xa0] sm:$0xff]
      %v477 = vld [vmem:[%s353 + $0xa8] sm:$0xff]
      %v478 = vld [vmem:[%s353 + $0xb0] sm:$0xff]
      %v479 = vld [vmem:[%s353 + $0xb8] sm:$0xff]
      %v480 = vld [vmem:[%s353 + $0xc0] sm:$0xff]
      %v481 = vld [vmem:[%s353 + $0xc8] sm:$0xff]
      %v482 = vld [vmem:[%s353 + $0xd0] sm:$0xff]
      %v483 = vld [vmem:[%s353 + $0xd8] sm:$0xff]
      %v484 = vld [vmem:[%s353 + $0xe0] sm:$0xff]
      %v485 = vld [vmem:[%s353 + $0xe8] sm:$0xff]
      %v486 = vld [vmem:[%s353 + $0xf0] sm:$0xff]
      %v487 = vld [vmem:[%s353 + $0xf8] sm:$0xff]
      %vm488 = vcmask 64512
      %v490 = vsel %vm488, %v456, 0
      %v493 = vsel %vm488, %v457, 0
      %v496 = vsel %vm488, %v458, 0
      %v499 = vsel %vm488, %v459, 0
      %v502 = vsel %vm488, %v460, 0
      %v505 = vsel %vm488, %v461, 0
      %v508 = vsel %vm488, %v462, 0
      %v511 = vsel %vm488, %v463, 0
      %v514 = vsel %vm488, %v464, 0
      %v517 = vsel %vm488, %v465, 0
      %v520 = vsel %vm488, %v466, 0
      %v523 = vsel %vm488, %v467, 0
      %v526 = vsel %vm488, %v468, 0
      %v529 = vsel %vm488, %v469, 0
      %v532 = vsel %vm488, %v470, 0
      %v535 = vsel %vm488, %v471, 0
      %v538 = vsel %vm488, %v472, 0
      %v541 = vsel %vm488, %v473, 0
      %v544 = vsel %vm488, %v474, 0
      %v547 = vsel %vm488, %v475, 0
      %v550 = vsel %vm488, %v476, 0
      %v553 = vsel %vm488, %v477, 0
      %v556 = vsel %vm488, %v478, 0
      %v559 = vsel %vm488, %v479, 0
      %v562 = vsel %vm488, %v480, 0
      %v565 = vsel %vm488, %v481, 0
      %v568 = vsel %vm488, %v482, 0
      %v571 = vsel %vm488, %v483, 0
      %v574 = vsel %vm488, %v484, 0
      %v577 = vsel %vm488, %v485, 0
      %v580 = vsel %vm488, %v486, 0
      %v583 = vsel %vm488, %v487, 0
      %585 = vmatprep.subr.mxu0 0.0
      %586 = vmatpush1.msra.mxu0 0.0
      %587 = vmatprep.subr.mxu0 0.0
      %588 = vmatpush1.msra.mxu0 0.0
      %589 = vmatprep.subr.mxu0 0.0
      %590 = vmatpush1.msra.mxu0 0.0
      %591 = vmatprep.subr.mxu0 0.0
      %592 = vmatpush1.msra.mxu0 0.0
      %593 = vmatprep.subr.mxu0 0.0
      %594 = vmatpush1.msra.mxu0 0.0
      %595 = vmatprep.subr.mxu0 0.0
      %596 = vmatpush1.msra.mxu0 0.0
      %597 = vmatprep.subr.mxu0 0.0
      %598 = vmatpush1.msra.mxu0 0.0
      %599 = vmatprep.subr.mxu0 0.0
      %600 = vmatpush1.msra.mxu0 0.0
      %601 = vmatprep.subr.mxu0 0.0
      %602 = vmatpush1.msra.mxu0 0.0
      %603 = vmatprep.subr.mxu0 0.0
      %604 = vmatpush1.msra.mxu0 0.0
      %605 = vmatprep.subr.mxu0 0.0
      %606 = vmatpush1.msra.mxu0 0.0
      %607 = vmatprep.subr.mxu0 0.0
      %608 = vmatpush1.msra.mxu0 0.0
      %609 = vmatprep.subr.mxu0 0.0
      %610 = vmatpush1.msra.mxu0 0.0
      %611 = vmatprep.subr.mxu0 0.0
      %612 = vmatpush1.msra.mxu0 0.0
      %613 = vmatprep.subr.mxu0 0.0
      %614 = vmatpush1.msra.mxu0 0.0
      %615 = vmatprep.subr.mxu0 0.0
      %616 = vmatpush1.msra.mxu0 %v455
      %617 = vmatprep.subr.mxu0 0.0
      %618 = vmatpush2.msra.mxu0 0.0
      %619 = vmatprep.subr.mxu0 0.0
      %620 = vmatpush2.msra.mxu0 0.0
      %621 = vmatprep.subr.mxu0 0.0
      %622 = vmatpush2.msra.mxu0 0.0
      %623 = vmatprep.subr.mxu0 0.0
      %624 = vmatpush2.msra.mxu0 0.0
      %625 = vmatprep.subr.mxu0 0.0
      %626 = vmatpush2.msra.mxu0 0.0
      %627 = vmatprep.subr.mxu0 0.0
      %628 = vmatpush2.msra.mxu0 0.0
      %629 = vmatprep.subr.mxu0 0.0
      %630 = vmatpush2.msra.mxu0 0.0
      %631 = vmatprep.subr.mxu0 0.0
      %632 = vmatpush2.msra.mxu0 0.0
      %633 = vmatprep.subr.mxu0 0.0
      %634 = vmatpush2.msra.mxu0 0.0
      %635 = vmatprep.subr.mxu0 0.0
      %636 = vmatpush2.msra.mxu0 0.0
      %637 = vmatprep.subr.mxu0 0.0
      %638 = vmatpush2.msra.mxu0 0.0
      %639 = vmatprep.subr.mxu0 0.0
      %640 = vmatpush2.msra.mxu0 0.0
      %641 = vmatprep.subr.mxu0 0.0
      %642 = vmatpush2.msra.mxu0 0.0
      %643 = vmatprep.subr.mxu0 0.0
      %644 = vmatpush2.msra.mxu0 0.0
      %645 = vmatprep.subr.mxu0 0.0
      %646 = vmatpush2.msra.mxu0 0.0
      %647 = vmatprep.subr.mxu0 0.0
      %648 = vmatpush2.msra.mxu0 0.0
      %649 = vmatprep.mubr.f32.mxu0 0.0
      %650 = vmatmul.mubr.f32.gmra.mxu0 %v490
      %v651 = vpop.f32.mrf.mxu0
      %v652 = vadd.f32 0.0, %v651
      %v653 = vpop.f32.mrf.mxu0
      %654 = vmatprep.mubr.f32.mxu0 0.0
      %655 = vmatmul.mubr.f32.gmra.mxu0 %v493
      %v656 = vpop.f32.mrf.mxu0
      %v657 = vadd.f32 0.0, %v656
      %v658 = vpop.f32.mrf.mxu0
      %659 = vmatprep.mubr.f32.mxu0 0.0
      %660 = vmatmul.mubr.f32.gmra.mxu0 %v496
      %v661 = vpop.f32.mrf.mxu0
      %v662 = vadd.f32 0.0, %v661
      %v663 = vpop.f32.mrf.mxu0
      %664 = vmatprep.mubr.f32.mxu0 0.0
      %665 = vmatmul.mubr.f32.gmra.mxu0 %v499
      %v666 = vpop.f32.mrf.mxu0
      %v667 = vadd.f32 0.0, %v666
      %v668 = vpop.f32.mrf.mxu0
      %669 = vmatprep.mubr.f32.mxu0 0.0
      %670 = vmatmul.mubr.f32.gmra.mxu0 %v502
      %v671 = vpop.f32.mrf.mxu0
      %v672 = vadd.f32 0.0, %v671
      %v673 = vpop.f32.mrf.mxu0
      %674 = vmatprep.mubr.f32.mxu0 0.0
      %675 = vmatmul.mubr.f32.gmra.mxu0 %v505
      %v676 = vpop.f32.mrf.mxu0
      %v677 = vadd.f32 0.0, %v676
      %v678 = vpop.f32.mrf.mxu0
      %679 = vmatprep.mubr.f32.mxu0 0.0
      %680 = vmatmul.mubr.f32.gmra.mxu0 %v508
      %v681 = vpop.f32.mrf.mxu0
      %v682 = vadd.f32 0.0, %v681
      %v683 = vpop.f32.mrf.mxu0
      %684 = vmatprep.mubr.f32.mxu0 0.0
      %685 = vmatmul.mubr.f32.gmra.mxu0 %v511
      %v686 = vpop.f32.mrf.mxu0
      %v687 = vadd.f32 0.0, %v686
      %v688 = vpop.f32.mrf.mxu0
      %689 = vmatprep.mubr.f32.mxu0 0.0
      %690 = vmatmul.mubr.f32.gmra.mxu0 %v514
      %v691 = vpop.f32.mrf.mxu0
      %v692 = vadd.f32 0.0, %v691
      %v693 = vpop.f32.mrf.mxu0
      %694 = vmatprep.mubr.f32.mxu0 0.0
      %695 = vmatmul.mubr.f32.gmra.mxu0 %v517
      %v696 = vpop.f32.mrf.mxu0
      %v697 = vadd.f32 0.0, %v696
      %v698 = vpop.f32.mrf.mxu0
      %699 = vmatprep.mubr.f32.mxu0 0.0
      %700 = vmatmul.mubr.f32.gmra.mxu0 %v520
      %v701 = vpop.f32.mrf.mxu0
      %v702 = vadd.f32 0.0, %v701
      %v703 = vpop.f32.mrf.mxu0
      %704 = vmatprep.mubr.f32.mxu0 0.0
      %705 = vmatmul.mubr.f32.gmra.mxu0 %v523
      %v706 = vpop.f32.mrf.mxu0
      %v707 = vadd.f32 0.0, %v706
      %v708 = vpop.f32.mrf.mxu0
      %709 = vmatprep.mubr.f32.mxu0 0.0
      %710 = vmatmul.mubr.f32.gmra.mxu0 %v526
      %v711 = vpop.f32.mrf.mxu0
      %v712 = vadd.f32 0.0, %v711
      %v713 = vpop.f32.mrf.mxu0
      %714 = vmatprep.mubr.f32.mxu0 0.0
      %715 = vmatmul.mubr.f32.gmra.mxu0 %v529
      %v716 = vpop.f32.mrf.mxu0
      %v717 = vadd.f32 0.0, %v716
      %v718 = vpop.f32.mrf.mxu0
      %719 = vmatprep.mubr.f32.mxu0 0.0
      %720 = vmatmul.mubr.f32.gmra.mxu0 %v532
      %v721 = vpop.f32.mrf.mxu0
      %v722 = vadd.f32 0.0, %v721
      %v723 = vpop.f32.mrf.mxu0
      %724 = vmatprep.mubr.f32.mxu0 0.0
      %725 = vmatmul.mubr.f32.gmra.mxu0 %v535
      %v726 = vpop.f32.mrf.mxu0
      %v727 = vadd.f32 0.0, %v726
      %v728 = vpop.f32.mrf.mxu0
      %729 = vmatprep.mubr.f32.mxu0 0.0
      %730 = vmatmul.mubr.f32.gmra.mxu0 %v538
      %v731 = vpop.f32.mrf.mxu0
      %v732 = vadd.f32 0.0, %v731
      %v733 = vpop.f32.mrf.mxu0
      %734 = vmatprep.mubr.f32.mxu0 0.0
      %735 = vmatmul.mubr.f32.gmra.mxu0 %v541
      %v736 = vpop.f32.mrf.mxu0
      %v737 = vadd.f32 0.0, %v736
      %v738 = vpop.f32.mrf.mxu0
      %739 = vmatprep.mubr.f32.mxu0 0.0
      %740 = vmatmul.mubr.f32.gmra.mxu0 %v544
      %v741 = vpop.f32.mrf.mxu0
      %v742 = vadd.f32 0.0, %v741
      %v743 = vpop.f32.mrf.mxu0
      %744 = vmatprep.mubr.f32.mxu0 0.0
      %745 = vmatmul.mubr.f32.gmra.mxu0 %v547
      %v746 = vpop.f32.mrf.mxu0
      %v747 = vadd.f32 0.0, %v746
      %v748 = vpop.f32.mrf.mxu0
      %749 = vmatprep.mubr.f32.mxu0 0.0
      %750 = vmatmul.mubr.f32.gmra.mxu0 %v550
      %v751 = vpop.f32.mrf.mxu0
      %v752 = vadd.f32 0.0, %v751
      %v753 = vpop.f32.mrf.mxu0
      %754 = vmatprep.mubr.f32.mxu0 0.0
      %755 = vmatmul.mubr.f32.gmra.mxu0 %v553
      %v756 = vpop.f32.mrf.mxu0
      %v757 = vadd.f32 0.0, %v756
      %v758 = vpop.f32.mrf.mxu0
      %759 = vmatprep.mubr.f32.mxu0 0.0
      %760 = vmatmul.mubr.f32.gmra.mxu0 %v556
      %v761 = vpop.f32.mrf.mxu0
      %v762 = vadd.f32 0.0, %v761
      %v763 = vpop.f32.mrf.mxu0
      %764 = vmatprep.mubr.f32.mxu0 0.0
      %765 = vmatmul.mubr.f32.gmra.mxu0 %v559
      %v766 = vpop.f32.mrf.mxu0
      %v767 = vadd.f32 0.0, %v766
      %v768 = vpop.f32.mrf.mxu0
      %769 = vmatprep.mubr.f32.mxu0 0.0
      %770 = vmatmul.mubr.f32.gmra.mxu0 %v562
      %v771 = vpop.f32.mrf.mxu0
      %v772 = vadd.f32 0.0, %v771
      %v773 = vpop.f32.mrf.mxu0
      %774 = vmatprep.mubr.f32.mxu0 0.0
      %775 = vmatmul.mubr.f32.gmra.mxu0 %v565
      %v776 = vpop.f32.mrf.mxu0
      %v777 = vadd.f32 0.0, %v776
      %v778 = vpop.f32.mrf.mxu0
      %779 = vmatprep.mubr.f32.mxu0 0.0
      %780 = vmatmul.mubr.f32.gmra.mxu0 %v568
      %v781 = vpop.f32.mrf.mxu0
      %v782 = vadd.f32 0.0, %v781
      %v783 = vpop.f32.mrf.mxu0
      %784 = vmatprep.mubr.f32.mxu0 0.0
      %785 = vmatmul.mubr.f32.gmra.mxu0 %v571
      %v786 = vpop.f32.mrf.mxu0
      %v787 = vadd.f32 0.0, %v786
      %v788 = vpop.f32.mrf.mxu0
      %789 = vmatprep.mubr.f32.mxu0 0.0
      %790 = vmatmul.mubr.f32.gmra.mxu0 %v574
      %v791 = vpop.f32.mrf.mxu0
      %v792 = vadd.f32 0.0, %v791
      %v793 = vpop.f32.mrf.mxu0
      %794 = vmatprep.mubr.f32.mxu0 0.0
      %795 = vmatmul.mubr.f32.gmra.mxu0 %v577
      %v796 = vpop.f32.mrf.mxu0
      %v797 = vadd.f32 0.0, %v796
      %v798 = vpop.f32.mrf.mxu0
      %799 = vmatprep.mubr.f32.mxu0 0.0
      %800 = vmatmul.mubr.f32.gmra.mxu0 %v580
      %v801 = vpop.f32.mrf.mxu0
      %v802 = vadd.f32 0.0, %v801
      %v803 = vpop.f32.mrf.mxu0
      %804 = vmatprep.mubr.f32.mxu0 0.0
      %805 = vmatmul.mubr.f32.gmra.mxu0 %v583
      %v806 = vpop.f32.mrf.mxu0
      %v807 = vadd.f32 0.0, %v806
      %v808 = vpop.f32.mrf.mxu0
      %809 = vdwg.mxu0
      %810 = vst [vmem:[#allocation2] sm:$0xff] %v652
      %811 = vst [vmem:[#allocation2 + $0x8] sm:$0xff] %v657
      %812 = vst [vmem:[#allocation2 + $0x10] sm:$0xff] %v662
      %813 = vst [vmem:[#allocation2 + $0x18] sm:$0xff] %v667
      %814 = vst [vmem:[#allocation2 + $0x20] sm:$0xff] %v672
      %815 = vst [vmem:[#allocation2 + $0x28] sm:$0xff] %v677
      %816 = vst [vmem:[#allocation2 + $0x30] sm:$0xff] %v682
      %817 = vst [vmem:[#allocation2 + $0x38] sm:$0xff] %v687
      %818 = vst [vmem:[#allocation2 + $0x40] sm:$0xff] %v692
      %819 = vst [vmem:[#allocation2 + $0x48] sm:$0xff] %v697
      %820 = vst [vmem:[#allocation2 + $0x50] sm:$0xff] %v702
      %821 = vst [vmem:[#allocation2 + $0x58] sm:$0xff] %v707
      %822 = vst [vmem:[#allocation2 + $0x60] sm:$0xff] %v712
      %823 = vst [vmem:[#allocation2 + $0x68] sm:$0xff] %v717
      %824 = vst [vmem:[#allocation2 + $0x70] sm:$0xff] %v722
      %825 = vst [vmem:[#allocation2 + $0x78] sm:$0xff] %v727
      %826 = vst [vmem:[#allocation2 + $0x80] sm:$0xff] %v732
      %827 = vst [vmem:[#allocation2 + $0x88] sm:$0xff] %v737
      %828 = vst [vmem:[#allocation2 + $0x90] sm:$0xff] %v742
      %829 = vst [vmem:[#allocation2 + $0x98] sm:$0xff] %v747
      %830 = vst [vmem:[#allocation2 + $0xa0] sm:$0xff] %v752
      %831 = vst [vmem:[#allocation2 + $0xa8] sm:$0xff] %v757
      %832 = vst [vmem:[#allocation2 + $0xb0] sm:$0xff] %v762
      %833 = vst [vmem:[#allocation2 + $0xb8] sm:$0xff] %v767
      %834 = vst [vmem:[#allocation2 + $0xc0] sm:$0xff] %v772
      %835 = vst [vmem:[#allocation2 + $0xc8] sm:$0xff] %v777
      %836 = vst [vmem:[#allocation2 + $0xd0] sm:$0xff] %v782
      %837 = vst [vmem:[#allocation2 + $0xd8] sm:$0xff] %v787
      %838 = vst [vmem:[#allocation2 + $0xe0] sm:$0xff] %v792
      %839 = vst [vmem:[#allocation2 + $0xe8] sm:$0xff] %v797
      %840 = vst [vmem:[#allocation2 + $0xf0] sm:$0xff] %v802
      %841 = vst [vmem:[#allocation2 + $0xf8] sm:$0xff] %v807
      %v842 = vld [vmem:[#allocation2] sm:$0xff]
      %v843 = vld [vmem:[#allocation2 + $0x8] sm:$0xff]
      %v844 = vld [vmem:[%s3] sm:$0xf]
      %v845 = vld [vmem:[%s3 + $0x4] sm:$0xf]
      %v846 = vld [vmem:[%s3 + $0x8] sm:$0xf]
      %v847 = vld [vmem:[%s3 + $0xc] sm:$0xf]
      %v848 = vld [vmem:[%s3 + $0x10] sm:$0xf]
      %v849 = vld [vmem:[%s3 + $0x14] sm:$0xf]
      %v850 = vld [vmem:[%s3 + $0x18] sm:$0xf]
      %v851 = vld [vmem:[%s3 + $0x1c] sm:$0xf]
      %v852 = vld [vmem:[%s3 + $0x20] sm:$0xf]
      %v853 = vld [vmem:[%s3 + $0x24] sm:$0xf]
      %v854 = vld [vmem:[%s3 + $0x28] sm:$0xf]
      %v855 = vld [vmem:[%s3 + $0x2c] sm:$0xf]
      %v856 = vld [vmem:[%s3 + $0x30] sm:$0xf]
      %v857 = vld [vmem:[%s3 + $0x34] sm:$0xf]
      %v858 = vld [vmem:[%s3 + $0x38] sm:$0xf]
      %v859 = vld [vmem:[%s3 + $0x3c] sm:$0xf]
      %v860 = vunpack.c.l.bf16 %v844
      %v861 = vunpack.c.l.bf16 %v845
      %v862 = vunpack.c.l.bf16 %v846
      %v863 = vunpack.c.l.bf16 %v847
      %v864 = vunpack.c.l.bf16 %v848
      %v865 = vunpack.c.l.bf16 %v849
      %v866 = vunpack.c.l.bf16 %v850
      %v867 = vunpack.c.l.bf16 %v851
      %v868 = vunpack.c.l.bf16 %v852
      %v869 = vunpack.c.l.bf16 %v853
      %v870 = vunpack.c.l.bf16 %v854
      %v871 = vunpack.c.l.bf16 %v855
      %v872 = vunpack.c.l.bf16 %v856
      %v873 = vunpack.c.l.bf16 %v857
      %v874 = vunpack.c.l.bf16 %v858
      %v875 = vunpack.c.l.bf16 %v859
      %v876 = vld [vmem:[#allocation2 + $0x10] sm:$0xff]
      %v877 = vld [vmem:[#allocation2 + $0x18] sm:$0xff]
      %s878 = scalar_lea.vmem %s3, 64
      %v879 = vld [vmem:[%s878] sm:$0xf]
      %v880 = vld [vmem:[%s878 + $0x4] sm:$0xf]
      %v881 = vld [vmem:[%s878 + $0x8] sm:$0xf]
      %v882 = vld [vmem:[%s878 + $0xc] sm:$0xf]
      %v883 = vld [vmem:[%s878 + $0x10] sm:$0xf]
      %v884 = vld [vmem:[%s878 + $0x14] sm:$0xf]
      %v885 = vld [vmem:[%s878 + $0x18] sm:$0xf]
      %v886 = vld [vmem:[%s878 + $0x1c] sm:$0xf]
      %v887 = vld [vmem:[%s878 + $0x20] sm:$0xf]
      %v888 = vld [vmem:[%s878 + $0x24] sm:$0xf]
      %v889 = vld [vmem:[%s878 + $0x28] sm:$0xf]
      %v890 = vld [vmem:[%s878 + $0x2c] sm:$0xf]
      %v891 = vld [vmem:[%s878 + $0x30] sm:$0xf]
      %v892 = vld [vmem:[%s878 + $0x34] sm:$0xf]
      %v893 = vld [vmem:[%s878 + $0x38] sm:$0xf]
      %v894 = vld [vmem:[%s878 + $0x3c] sm:$0xf]
      %v895 = vunpack.c.l.bf16 %v879
      %v896 = vunpack.c.l.bf16 %v880
      %v897 = vunpack.c.l.bf16 %v881
      %v898 = vunpack.c.l.bf16 %v882
      %v899 = vunpack.c.l.bf16 %v883
      %v900 = vunpack.c.l.bf16 %v884
      %v901 = vunpack.c.l.bf16 %v885
      %v902 = vunpack.c.l.bf16 %v886
      %v903 = vunpack.c.l.bf16 %v887
      %v904 = vunpack.c.l.bf16 %v888
      %v905 = vunpack.c.l.bf16 %v889
      %v906 = vunpack.c.l.bf16 %v890
      %v907 = vunpack.c.l.bf16 %v891
      %v908 = vunpack.c.l.bf16 %v892
      %v909 = vunpack.c.l.bf16 %v893
      %v910 = vunpack.c.l.bf16 %v894
      %911 = vmatprep.subr.mxu0 0.0
      %912 = vmatpush1.msra.mxu0 %v910
      %913 = vmatprep.subr.mxu0 0.0
      %914 = vmatpush1.msra.mxu0 %v909
      %915 = vmatprep.subr.mxu0 0.0
      %916 = vmatpush1.msra.mxu0 %v908
      %917 = vmatprep.subr.mxu0 0.0
      %918 = vmatpush1.msra.mxu0 %v907
      %919 = vmatprep.subr.mxu0 0.0
      %920 = vmatpush1.msra.mxu0 %v906
      %921 = vmatprep.subr.mxu0 0.0
      %922 = vmatpush1.msra.mxu0 %v905
      %923 = vmatprep.subr.mxu0 0.0
      %924 = vmatpush1.msra.mxu0 %v904
      %925 = vmatprep.subr.mxu0 0.0
      %926 = vmatpush1.msra.mxu0 %v903
      %927 = vmatprep.subr.mxu0 0.0
      %928 = vmatpush1.msra.mxu0 %v902
      %929 = vmatprep.subr.mxu0 0.0
      %930 = vmatpush1.msra.mxu0 %v901
      %931 = vmatprep.subr.mxu0 0.0
      %932 = vmatpush1.msra.mxu0 %v900
      %933 = vmatprep.subr.mxu0 0.0
      %934 = vmatpush1.msra.mxu0 %v899
      %935 = vmatprep.subr.mxu0 0.0
      %936 = vmatpush1.msra.mxu0 %v898
      %937 = vmatprep.subr.mxu0 0.0
      %938 = vmatpush1.msra.mxu0 %v897
      %939 = vmatprep.subr.mxu0 0.0
      %940 = vmatpush1.msra.mxu0 %v896
      %941 = vmatprep.subr.mxu0 0.0
      %942 = vmatpush1.msra.mxu0 %v895
      %943 = vmatprep.subr.mxu0 0.0
      %944 = vmatpush2.msra.mxu0 0.0
      %945 = vmatprep.subr.mxu0 0.0
      %946 = vmatpush2.msra.mxu0 0.0
      %947 = vmatprep.subr.mxu0 0.0
      %948 = vmatpush2.msra.mxu0 0.0
      %949 = vmatprep.subr.mxu0 0.0
      %950 = vmatpush2.msra.mxu0 0.0
      %951 = vmatprep.subr.mxu0 0.0
      %952 = vmatpush2.msra.mxu0 0.0
      %953 = vmatprep.subr.mxu0 0.0
      %954 = vmatpush2.msra.mxu0 0.0
      %955 = vmatprep.subr.mxu0 0.0
      %956 = vmatpush2.msra.mxu0 0.0
      %957 = vmatprep.subr.mxu0 0.0
      %958 = vmatpush2.msra.mxu0 0.0
      %959 = vmatprep.subr.mxu0 0.0
      %960 = vmatpush2.msra.mxu0 0.0
      %961 = vmatprep.subr.mxu0 0.0
      %962 = vmatpush2.msra.mxu0 0.0
      %963 = vmatprep.subr.mxu0 0.0
      %964 = vmatpush2.msra.mxu0 0.0
      %965 = vmatprep.subr.mxu0 0.0
      %966 = vmatpush2.msra.mxu0 0.0
      %967 = vmatprep.subr.mxu0 0.0
      %968 = vmatpush2.msra.mxu0 0.0
      %969 = vmatprep.subr.mxu0 0.0
      %970 = vmatpush2.msra.mxu0 0.0
      %971 = vmatprep.subr.mxu0 0.0
      %972 = vmatpush2.msra.mxu0 0.0
      %973 = vmatprep.subr.mxu0 0.0
      %974 = vmatpush2.msra.mxu0 0.0
      %975 = vmatprep.mubr.f32.mxu0 0.0
      %976 = vmatmul.mubr.f32.gmra.mxu0 %v876
      %v977 = vpop.f32.mrf.mxu0
      %v978 = vadd.f32 0.0, %v977
      %v979 = vpop.f32.mrf.mxu0
      %980 = vmatprep.mubr.f32.mxu0 0.0
      %981 = vmatmul.mubr.f32.gmra.mxu0 %v877
      %v982 = vpop.f32.mrf.mxu0
      %v983 = vadd.f32 0.0, %v982
      %v984 = vpop.f32.mrf.mxu0
      %985 = vdwg.mxu0
      %986 = vmatprep.subr.mxu0 0.0
      %987 = vmatpush1.msra.mxu0 %v875
      %988 = vmatprep.subr.mxu0 0.0
      %989 = vmatpush1.msra.mxu0 %v874
      %990 = vmatprep.subr.mxu0 0.0
      %991 = vmatpush1.msra.mxu0 %v873
      %992 = vmatprep.subr.mxu0 0.0
      %993 = vmatpush1.msra.mxu0 %v872
      %994 = vmatprep.subr.mxu0 0.0
      %995 = vmatpush1.msra.mxu0 %v871
      %996 = vmatprep.subr.mxu0 0.0
      %997 = vmatpush1.msra.mxu0 %v870
      %998 = vmatprep.subr.mxu0 0.0
      %999 = vmatpush1.msra.mxu0 %v869
      %1000 = vmatprep.subr.mxu0 0.0
      %1001 = vmatpush1.msra.mxu0 %v868
      %1002 = vmatprep.subr.mxu0 0.0
      %1003 = vmatpush1.msra.mxu0 %v867
      %1004 = vmatprep.subr.mxu0 0.0
      %1005 = vmatpush1.msra.mxu0 %v866
      %1006 = vmatprep.subr.mxu0 0.0
      %1007 = vmatpush1.msra.mxu0 %v865
      %1008 = vmatprep.subr.mxu0 0.0
      %1009 = vmatpush1.msra.mxu0 %v864
      %1010 = vmatprep.subr.mxu0 0.0
      %1011 = vmatpush1.msra.mxu0 %v863
      %1012 = vmatprep.subr.mxu0 0.0
      %1013 = vmatpush1.msra.mxu0 %v862
      %1014 = vmatprep.subr.mxu0 0.0
      %1015 = vmatpush1.msra.mxu0 %v861
      %1016 = vmatprep.subr.mxu0 0.0
      %1017 = vmatpush1.msra.mxu0 %v860
      %1018 = vmatprep.subr.mxu0 0.0
      %1019 = vmatpush2.msra.mxu0 0.0
      %1020 = vmatprep.subr.mxu0 0.0
      %1021 = vmatpush2.msra.mxu0 0.0
      %1022 = vmatprep.subr.mxu0 0.0
      %1023 = vmatpush2.msra.mxu0 0.0
      %1024 = vmatprep.subr.mxu0 0.0
      %1025 = vmatpush2.msra.mxu0 0.0
      %1026 = vmatprep.subr.mxu0 0.0
      %1027 = vmatpush2.msra.mxu0 0.0
      %1028 = vmatprep.subr.mxu0 0.0
      %1029 = vmatpush2.msra.mxu0 0.0
      %1030 = vmatprep.subr.mxu0 0.0
      %1031 = vmatpush2.msra.mxu0 0.0
      %1032 = vmatprep.subr.mxu0 0.0
      %1033 = vmatpush2.msra.mxu0 0.0
      %1034 = vmatprep.subr.mxu0 0.0
      %1035 = vmatpush2.msra.mxu0 0.0
      %1036 = vmatprep.subr.mxu0 0.0
      %1037 = vmatpush2.msra.mxu0 0.0
      %1038 = vmatprep.subr.mxu0 0.0
      %1039 = vmatpush2.msra.mxu0 0.0
      %1040 = vmatprep.subr.mxu0 0.0
      %1041 = vmatpush2.msra.mxu0 0.0
      %1042 = vmatprep.subr.mxu0 0.0
      %1043 = vmatpush2.msra.mxu0 0.0
      %1044 = vmatprep.subr.mxu0 0.0
      %1045 = vmatpush2.msra.mxu0 0.0
      %1046 = vmatprep.subr.mxu0 0.0
      %1047 = vmatpush2.msra.mxu0 0.0
      %1048 = vmatprep.subr.mxu0 0.0
      %1049 = vmatpush2.msra.mxu0 0.0
      %1050 = vmatprep.mubr.f32.mxu0 0.0
      %1051 = vmatmul.mubr.f32.gmra.mxu0 %v842
      %v1052 = vpop.f32.mrf.mxu0
      %v1053 = vadd.f32 %v978, %v1052
      %v1054 = vpop.f32.mrf.mxu0
      %1055 = vmatprep.mubr.f32.mxu0 0.0
      %1056 = vmatmul.mubr.f32.gmra.mxu0 %v843
      %v1057 = vpop.f32.mrf.mxu0
      %v1058 = vadd.f32 %v983, %v1057
      %v1059 = vpop.f32.mrf.mxu0
      %1060 = vdwg.mxu0
      %v1061 = vld [vmem:[#allocation2 + $0x20] sm:$0xff]
      %v1062 = vld [vmem:[#allocation2 + $0x28] sm:$0xff]
      %s1063 = scalar_lea.vmem %s3, 128
      %v1064 = vld [vmem:[%s1063] sm:$0xf]
      %v1065 = vld [vmem:[%s1063 + $0x4] sm:$0xf]
      %v1066 = vld [vmem:[%s1063 + $0x8] sm:$0xf]
      %v1067 = vld [vmem:[%s1063 + $0xc] sm:$0xf]
      %v1068 = vld [vmem:[%s1063 + $0x10] sm:$0xf]
      %v1069 = vld [vmem:[%s1063 + $0x14] sm:$0xf]
      %v1070 = vld [vmem:[%s1063 + $0x18] sm:$0xf]
      %v1071 = vld [vmem:[%s1063 + $0x1c] sm:$0xf]
      %v1072 = vld [vmem:[%s1063 + $0x20] sm:$0xf]
      %v1073 = vld [vmem:[%s1063 + $0x24] sm:$0xf]
      %v1074 = vld [vmem:[%s1063 + $0x28] sm:$0xf]
      %v1075 = vld [vmem:[%s1063 + $0x2c] sm:$0xf]
      %v1076 = vld [vmem:[%s1063 + $0x30] sm:$0xf]
      %v1077 = vld [vmem:[%s1063 + $0x34] sm:$0xf]
      %v1078 = vld [vmem:[%s1063 + $0x38] sm:$0xf]
      %v1079 = vld [vmem:[%s1063 + $0x3c] sm:$0xf]
      %v1080 = vunpack.c.l.bf16 %v1064
      %v1081 = vunpack.c.l.bf16 %v1065
      %v1082 = vunpack.c.l.bf16 %v1066
      %v1083 = vunpack.c.l.bf16 %v1067
      %v1084 = vunpack.c.l.bf16 %v1068
      %v1085 = vunpack.c.l.bf16 %v1069
      %v1086 = vunpack.c.l.bf16 %v1070
      %v1087 = vunpack.c.l.bf16 %v1071
      %v1088 = vunpack.c.l.bf16 %v1072
      %v1089 = vunpack.c.l.bf16 %v1073
      %v1090 = vunpack.c.l.bf16 %v1074
      %v1091 = vunpack.c.l.bf16 %v1075
      %v1092 = vunpack.c.l.bf16 %v1076
      %v1093 = vunpack.c.l.bf16 %v1077
      %v1094 = vunpack.c.l.bf16 %v1078
      %v1095 = vunpack.c.l.bf16 %v1079
      %1096 = vmatprep.subr.mxu0 0.0
      %1097 = vmatpush1.msra.mxu0 %v1095
      %1098 = vmatprep.subr.mxu0 0.0
      %1099 = vmatpush1.msra.mxu0 %v1094
      %1100 = vmatprep.subr.mxu0 0.0
      %1101 = vmatpush1.msra.mxu0 %v1093
      %1102 = vmatprep.subr.mxu0 0.0
      %1103 = vmatpush1.msra.mxu0 %v1092
      %1104 = vmatprep.subr.mxu0 0.0
      %1105 = vmatpush1.msra.mxu0 %v1091
      %1106 = vmatprep.subr.mxu0 0.0
      %1107 = vmatpush1.msra.mxu0 %v1090
      %1108 = vmatprep.subr.mxu0 0.0
      %1109 = vmatpush1.msra.mxu0 %v1089
      %1110 = vmatprep.subr.mxu0 0.0
      %1111 = vmatpush1.msra.mxu0 %v1088
      %1112 = vmatprep.subr.mxu0 0.0
      %1113 = vmatpush1.msra.mxu0 %v1087
      %1114 = vmatprep.subr.mxu0 0.0
      %1115 = vmatpush1.msra.mxu0 %v1086
      %1116 = vmatprep.subr.mxu0 0.0
      %1117 = vmatpush1.msra.mxu0 %v1085
      %1118 = vmatprep.subr.mxu0 0.0
      %1119 = vmatpush1.msra.mxu0 %v1084
      %1120 = vmatprep.subr.mxu0 0.0
      %1121 = vmatpush1.msra.mxu0 %v1083
      %1122 = vmatprep.subr.mxu0 0.0
      %1123 = vmatpush1.msra.mxu0 %v1082
      %1124 = vmatprep.subr.mxu0 0.0
      %1125 = vmatpush1.msra.mxu0 %v1081
      %1126 = vmatprep.subr.mxu0 0.0
      %1127 = vmatpush1.msra.mxu0 %v1080
      %1128 = vmatprep.subr.mxu0 0.0
      %1129 = vmatpush2.msra.mxu0 0.0
      %1130 = vmatprep.subr.mxu0 0.0
      %1131 = vmatpush2.msra.mxu0 0.0
      %1132 = vmatprep.subr.mxu0 0.0
      %1133 = vmatpush2.msra.mxu0 0.0
      %1134 = vmatprep.subr.mxu0 0.0
      %1135 = vmatpush2.msra.mxu0 0.0
      %1136 = vmatprep.subr.mxu0 0.0
      %1137 = vmatpush2.msra.mxu0 0.0
      %1138 = vmatprep.subr.mxu0 0.0
      %1139 = vmatpush2.msra.mxu0 0.0
      %1140 = vmatprep.subr.mxu0 0.0
      %1141 = vmatpush2.msra.mxu0 0.0
      %1142 = vmatprep.subr.mxu0 0.0
      %1143 = vmatpush2.msra.mxu0 0.0
      %1144 = vmatprep.subr.mxu0 0.0
      %1145 = vmatpush2.msra.mxu0 0.0
      %1146 = vmatprep.subr.mxu0 0.0
      %1147 = vmatpush2.msra.mxu0 0.0
      %1148 = vmatprep.subr.mxu0 0.0
      %1149 = vmatpush2.msra.mxu0 0.0
      %1150 = vmatprep.subr.mxu0 0.0
      %1151 = vmatpush2.msra.mxu0 0.0
      %1152 = vmatprep.subr.mxu0 0.0
      %1153 = vmatpush2.msra.mxu0 0.0
      %1154 = vmatprep.subr.mxu0 0.0
      %1155 = vmatpush2.msra.mxu0 0.0
      %1156 = vmatprep.subr.mxu0 0.0
      %1157 = vmatpush2.msra.mxu0 0.0
      %1158 = vmatprep.subr.mxu0 0.0
      %1159 = vmatpush2.msra.mxu0 0.0
      %1160 = vmatprep.mubr.f32.mxu0 0.0
      %1161 = vmatmul.mubr.f32.gmra.mxu0 %v1061
      %v1162 = vpop.f32.mrf.mxu0
      %v1163 = vadd.f32 0.0, %v1162
      %v1164 = vpop.f32.mrf.mxu0
      %1165 = vmatprep.mubr.f32.mxu0 0.0
      %1166 = vmatmul.mubr.f32.gmra.mxu0 %v1062
      %v1167 = vpop.f32.mrf.mxu0
      %v1168 = vadd.f32 0.0, %v1167
      %v1169 = vpop.f32.mrf.mxu0
      %1170 = vdwg.mxu0
      %v1171 = vadd.f32 %v1053, %v1163
      %v1172 = vadd.f32 %v1058, %v1168
      %v1173 = vld [vmem:[#allocation2 + $0x30] sm:$0xff]
      %v1174 = vld [vmem:[#allocation2 + $0x38] sm:$0xff]
      %s1175 = scalar_lea.vmem %s3, 192
      %v1176 = vld [vmem:[%s1175] sm:$0xf]
      %v1177 = vld [vmem:[%s1175 + $0x4] sm:$0xf]
      %v1178 = vld [vmem:[%s1175 + $0x8] sm:$0xf]
      %v1179 = vld [vmem:[%s1175 + $0xc] sm:$0xf]
      %v1180 = vld [vmem:[%s1175 + $0x10] sm:$0xf]
      %v1181 = vld [vmem:[%s1175 + $0x14] sm:$0xf]
      %v1182 = vld [vmem:[%s1175 + $0x18] sm:$0xf]
      %v1183 = vld [vmem:[%s1175 + $0x1c] sm:$0xf]
      %v1184 = vld [vmem:[%s1175 + $0x20] sm:$0xf]
      %v1185 = vld [vmem:[%s1175 + $0x24] sm:$0xf]
      %v1186 = vld [vmem:[%s1175 + $0x28] sm:$0xf]
      %v1187 = vld [vmem:[%s1175 + $0x2c] sm:$0xf]
      %v1188 = vld [vmem:[%s1175 + $0x30] sm:$0xf]
      %v1189 = vld [vmem:[%s1175 + $0x34] sm:$0xf]
      %v1190 = vld [vmem:[%s1175 + $0x38] sm:$0xf]
      %v1191 = vld [vmem:[%s1175 + $0x3c] sm:$0xf]
      %v1192 = vunpack.c.l.bf16 %v1176
      %v1193 = vunpack.c.l.bf16 %v1177
      %v1194 = vunpack.c.l.bf16 %v1178
      %v1195 = vunpack.c.l.bf16 %v1179
      %v1196 = vunpack.c.l.bf16 %v1180
      %v1197 = vunpack.c.l.bf16 %v1181
      %v1198 = vunpack.c.l.bf16 %v1182
      %v1199 = vunpack.c.l.bf16 %v1183
      %v1200 = vunpack.c.l.bf16 %v1184
      %v1201 = vunpack.c.l.bf16 %v1185
      %v1202 = vunpack.c.l.bf16 %v1186
      %v1203 = vunpack.c.l.bf16 %v1187
      %v1204 = vunpack.c.l.bf16 %v1188
      %v1205 = vunpack.c.l.bf16 %v1189
      %v1206 = vunpack.c.l.bf16 %v1190
      %v1207 = vunpack.c.l.bf16 %v1191
      %1208 = vmatprep.subr.mxu0 0.0
      %1209 = vmatpush1.msra.mxu0 %v1207
      %1210 = vmatprep.subr.mxu0 0.0
      %1211 = vmatpush1.msra.mxu0 %v1206
      %1212 = vmatprep.subr.mxu0 0.0
      %1213 = vmatpush1.msra.mxu0 %v1205
      %1214 = vmatprep.subr.mxu0 0.0
      %1215 = vmatpush1.msra.mxu0 %v1204
      %1216 = vmatprep.subr.mxu0 0.0
      %1217 = vmatpush1.msra.mxu0 %v1203
      %1218 = vmatprep.subr.mxu0 0.0
      %1219 = vmatpush1.msra.mxu0 %v1202
      %1220 = vmatprep.subr.mxu0 0.0
      %1221 = vmatpush1.msra.mxu0 %v1201
      %1222 = vmatprep.subr.mxu0 0.0
      %1223 = vmatpush1.msra.mxu0 %v1200
      %1224 = vmatprep.subr.mxu0 0.0
      %1225 = vmatpush1.msra.mxu0 %v1199
      %1226 = vmatprep.subr.mxu0 0.0
      %1227 = vmatpush1.msra.mxu0 %v1198
      %1228 = vmatprep.subr.mxu0 0.0
      %1229 = vmatpush1.msra.mxu0 %v1197
      %1230 = vmatprep.subr.mxu0 0.0
      %1231 = vmatpush1.msra.mxu0 %v1196
      %1232 = vmatprep.subr.mxu0 0.0
      %1233 = vmatpush1.msra.mxu0 %v1195
      %1234 = vmatprep.subr.mxu0 0.0
      %1235 = vmatpush1.msra.mxu0 %v1194
      %1236 = vmatprep.subr.mxu0 0.0
      %1237 = vmatpush1.msra.mxu0 %v1193
      %1238 = vmatprep.subr.mxu0 0.0
      %1239 = vmatpush1.msra.mxu0 %v1192
      %1240 = vmatprep.subr.mxu0 0.0
      %1241 = vmatpush2.msra.mxu0 0.0
      %1242 = vmatprep.subr.mxu0 0.0
      %1243 = vmatpush2.msra.mxu0 0.0
      %1244 = vmatprep.subr.mxu0 0.0
      %1245 = vmatpush2.msra.mxu0 0.0
      %1246 = vmatprep.subr.mxu0 0.0
      %1247 = vmatpush2.msra.mxu0 0.0
      %1248 = vmatprep.subr.mxu0 0.0
      %1249 = vmatpush2.msra.mxu0 0.0
      %1250 = vmatprep.subr.mxu0 0.0
      %1251 = vmatpush2.msra.mxu0 0.0
      %1252 = vmatprep.subr.mxu0 0.0
      %1253 = vmatpush2.msra.mxu0 0.0
      %1254 = vmatprep.subr.mxu0 0.0
      %1255 = vmatpush2.msra.mxu0 0.0
      %1256 = vmatprep.subr.mxu0 0.0
      %1257 = vmatpush2.msra.mxu0 0.0
      %1258 = vmatprep.subr.mxu0 0.0
      %1259 = vmatpush2.msra.mxu0 0.0
      %1260 = vmatprep.subr.mxu0 0.0
      %1261 = vmatpush2.msra.mxu0 0.0
      %1262 = vmatprep.subr.mxu0 0.0
      %1263 = vmatpush2.msra.mxu0 0.0
      %1264 = vmatprep.subr.mxu0 0.0
      %1265 = vmatpush2.msra.mxu0 0.0
      %1266 = vmatprep.subr.mxu0 0.0
      %1267 = vmatpush2.msra.mxu0 0.0
      %1268 = vmatprep.subr.mxu0 0.0
      %1269 = vmatpush2.msra.mxu0 0.0
      %1270 = vmatprep.subr.mxu0 0.0
      %1271 = vmatpush2.msra.mxu0 0.0
      %1272 = vmatprep.mubr.f32.mxu0 0.0
      %1273 = vmatmul.mubr.f32.gmra.mxu0 %v1173
      %v1274 = vpop.f32.mrf.mxu0
      %v1275 = vadd.f32 0.0, %v1274
      %v1276 = vpop.f32.mrf.mxu0
      %1277 = vmatprep.mubr.f32.mxu0 0.0
      %1278 = vmatmul.mubr.f32.gmra.mxu0 %v1174
      %v1279 = vpop.f32.mrf.mxu0
      %v1280 = vadd.f32 0.0, %v1279
      %v1281 = vpop.f32.mrf.mxu0
      %1282 = vdwg.mxu0
      %v1283 = vadd.f32 %v1171, %v1275
      %v1284 = vadd.f32 %v1172, %v1280
      %v1285 = vld [vmem:[#allocation2 + $0x40] sm:$0xff]
      %v1286 = vld [vmem:[#allocation2 + $0x48] sm:$0xff]
      %s1287 = scalar_lea.vmem %s3, 256
      %v1288 = vld [vmem:[%s1287] sm:$0xf]
      %v1289 = vld [vmem:[%s1287 + $0x4] sm:$0xf]
      %v1290 = vld [vmem:[%s1287 + $0x8] sm:$0xf]
      %v1291 = vld [vmem:[%s1287 + $0xc] sm:$0xf]
      %v1292 = vld [vmem:[%s1287 + $0x10] sm:$0xf]
      %v1293 = vld [vmem:[%s1287 + $0x14] sm:$0xf]
      %v1294 = vld [vmem:[%s1287 + $0x18] sm:$0xf]
      %v1295 = vld [vmem:[%s1287 + $0x1c] sm:$0xf]
      %v1296 = vld [vmem:[%s1287 + $0x20] sm:$0xf]
      %v1297 = vld [vmem:[%s1287 + $0x24] sm:$0xf]
      %v1298 = vld [vmem:[%s1287 + $0x28] sm:$0xf]
      %v1299 = vld [vmem:[%s1287 + $0x2c] sm:$0xf]
      %v1300 = vld [vmem:[%s1287 + $0x30] sm:$0xf]
      %v1301 = vld [vmem:[%s1287 + $0x34] sm:$0xf]
      %v1302 = vld [vmem:[%s1287 + $0x38] sm:$0xf]
      %v1303 = vld [vmem:[%s1287 + $0x3c] sm:$0xf]
      %v1304 = vunpack.c.l.bf16 %v1288
      %v1305 = vunpack.c.l.bf16 %v1289
      %v1306 = vunpack.c.l.bf16 %v1290
      %v1307 = vunpack.c.l.bf16 %v1291
      %v1308 = vunpack.c.l.bf16 %v1292
      %v1309 = vunpack.c.l.bf16 %v1293
      %v1310 = vunpack.c.l.bf16 %v1294
      %v1311 = vunpack.c.l.bf16 %v1295
      %v1312 = vunpack.c.l.bf16 %v1296
      %v1313 = vunpack.c.l.bf16 %v1297
      %v1314 = vunpack.c.l.bf16 %v1298
      %v1315 = vunpack.c.l.bf16 %v1299
      %v1316 = vunpack.c.l.bf16 %v1300
      %v1317 = vunpack.c.l.bf16 %v1301
      %v1318 = vunpack.c.l.bf16 %v1302
      %v1319 = vunpack.c.l.bf16 %v1303
      %1320 = vmatprep.subr.mxu0 0.0
      %1321 = vmatpush1.msra.mxu0 %v1319
      %1322 = vmatprep.subr.mxu0 0.0
      %1323 = vmatpush1.msra.mxu0 %v1318
      %1324 = vmatprep.subr.mxu0 0.0
      %1325 = vmatpush1.msra.mxu0 %v1317
      %1326 = vmatprep.subr.mxu0 0.0
      %1327 = vmatpush1.msra.mxu0 %v1316
      %1328 = vmatprep.subr.mxu0 0.0
      %1329 = vmatpush1.msra.mxu0 %v1315
      %1330 = vmatprep.subr.mxu0 0.0
      %1331 = vmatpush1.msra.mxu0 %v1314
      %1332 = vmatprep.subr.mxu0 0.0
      %1333 = vmatpush1.msra.mxu0 %v1313
      %1334 = vmatprep.subr.mxu0 0.0
      %1335 = vmatpush1.msra.mxu0 %v1312
      %1336 = vmatprep.subr.mxu0 0.0
      %1337 = vmatpush1.msra.mxu0 %v1311
      %1338 = vmatprep.subr.mxu0 0.0
      %1339 = vmatpush1.msra.mxu0 %v1310
      %1340 = vmatprep.subr.mxu0 0.0
      %1341 = vmatpush1.msra.mxu0 %v1309
      %1342 = vmatprep.subr.mxu0 0.0
      %1343 = vmatpush1.msra.mxu0 %v1308
      %1344 = vmatprep.subr.mxu0 0.0
      %1345 = vmatpush1.msra.mxu0 %v1307
      %1346 = vmatprep.subr.mxu0 0.0
      %1347 = vmatpush1.msra.mxu0 %v1306
      %1348 = vmatprep.subr.mxu0 0.0
      %1349 = vmatpush1.msra.mxu0 %v1305
      %1350 = vmatprep.subr.mxu0 0.0
      %1351 = vmatpush1.msra.mxu0 %v1304
      %1352 = vmatprep.subr.mxu0 0.0
      %1353 = vmatpush2.msra.mxu0 0.0
      %1354 = vmatprep.subr.mxu0 0.0
      %1355 = vmatpush2.msra.mxu0 0.0
      %1356 = vmatprep.subr.mxu0 0.0
      %1357 = vmatpush2.msra.mxu0 0.0
      %1358 = vmatprep.subr.mxu0 0.0
      %1359 = vmatpush2.msra.mxu0 0.0
      %1360 = vmatprep.subr.mxu0 0.0
      %1361 = vmatpush2.msra.mxu0 0.0
      %1362 = vmatprep.subr.mxu0 0.0
      %1363 = vmatpush2.msra.mxu0 0.0
      %1364 = vmatprep.subr.mxu0 0.0
      %1365 = vmatpush2.msra.mxu0 0.0
      %1366 = vmatprep.subr.mxu0 0.0
      %1367 = vmatpush2.msra.mxu0 0.0
      %1368 = vmatprep.subr.mxu0 0.0
      %1369 = vmatpush2.msra.mxu0 0.0
      %1370 = vmatprep.subr.mxu0 0.0
      %1371 = vmatpush2.msra.mxu0 0.0
      %1372 = vmatprep.subr.mxu0 0.0
      %1373 = vmatpush2.msra.mxu0 0.0
      %1374 = vmatprep.subr.mxu0 0.0
      %1375 = vmatpush2.msra.mxu0 0.0
      %1376 = vmatprep.subr.mxu0 0.0
      %1377 = vmatpush2.msra.mxu0 0.0
      %1378 = vmatprep.subr.mxu0 0.0
      %1379 = vmatpush2.msra.mxu0 0.0
      %1380 = vmatprep.subr.mxu0 0.0
      %1381 = vmatpush2.msra.mxu0 0.0
      %1382 = vmatprep.subr.mxu0 0.0
      %1383 = vmatpush2.msra.mxu0 0.0
      %1384 = vmatprep.mubr.f32.mxu0 0.0
      %1385 = vmatmul.mubr.f32.gmra.mxu0 %v1285
      %v1386 = vpop.f32.mrf.mxu0
      %v1387 = vadd.f32 0.0, %v1386
      %v1388 = vpop.f32.mrf.mxu0
      %1389 = vmatprep.mubr.f32.mxu0 0.0
      %1390 = vmatmul.mubr.f32.gmra.mxu0 %v1286
      %v1391 = vpop.f32.mrf.mxu0
      %v1392 = vadd.f32 0.0, %v1391
      %v1393 = vpop.f32.mrf.mxu0
      %1394 = vdwg.mxu0
      %v1395 = vadd.f32 %v1283, %v1387
      %v1396 = vadd.f32 %v1284, %v1392
      %v1397 = vld [vmem:[#allocation2 + $0x50] sm:$0xff]
      %v1398 = vld [vmem:[#allocation2 + $0x58] sm:$0xff]
      %s1399 = scalar_lea.vmem %s3, 320
      %v1400 = vld [vmem:[%s1399] sm:$0xf]
      %v1401 = vld [vmem:[%s1399 + $0x4] sm:$0xf]
      %v1402 = vld [vmem:[%s1399 + $0x8] sm:$0xf]
      %v1403 = vld [vmem:[%s1399 + $0xc] sm:$0xf]
      %v1404 = vld [vmem:[%s1399 + $0x10] sm:$0xf]
      %v1405 = vld [vmem:[%s1399 + $0x14] sm:$0xf]
      %v1406 = vld [vmem:[%s1399 + $0x18] sm:$0xf]
      %v1407 = vld [vmem:[%s1399 + $0x1c] sm:$0xf]
      %v1408 = vld [vmem:[%s1399 + $0x20] sm:$0xf]
      %v1409 = vld [vmem:[%s1399 + $0x24] sm:$0xf]
      %v1410 = vld [vmem:[%s1399 + $0x28] sm:$0xf]
      %v1411 = vld [vmem:[%s1399 + $0x2c] sm:$0xf]
      %v1412 = vld [vmem:[%s1399 + $0x30] sm:$0xf]
      %v1413 = vld [vmem:[%s1399 + $0x34] sm:$0xf]
      %v1414 = vld [vmem:[%s1399 + $0x38] sm:$0xf]
      %v1415 = vld [vmem:[%s1399 + $0x3c] sm:$0xf]
      %v1416 = vunpack.c.l.bf16 %v1400
      %v1417 = vunpack.c.l.bf16 %v1401
      %v1418 = vunpack.c.l.bf16 %v1402
      %v1419 = vunpack.c.l.bf16 %v1403
      %v1420 = vunpack.c.l.bf16 %v1404
      %v1421 = vunpack.c.l.bf16 %v1405
      %v1422 = vunpack.c.l.bf16 %v1406
      %v1423 = vunpack.c.l.bf16 %v1407
      %v1424 = vunpack.c.l.bf16 %v1408
      %v1425 = vunpack.c.l.bf16 %v1409
      %v1426 = vunpack.c.l.bf16 %v1410
      %v1427 = vunpack.c.l.bf16 %v1411
      %v1428 = vunpack.c.l.bf16 %v1412
      %v1429 = vunpack.c.l.bf16 %v1413
      %v1430 = vunpack.c.l.bf16 %v1414
      %v1431 = vunpack.c.l.bf16 %v1415
      %1432 = vmatprep.subr.mxu0 0.0
      %1433 = vmatpush1.msra.mxu0 %v1431
      %1434 = vmatprep.subr.mxu0 0.0
      %1435 = vmatpush1.msra.mxu0 %v1430
      %1436 = vmatprep.subr.mxu0 0.0
      %1437 = vmatpush1.msra.mxu0 %v1429
      %1438 = vmatprep.subr.mxu0 0.0
      %1439 = vmatpush1.msra.mxu0 %v1428
      %1440 = vmatprep.subr.mxu0 0.0
      %1441 = vmatpush1.msra.mxu0 %v1427
      %1442 = vmatprep.subr.mxu0 0.0
      %1443 = vmatpush1.msra.mxu0 %v1426
      %1444 = vmatprep.subr.mxu0 0.0
      %1445 = vmatpush1.msra.mxu0 %v1425
      %1446 = vmatprep.subr.mxu0 0.0
      %1447 = vmatpush1.msra.mxu0 %v1424
      %1448 = vmatprep.subr.mxu0 0.0
      %1449 = vmatpush1.msra.mxu0 %v1423
      %1450 = vmatprep.subr.mxu0 0.0
      %1451 = vmatpush1.msra.mxu0 %v1422
      %1452 = vmatprep.subr.mxu0 0.0
      %1453 = vmatpush1.msra.mxu0 %v1421
      %1454 = vmatprep.subr.mxu0 0.0
      %1455 = vmatpush1.msra.mxu0 %v1420
      %1456 = vmatprep.subr.mxu0 0.0
      %1457 = vmatpush1.msra.mxu0 %v1419
      %1458 = vmatprep.subr.mxu0 0.0
      %1459 = vmatpush1.msra.mxu0 %v1418
      %1460 = vmatprep.subr.mxu0 0.0
      %1461 = vmatpush1.msra.mxu0 %v1417
      %1462 = vmatprep.subr.mxu0 0.0
      %1463 = vmatpush1.msra.mxu0 %v1416
      %1464 = vmatprep.subr.mxu0 0.0
      %1465 = vmatpush2.msra.mxu0 0.0
      %1466 = vmatprep.subr.mxu0 0.0
      %1467 = vmatpush2.msra.mxu0 0.0
      %1468 = vmatprep.subr.mxu0 0.0
      %1469 = vmatpush2.msra.mxu0 0.0
      %1470 = vmatprep.subr.mxu0 0.0
      %1471 = vmatpush2.msra.mxu0 0.0
      %1472 = vmatprep.subr.mxu0 0.0
      %1473 = vmatpush2.msra.mxu0 0.0
      %1474 = vmatprep.subr.mxu0 0.0
      %1475 = vmatpush2.msra.mxu0 0.0
      %1476 = vmatprep.subr.mxu0 0.0
      %1477 = vmatpush2.msra.mxu0 0.0
      %1478 = vmatprep.subr.mxu0 0.0
      %1479 = vmatpush2.msra.mxu0 0.0
      %1480 = vmatprep.subr.mxu0 0.0
      %1481 = vmatpush2.msra.mxu0 0.0
      %1482 = vmatprep.subr.mxu0 0.0
      %1483 = vmatpush2.msra.mxu0 0.0
      %1484 = vmatprep.subr.mxu0 0.0
      %1485 = vmatpush2.msra.mxu0 0.0
      %1486 = vmatprep.subr.mxu0 0.0
      %1487 = vmatpush2.msra.mxu0 0.0
      %1488 = vmatprep.subr.mxu0 0.0
      %1489 = vmatpush2.msra.mxu0 0.0
      %1490 = vmatprep.subr.mxu0 0.0
      %1491 = vmatpush2.msra.mxu0 0.0
      %1492 = vmatprep.subr.mxu0 0.0
      %1493 = vmatpush2.msra.mxu0 0.0
      %1494 = vmatprep.subr.mxu0 0.0
      %1495 = vmatpush2.msra.mxu0 0.0
      %1496 = vmatprep.mubr.f32.mxu0 0.0
      %1497 = vmatmul.mubr.f32.gmra.mxu0 %v1397
      %v1498 = vpop.f32.mrf.mxu0
      %v1499 = vadd.f32 0.0, %v1498
      %v1500 = vpop.f32.mrf.mxu0
      %1501 = vmatprep.mubr.f32.mxu0 0.0
      %1502 = vmatmul.mubr.f32.gmra.mxu0 %v1398
      %v1503 = vpop.f32.mrf.mxu0
      %v1504 = vadd.f32 0.0, %v1503
      %v1505 = vpop.f32.mrf.mxu0
      %1506 = vdwg.mxu0
      %v1507 = vadd.f32 %v1395, %v1499
      %v1508 = vadd.f32 %v1396, %v1504
      %v1509 = vld [vmem:[#allocation2 + $0x60] sm:$0xff]
      %v1510 = vld [vmem:[#allocation2 + $0x68] sm:$0xff]
      %s1511 = scalar_lea.vmem %s3, 384
      %v1512 = vld [vmem:[%s1511] sm:$0xf]
      %v1513 = vld [vmem:[%s1511 + $0x4] sm:$0xf]
      %v1514 = vld [vmem:[%s1511 + $0x8] sm:$0xf]
      %v1515 = vld [vmem:[%s1511 + $0xc] sm:$0xf]
      %v1516 = vld [vmem:[%s1511 + $0x10] sm:$0xf]
      %v1517 = vld [vmem:[%s1511 + $0x14] sm:$0xf]
      %v1518 = vld [vmem:[%s1511 + $0x18] sm:$0xf]
      %v1519 = vld [vmem:[%s1511 + $0x1c] sm:$0xf]
      %v1520 = vld [vmem:[%s1511 + $0x20] sm:$0xf]
      %v1521 = vld [vmem:[%s1511 + $0x24] sm:$0xf]
      %v1522 = vld [vmem:[%s1511 + $0x28] sm:$0xf]
      %v1523 = vld [vmem:[%s1511 + $0x2c] sm:$0xf]
      %v1524 = vld [vmem:[%s1511 + $0x30] sm:$0xf]
      %v1525 = vld [vmem:[%s1511 + $0x34] sm:$0xf]
      %v1526 = vld [vmem:[%s1511 + $0x38] sm:$0xf]
      %v1527 = vld [vmem:[%s1511 + $0x3c] sm:$0xf]
      %v1528 = vunpack.c.l.bf16 %v1512
      %v1529 = vunpack.c.l.bf16 %v1513
      %v1530 = vunpack.c.l.bf16 %v1514
      %v1531 = vunpack.c.l.bf16 %v1515
      %v1532 = vunpack.c.l.bf16 %v1516
      %v1533 = vunpack.c.l.bf16 %v1517
      %v1534 = vunpack.c.l.bf16 %v1518
      %v1535 = vunpack.c.l.bf16 %v1519
      %v1536 = vunpack.c.l.bf16 %v1520
      %v1537 = vunpack.c.l.bf16 %v1521
      %v1538 = vunpack.c.l.bf16 %v1522
      %v1539 = vunpack.c.l.bf16 %v1523
      %v1540 = vunpack.c.l.bf16 %v1524
      %v1541 = vunpack.c.l.bf16 %v1525
      %v1542 = vunpack.c.l.bf16 %v1526
      %v1543 = vunpack.c.l.bf16 %v1527
      %1544 = vmatprep.subr.mxu0 0.0
      %1545 = vmatpush1.msra.mxu0 %v1543
      %1546 = vmatprep.subr.mxu0 0.0
      %1547 = vmatpush1.msra.mxu0 %v1542
      %1548 = vmatprep.subr.mxu0 0.0
      %1549 = vmatpush1.msra.mxu0 %v1541
      %1550 = vmatprep.subr.mxu0 0.0
      %1551 = vmatpush1.msra.mxu0 %v1540
      %1552 = vmatprep.subr.mxu0 0.0
      %1553 = vmatpush1.msra.mxu0 %v1539
      %1554 = vmatprep.subr.mxu0 0.0
      %1555 = vmatpush1.msra.mxu0 %v1538
      %1556 = vmatprep.subr.mxu0 0.0
      %1557 = vmatpush1.msra.mxu0 %v1537
      %1558 = vmatprep.subr.mxu0 0.0
      %1559 = vmatpush1.msra.mxu0 %v1536
      %1560 = vmatprep.subr.mxu0 0.0
      %1561 = vmatpush1.msra.mxu0 %v1535
      %1562 = vmatprep.subr.mxu0 0.0
      %1563 = vmatpush1.msra.mxu0 %v1534
      %1564 = vmatprep.subr.mxu0 0.0
      %1565 = vmatpush1.msra.mxu0 %v1533
      %1566 = vmatprep.subr.mxu0 0.0
      %1567 = vmatpush1.msra.mxu0 %v1532
      %1568 = vmatprep.subr.mxu0 0.0
      %1569 = vmatpush1.msra.mxu0 %v1531
      %1570 = vmatprep.subr.mxu0 0.0
      %1571 = vmatpush1.msra.mxu0 %v1530
      %1572 = vmatprep.subr.mxu0 0.0
      %1573 = vmatpush1.msra.mxu0 %v1529
      %1574 = vmatprep.subr.mxu0 0.0
      %1575 = vmatpush1.msra.mxu0 %v1528
      %1576 = vmatprep.subr.mxu0 0.0
      %1577 = vmatpush2.msra.mxu0 0.0
      %1578 = vmatprep.subr.mxu0 0.0
      %1579 = vmatpush2.msra.mxu0 0.0
      %1580 = vmatprep.subr.mxu0 0.0
      %1581 = vmatpush2.msra.mxu0 0.0
      %1582 = vmatprep.subr.mxu0 0.0
      %1583 = vmatpush2.msra.mxu0 0.0
      %1584 = vmatprep.subr.mxu0 0.0
      %1585 = vmatpush2.msra.mxu0 0.0
      %1586 = vmatprep.subr.mxu0 0.0
      %1587 = vmatpush2.msra.mxu0 0.0
      %1588 = vmatprep.subr.mxu0 0.0
      %1589 = vmatpush2.msra.mxu0 0.0
      %1590 = vmatprep.subr.mxu0 0.0
      %1591 = vmatpush2.msra.mxu0 0.0
      %1592 = vmatprep.subr.mxu0 0.0
      %1593 = vmatpush2.msra.mxu0 0.0
      %1594 = vmatprep.subr.mxu0 0.0
      %1595 = vmatpush2.msra.mxu0 0.0
      %1596 = vmatprep.subr.mxu0 0.0
      %1597 = vmatpush2.msra.mxu0 0.0
      %1598 = vmatprep.subr.mxu0 0.0
      %1599 = vmatpush2.msra.mxu0 0.0
      %1600 = vmatprep.subr.mxu0 0.0
      %1601 = vmatpush2.msra.mxu0 0.0
      %1602 = vmatprep.subr.mxu0 0.0
      %1603 = vmatpush2.msra.mxu0 0.0
      %1604 = vmatprep.subr.mxu0 0.0
      %1605 = vmatpush2.msra.mxu0 0.0
      %1606 = vmatprep.subr.mxu0 0.0
      %1607 = vmatpush2.msra.mxu0 0.0
      %1608 = vmatprep.mubr.f32.mxu0 0.0
      %1609 = vmatmul.mubr.f32.gmra.mxu0 %v1509
      %v1610 = vpop.f32.mrf.mxu0
      %v1611 = vadd.f32 0.0, %v1610
      %v1612 = vpop.f32.mrf.mxu0
      %1613 = vmatprep.mubr.f32.mxu0 0.0
      %1614 = vmatmul.mubr.f32.gmra.mxu0 %v1510
      %v1615 = vpop.f32.mrf.mxu0
      %v1616 = vadd.f32 0.0, %v1615
      %v1617 = vpop.f32.mrf.mxu0
      %1618 = vdwg.mxu0
      %v1619 = vadd.f32 %v1507, %v1611
      %v1620 = vadd.f32 %v1508, %v1616
      %v1621 = vld [vmem:[#allocation2 + $0x70] sm:$0xff]
      %v1622 = vld [vmem:[#allocation2 + $0x78] sm:$0xff]
      %s1623 = scalar_lea.vmem %s3, 448
      %v1624 = vld [vmem:[%s1623] sm:$0xf]
      %v1625 = vld [vmem:[%s1623 + $0x4] sm:$0xf]
      %v1626 = vld [vmem:[%s1623 + $0x8] sm:$0xf]
      %v1627 = vld [vmem:[%s1623 + $0xc] sm:$0xf]
      %v1628 = vld [vmem:[%s1623 + $0x10] sm:$0xf]
      %v1629 = vld [vmem:[%s1623 + $0x14] sm:$0xf]
      %v1630 = vld [vmem:[%s1623 + $0x18] sm:$0xf]
      %v1631 = vld [vmem:[%s1623 + $0x1c] sm:$0xf]
      %v1632 = vld [vmem:[%s1623 + $0x20] sm:$0xf]
      %v1633 = vld [vmem:[%s1623 + $0x24] sm:$0xf]
      %v1634 = vld [vmem:[%s1623 + $0x28] sm:$0xf]
      %v1635 = vld [vmem:[%s1623 + $0x2c] sm:$0xf]
      %v1636 = vld [vmem:[%s1623 + $0x30] sm:$0xf]
      %v1637 = vld [vmem:[%s1623 + $0x34] sm:$0xf]
      %v1638 = vld [vmem:[%s1623 + $0x38] sm:$0xf]
      %v1639 = vld [vmem:[%s1623 + $0x3c] sm:$0xf]
      %v1640 = vunpack.c.l.bf16 %v1624
      %v1641 = vunpack.c.l.bf16 %v1625
      %v1642 = vunpack.c.l.bf16 %v1626
      %v1643 = vunpack.c.l.bf16 %v1627
      %v1644 = vunpack.c.l.bf16 %v1628
      %v1645 = vunpack.c.l.bf16 %v1629
      %v1646 = vunpack.c.l.bf16 %v1630
      %v1647 = vunpack.c.l.bf16 %v1631
      %v1648 = vunpack.c.l.bf16 %v1632
      %v1649 = vunpack.c.l.bf16 %v1633
      %v1650 = vunpack.c.l.bf16 %v1634
      %v1651 = vunpack.c.l.bf16 %v1635
      %v1652 = vunpack.c.l.bf16 %v1636
      %v1653 = vunpack.c.l.bf16 %v1637
      %v1654 = vunpack.c.l.bf16 %v1638
      %v1655 = vunpack.c.l.bf16 %v1639
      %1656 = vmatprep.subr.mxu0 0.0
      %1657 = vmatpush1.msra.mxu0 %v1655
      %1658 = vmatprep.subr.mxu0 0.0
      %1659 = vmatpush1.msra.mxu0 %v1654
      %1660 = vmatprep.subr.mxu0 0.0
      %1661 = vmatpush1.msra.mxu0 %v1653
      %1662 = vmatprep.subr.mxu0 0.0
      %1663 = vmatpush1.msra.mxu0 %v1652
      %1664 = vmatprep.subr.mxu0 0.0
      %1665 = vmatpush1.msra.mxu0 %v1651
      %1666 = vmatprep.subr.mxu0 0.0
      %1667 = vmatpush1.msra.mxu0 %v1650
      %1668 = vmatprep.subr.mxu0 0.0
      %1669 = vmatpush1.msra.mxu0 %v1649
      %1670 = vmatprep.subr.mxu0 0.0
      %1671 = vmatpush1.msra.mxu0 %v1648
      %1672 = vmatprep.subr.mxu0 0.0
      %1673 = vmatpush1.msra.mxu0 %v1647
      %1674 = vmatprep.subr.mxu0 0.0
      %1675 = vmatpush1.msra.mxu0 %v1646
      %1676 = vmatprep.subr.mxu0 0.0
      %1677 = vmatpush1.msra.mxu0 %v1645
      %1678 = vmatprep.subr.mxu0 0.0
      %1679 = vmatpush1.msra.mxu0 %v1644
      %1680 = vmatprep.subr.mxu0 0.0
      %1681 = vmatpush1.msra.mxu0 %v1643
      %1682 = vmatprep.subr.mxu0 0.0
      %1683 = vmatpush1.msra.mxu0 %v1642
      %1684 = vmatprep.subr.mxu0 0.0
      %1685 = vmatpush1.msra.mxu0 %v1641
      %1686 = vmatprep.subr.mxu0 0.0
      %1687 = vmatpush1.msra.mxu0 %v1640
      %1688 = vmatprep.subr.mxu0 0.0
      %1689 = vmatpush2.msra.mxu0 0.0
      %1690 = vmatprep.subr.mxu0 0.0
      %1691 = vmatpush2.msra.mxu0 0.0
      %1692 = vmatprep.subr.mxu0 0.0
      %1693 = vmatpush2.msra.mxu0 0.0
      %1694 = vmatprep.subr.mxu0 0.0
      %1695 = vmatpush2.msra.mxu0 0.0
      %1696 = vmatprep.subr.mxu0 0.0
      %1697 = vmatpush2.msra.mxu0 0.0
      %1698 = vmatprep.subr.mxu0 0.0
      %1699 = vmatpush2.msra.mxu0 0.0
      %1700 = vmatprep.subr.mxu0 0.0
      %1701 = vmatpush2.msra.mxu0 0.0
      %1702 = vmatprep.subr.mxu0 0.0
      %1703 = vmatpush2.msra.mxu0 0.0
      %1704 = vmatprep.subr.mxu0 0.0
      %1705 = vmatpush2.msra.mxu0 0.0
      %1706 = vmatprep.subr.mxu0 0.0
      %1707 = vmatpush2.msra.mxu0 0.0
      %1708 = vmatprep.subr.mxu0 0.0
      %1709 = vmatpush2.msra.mxu0 0.0
      %1710 = vmatprep.subr.mxu0 0.0
      %1711 = vmatpush2.msra.mxu0 0.0
      %1712 = vmatprep.subr.mxu0 0.0
      %1713 = vmatpush2.msra.mxu0 0.0
      %1714 = vmatprep.subr.mxu0 0.0
      %1715 = vmatpush2.msra.mxu0 0.0
      %1716 = vmatprep.subr.mxu0 0.0
      %1717 = vmatpush2.msra.mxu0 0.0
      %1718 = vmatprep.subr.mxu0 0.0
      %1719 = vmatpush2.msra.mxu0 0.0
      %1720 = vmatprep.mubr.f32.mxu0 0.0
      %1721 = vmatmul.mubr.f32.gmra.mxu0 %v1621
      %v1722 = vpop.f32.mrf.mxu0
      %v1723 = vadd.f32 0.0, %v1722
      %v1724 = vpop.f32.mrf.mxu0
      %1725 = vmatprep.mubr.f32.mxu0 0.0
      %1726 = vmatmul.mubr.f32.gmra.mxu0 %v1622
      %v1727 = vpop.f32.mrf.mxu0
      %v1728 = vadd.f32 0.0, %v1727
      %v1729 = vpop.f32.mrf.mxu0
      %1730 = vdwg.mxu0
      %v1731 = vadd.f32 %v1619, %v1723
      %v1732 = vadd.f32 %v1620, %v1728
      %v1733 = vld [vmem:[#allocation2 + $0x80] sm:$0xff]
      %v1734 = vld [vmem:[#allocation2 + $0x88] sm:$0xff]
      %s1735 = scalar_lea.vmem %s3, 512
      %v1736 = vld [vmem:[%s1735] sm:$0xf]
      %v1737 = vld [vmem:[%s1735 + $0x4] sm:$0xf]
      %v1738 = vld [vmem:[%s1735 + $0x8] sm:$0xf]
      %v1739 = vld [vmem:[%s1735 + $0xc] sm:$0xf]
      %v1740 = vld [vmem:[%s1735 + $0x10] sm:$0xf]
      %v1741 = vld [vmem:[%s1735 + $0x14] sm:$0xf]
      %v1742 = vld [vmem:[%s1735 + $0x18] sm:$0xf]
      %v1743 = vld [vmem:[%s1735 + $0x1c] sm:$0xf]
      %v1744 = vld [vmem:[%s1735 + $0x20] sm:$0xf]
      %v1745 = vld [vmem:[%s1735 + $0x24] sm:$0xf]
      %v1746 = vld [vmem:[%s1735 + $0x28] sm:$0xf]
      %v1747 = vld [vmem:[%s1735 + $0x2c] sm:$0xf]
      %v1748 = vld [vmem:[%s1735 + $0x30] sm:$0xf]
      %v1749 = vld [vmem:[%s1735 + $0x34] sm:$0xf]
      %v1750 = vld [vmem:[%s1735 + $0x38] sm:$0xf]
      %v1751 = vld [vmem:[%s1735 + $0x3c] sm:$0xf]
      %v1752 = vunpack.c.l.bf16 %v1736
      %v1753 = vunpack.c.l.bf16 %v1737
      %v1754 = vunpack.c.l.bf16 %v1738
      %v1755 = vunpack.c.l.bf16 %v1739
      %v1756 = vunpack.c.l.bf16 %v1740
      %v1757 = vunpack.c.l.bf16 %v1741
      %v1758 = vunpack.c.l.bf16 %v1742
      %v1759 = vunpack.c.l.bf16 %v1743
      %v1760 = vunpack.c.l.bf16 %v1744
      %v1761 = vunpack.c.l.bf16 %v1745
      %v1762 = vunpack.c.l.bf16 %v1746
      %v1763 = vunpack.c.l.bf16 %v1747
      %v1764 = vunpack.c.l.bf16 %v1748
      %v1765 = vunpack.c.l.bf16 %v1749
      %v1766 = vunpack.c.l.bf16 %v1750
      %v1767 = vunpack.c.l.bf16 %v1751
      %1768 = vmatprep.subr.mxu0 0.0
      %1769 = vmatpush1.msra.mxu0 %v1767
      %1770 = vmatprep.subr.mxu0 0.0
      %1771 = vmatpush1.msra.mxu0 %v1766
      %1772 = vmatprep.subr.mxu0 0.0
      %1773 = vmatpush1.msra.mxu0 %v1765
      %1774 = vmatprep.subr.mxu0 0.0
      %1775 = vmatpush1.msra.mxu0 %v1764
      %1776 = vmatprep.subr.mxu0 0.0
      %1777 = vmatpush1.msra.mxu0 %v1763
      %1778 = vmatprep.subr.mxu0 0.0
      %1779 = vmatpush1.msra.mxu0 %v1762
      %1780 = vmatprep.subr.mxu0 0.0
      %1781 = vmatpush1.msra.mxu0 %v1761
      %1782 = vmatprep.subr.mxu0 0.0
      %1783 = vmatpush1.msra.mxu0 %v1760
      %1784 = vmatprep.subr.mxu0 0.0
      %1785 = vmatpush1.msra.mxu0 %v1759
      %1786 = vmatprep.subr.mxu0 0.0
      %1787 = vmatpush1.msra.mxu0 %v1758
      %1788 = vmatprep.subr.mxu0 0.0
      %1789 = vmatpush1.msra.mxu0 %v1757
      %1790 = vmatprep.subr.mxu0 0.0
      %1791 = vmatpush1.msra.mxu0 %v1756
      %1792 = vmatprep.subr.mxu0 0.0
      %1793 = vmatpush1.msra.mxu0 %v1755
      %1794 = vmatprep.subr.mxu0 0.0
      %1795 = vmatpush1.msra.mxu0 %v1754
      %1796 = vmatprep.subr.mxu0 0.0
      %1797 = vmatpush1.msra.mxu0 %v1753
      %1798 = vmatprep.subr.mxu0 0.0
      %1799 = vmatpush1.msra.mxu0 %v1752
      %1800 = vmatprep.subr.mxu0 0.0
      %1801 = vmatpush2.msra.mxu0 0.0
      %1802 = vmatprep.subr.mxu0 0.0
      %1803 = vmatpush2.msra.mxu0 0.0
      %1804 = vmatprep.subr.mxu0 0.0
      %1805 = vmatpush2.msra.mxu0 0.0
      %1806 = vmatprep.subr.mxu0 0.0
      %1807 = vmatpush2.msra.mxu0 0.0
      %1808 = vmatprep.subr.mxu0 0.0
      %1809 = vmatpush2.msra.mxu0 0.0
      %1810 = vmatprep.subr.mxu0 0.0
      %1811 = vmatpush2.msra.mxu0 0.0
      %1812 = vmatprep.subr.mxu0 0.0
      %1813 = vmatpush2.msra.mxu0 0.0
      %1814 = vmatprep.subr.mxu0 0.0
      %1815 = vmatpush2.msra.mxu0 0.0
      %1816 = vmatprep.subr.mxu0 0.0
      %1817 = vmatpush2.msra.mxu0 0.0
      %1818 = vmatprep.subr.mxu0 0.0
      %1819 = vmatpush2.msra.mxu0 0.0
      %1820 = vmatprep.subr.mxu0 0.0
      %1821 = vmatpush2.msra.mxu0 0.0
      %1822 = vmatprep.subr.mxu0 0.0
      %1823 = vmatpush2.msra.mxu0 0.0
      %1824 = vmatprep.subr.mxu0 0.0
      %1825 = vmatpush2.msra.mxu0 0.0
      %1826 = vmatprep.subr.mxu0 0.0
      %1827 = vmatpush2.msra.mxu0 0.0
      %1828 = vmatprep.subr.mxu0 0.0
      %1829 = vmatpush2.msra.mxu0 0.0
      %1830 = vmatprep.subr.mxu0 0.0
      %1831 = vmatpush2.msra.mxu0 0.0
      %1832 = vmatprep.mubr.f32.mxu0 0.0
      %1833 = vmatmul.mubr.f32.gmra.mxu0 %v1733
      %v1834 = vpop.f32.mrf.mxu0
      %v1835 = vadd.f32 0.0, %v1834
      %v1836 = vpop.f32.mrf.mxu0
      %1837 = vmatprep.mubr.f32.mxu0 0.0
      %1838 = vmatmul.mubr.f32.gmra.mxu0 %v1734
      %v1839 = vpop.f32.mrf.mxu0
      %v1840 = vadd.f32 0.0, %v1839
      %v1841 = vpop.f32.mrf.mxu0
      %1842 = vdwg.mxu0
      %v1843 = vadd.f32 %v1731, %v1835
      %v1844 = vadd.f32 %v1732, %v1840
      %v1845 = vld [vmem:[#allocation2 + $0x90] sm:$0xff]
      %v1846 = vld [vmem:[#allocation2 + $0x98] sm:$0xff]
      %s1847 = scalar_lea.vmem %s3, 576
      %v1848 = vld [vmem:[%s1847] sm:$0xf]
      %v1849 = vld [vmem:[%s1847 + $0x4] sm:$0xf]
      %v1850 = vld [vmem:[%s1847 + $0x8] sm:$0xf]
      %v1851 = vld [vmem:[%s1847 + $0xc] sm:$0xf]
      %v1852 = vld [vmem:[%s1847 + $0x10] sm:$0xf]
      %v1853 = vld [vmem:[%s1847 + $0x14] sm:$0xf]
      %v1854 = vld [vmem:[%s1847 + $0x18] sm:$0xf]
      %v1855 = vld [vmem:[%s1847 + $0x1c] sm:$0xf]
      %v1856 = vld [vmem:[%s1847 + $0x20] sm:$0xf]
      %v1857 = vld [vmem:[%s1847 + $0x24] sm:$0xf]
      %v1858 = vld [vmem:[%s1847 + $0x28] sm:$0xf]
      %v1859 = vld [vmem:[%s1847 + $0x2c] sm:$0xf]
      %v1860 = vld [vmem:[%s1847 + $0x30] sm:$0xf]
      %v1861 = vld [vmem:[%s1847 + $0x34] sm:$0xf]
      %v1862 = vld [vmem:[%s1847 + $0x38] sm:$0xf]
      %v1863 = vld [vmem:[%s1847 + $0x3c] sm:$0xf]
      %v1864 = vunpack.c.l.bf16 %v1848
      %v1865 = vunpack.c.l.bf16 %v1849
      %v1866 = vunpack.c.l.bf16 %v1850
      %v1867 = vunpack.c.l.bf16 %v1851
      %v1868 = vunpack.c.l.bf16 %v1852
      %v1869 = vunpack.c.l.bf16 %v1853
      %v1870 = vunpack.c.l.bf16 %v1854
      %v1871 = vunpack.c.l.bf16 %v1855
      %v1872 = vunpack.c.l.bf16 %v1856
      %v1873 = vunpack.c.l.bf16 %v1857
      %v1874 = vunpack.c.l.bf16 %v1858
      %v1875 = vunpack.c.l.bf16 %v1859
      %v1876 = vunpack.c.l.bf16 %v1860
      %v1877 = vunpack.c.l.bf16 %v1861
      %v1878 = vunpack.c.l.bf16 %v1862
      %v1879 = vunpack.c.l.bf16 %v1863
      %1880 = vmatprep.subr.mxu0 0.0
      %1881 = vmatpush1.msra.mxu0 %v1879
      %1882 = vmatprep.subr.mxu0 0.0
      %1883 = vmatpush1.msra.mxu0 %v1878
      %1884 = vmatprep.subr.mxu0 0.0
      %1885 = vmatpush1.msra.mxu0 %v1877
      %1886 = vmatprep.subr.mxu0 0.0
      %1887 = vmatpush1.msra.mxu0 %v1876
      %1888 = vmatprep.subr.mxu0 0.0
      %1889 = vmatpush1.msra.mxu0 %v1875
      %1890 = vmatprep.subr.mxu0 0.0
      %1891 = vmatpush1.msra.mxu0 %v1874
      %1892 = vmatprep.subr.mxu0 0.0
      %1893 = vmatpush1.msra.mxu0 %v1873
      %1894 = vmatprep.subr.mxu0 0.0
      %1895 = vmatpush1.msra.mxu0 %v1872
      %1896 = vmatprep.subr.mxu0 0.0
      %1897 = vmatpush1.msra.mxu0 %v1871
      %1898 = vmatprep.subr.mxu0 0.0
      %1899 = vmatpush1.msra.mxu0 %v1870
      %1900 = vmatprep.subr.mxu0 0.0
      %1901 = vmatpush1.msra.mxu0 %v1869
      %1902 = vmatprep.subr.mxu0 0.0
      %1903 = vmatpush1.msra.mxu0 %v1868
      %1904 = vmatprep.subr.mxu0 0.0
      %1905 = vmatpush1.msra.mxu0 %v1867
      %1906 = vmatprep.subr.mxu0 0.0
      %1907 = vmatpush1.msra.mxu0 %v1866
      %1908 = vmatprep.subr.mxu0 0.0
      %1909 = vmatpush1.msra.mxu0 %v1865
      %1910 = vmatprep.subr.mxu0 0.0
      %1911 = vmatpush1.msra.mxu0 %v1864
      %1912 = vmatprep.subr.mxu0 0.0
      %1913 = vmatpush2.msra.mxu0 0.0
      %1914 = vmatprep.subr.mxu0 0.0
      %1915 = vmatpush2.msra.mxu0 0.0
      %1916 = vmatprep.subr.mxu0 0.0
      %1917 = vmatpush2.msra.mxu0 0.0
      %1918 = vmatprep.subr.mxu0 0.0
      %1919 = vmatpush2.msra.mxu0 0.0
      %1920 = vmatprep.subr.mxu0 0.0
      %1921 = vmatpush2.msra.mxu0 0.0
      %1922 = vmatprep.subr.mxu0 0.0
      %1923 = vmatpush2.msra.mxu0 0.0
      %1924 = vmatprep.subr.mxu0 0.0
      %1925 = vmatpush2.msra.mxu0 0.0
      %1926 = vmatprep.subr.mxu0 0.0
      %1927 = vmatpush2.msra.mxu0 0.0
      %1928 = vmatprep.subr.mxu0 0.0
      %1929 = vmatpush2.msra.mxu0 0.0
      %1930 = vmatprep.subr.mxu0 0.0
      %1931 = vmatpush2.msra.mxu0 0.0
      %1932 = vmatprep.subr.mxu0 0.0
      %1933 = vmatpush2.msra.mxu0 0.0
      %1934 = vmatprep.subr.mxu0 0.0
      %1935 = vmatpush2.msra.mxu0 0.0
      %1936 = vmatprep.subr.mxu0 0.0
      %1937 = vmatpush2.msra.mxu0 0.0
      %1938 = vmatprep.subr.mxu0 0.0
      %1939 = vmatpush2.msra.mxu0 0.0
      %1940 = vmatprep.subr.mxu0 0.0
      %1941 = vmatpush2.msra.mxu0 0.0
      %1942 = vmatprep.subr.mxu0 0.0
      %1943 = vmatpush2.msra.mxu0 0.0
      %1944 = vmatprep.mubr.f32.mxu0 0.0
      %1945 = vmatmul.mubr.f32.gmra.mxu0 %v1845
      %v1946 = vpop.f32.mrf.mxu0
      %v1947 = vadd.f32 0.0, %v1946
      %v1948 = vpop.f32.mrf.mxu0
      %1949 = vmatprep.mubr.f32.mxu0 0.0
      %1950 = vmatmul.mubr.f32.gmra.mxu0 %v1846
      %v1951 = vpop.f32.mrf.mxu0
      %v1952 = vadd.f32 0.0, %v1951
      %v1953 = vpop.f32.mrf.mxu0
      %1954 = vdwg.mxu0
      %v1955 = vadd.f32 %v1843, %v1947
      %v1956 = vadd.f32 %v1844, %v1952
      %v1957 = vld [vmem:[#allocation2 + $0xa0] sm:$0xff]
      %v1958 = vld [vmem:[#allocation2 + $0xa8] sm:$0xff]
      %s1959 = scalar_lea.vmem %s3, 640
      %v1960 = vld [vmem:[%s1959] sm:$0xf]
      %v1961 = vld [vmem:[%s1959 + $0x4] sm:$0xf]
      %v1962 = vld [vmem:[%s1959 + $0x8] sm:$0xf]
      %v1963 = vld [vmem:[%s1959 + $0xc] sm:$0xf]
      %v1964 = vld [vmem:[%s1959 + $0x10] sm:$0xf]
      %v1965 = vld [vmem:[%s1959 + $0x14] sm:$0xf]
      %v1966 = vld [vmem:[%s1959 + $0x18] sm:$0xf]
      %v1967 = vld [vmem:[%s1959 + $0x1c] sm:$0xf]
      %v1968 = vld [vmem:[%s1959 + $0x20] sm:$0xf]
      %v1969 = vld [vmem:[%s1959 + $0x24] sm:$0xf]
      %v1970 = vld [vmem:[%s1959 + $0x28] sm:$0xf]
      %v1971 = vld [vmem:[%s1959 + $0x2c] sm:$0xf]
      %v1972 = vld [vmem:[%s1959 + $0x30] sm:$0xf]
      %v1973 = vld [vmem:[%s1959 + $0x34] sm:$0xf]
      %v1974 = vld [vmem:[%s1959 + $0x38] sm:$0xf]
      %v1975 = vld [vmem:[%s1959 + $0x3c] sm:$0xf]
      %v1976 = vunpack.c.l.bf16 %v1960
      %v1977 = vunpack.c.l.bf16 %v1961
      %v1978 = vunpack.c.l.bf16 %v1962
      %v1979 = vunpack.c.l.bf16 %v1963
      %v1980 = vunpack.c.l.bf16 %v1964
      %v1981 = vunpack.c.l.bf16 %v1965
      %v1982 = vunpack.c.l.bf16 %v1966
      %v1983 = vunpack.c.l.bf16 %v1967
      %v1984 = vunpack.c.l.bf16 %v1968
      %v1985 = vunpack.c.l.bf16 %v1969
      %v1986 = vunpack.c.l.bf16 %v1970
      %v1987 = vunpack.c.l.bf16 %v1971
      %v1988 = vunpack.c.l.bf16 %v1972
      %v1989 = vunpack.c.l.bf16 %v1973
      %v1990 = vunpack.c.l.bf16 %v1974
      %v1991 = vunpack.c.l.bf16 %v1975
      %1992 = vmatprep.subr.mxu0 0.0
      %1993 = vmatpush1.msra.mxu0 %v1991
      %1994 = vmatprep.subr.mxu0 0.0
      %1995 = vmatpush1.msra.mxu0 %v1990
      %1996 = vmatprep.subr.mxu0 0.0
      %1997 = vmatpush1.msra.mxu0 %v1989
      %1998 = vmatprep.subr.mxu0 0.0
      %1999 = vmatpush1.msra.mxu0 %v1988
      %2000 = vmatprep.subr.mxu0 0.0
      %2001 = vmatpush1.msra.mxu0 %v1987
      %2002 = vmatprep.subr.mxu0 0.0
      %2003 = vmatpush1.msra.mxu0 %v1986
      %2004 = vmatprep.subr.mxu0 0.0
      %2005 = vmatpush1.msra.mxu0 %v1985
      %2006 = vmatprep.subr.mxu0 0.0
      %2007 = vmatpush1.msra.mxu0 %v1984
      %2008 = vmatprep.subr.mxu0 0.0
      %2009 = vmatpush1.msra.mxu0 %v1983
      %2010 = vmatprep.subr.mxu0 0.0
      %2011 = vmatpush1.msra.mxu0 %v1982
      %2012 = vmatprep.subr.mxu0 0.0
      %2013 = vmatpush1.msra.mxu0 %v1981
      %2014 = vmatprep.subr.mxu0 0.0
      %2015 = vmatpush1.msra.mxu0 %v1980
      %2016 = vmatprep.subr.mxu0 0.0
      %2017 = vmatpush1.msra.mxu0 %v1979
      %2018 = vmatprep.subr.mxu0 0.0
      %2019 = vmatpush1.msra.mxu0 %v1978
      %2020 = vmatprep.subr.mxu0 0.0
      %2021 = vmatpush1.msra.mxu0 %v1977
      %2022 = vmatprep.subr.mxu0 0.0
      %2023 = vmatpush1.msra.mxu0 %v1976
      %2024 = vmatprep.subr.mxu0 0.0
      %2025 = vmatpush2.msra.mxu0 0.0
      %2026 = vmatprep.subr.mxu0 0.0
      %2027 = vmatpush2.msra.mxu0 0.0
      %2028 = vmatprep.subr.mxu0 0.0
      %2029 = vmatpush2.msra.mxu0 0.0
      %2030 = vmatprep.subr.mxu0 0.0
      %2031 = vmatpush2.msra.mxu0 0.0
      %2032 = vmatprep.subr.mxu0 0.0
      %2033 = vmatpush2.msra.mxu0 0.0
      %2034 = vmatprep.subr.mxu0 0.0
      %2035 = vmatpush2.msra.mxu0 0.0
      %2036 = vmatprep.subr.mxu0 0.0
      %2037 = vmatpush2.msra.mxu0 0.0
      %2038 = vmatprep.subr.mxu0 0.0
      %2039 = vmatpush2.msra.mxu0 0.0
      %2040 = vmatprep.subr.mxu0 0.0
      %2041 = vmatpush2.msra.mxu0 0.0
      %2042 = vmatprep.subr.mxu0 0.0
      %2043 = vmatpush2.msra.mxu0 0.0
      %2044 = vmatprep.subr.mxu0 0.0
      %2045 = vmatpush2.msra.mxu0 0.0
      %2046 = vmatprep.subr.mxu0 0.0
      %2047 = vmatpush2.msra.mxu0 0.0
      %2048 = vmatprep.subr.mxu0 0.0
      %2049 = vmatpush2.msra.mxu0 0.0
      %2050 = vmatprep.subr.mxu0 0.0
      %2051 = vmatpush2.msra.mxu0 0.0
      %2052 = vmatprep.subr.mxu0 0.0
      %2053 = vmatpush2.msra.mxu0 0.0
      %2054 = vmatprep.subr.mxu0 0.0
      %2055 = vmatpush2.msra.mxu0 0.0
      %2056 = vmatprep.mubr.f32.mxu0 0.0
      %2057 = vmatmul.mubr.f32.gmra.mxu0 %v1957
      %v2058 = vpop.f32.mrf.mxu0
      %v2059 = vadd.f32 0.0, %v2058
      %v2060 = vpop.f32.mrf.mxu0
      %2061 = vmatprep.mubr.f32.mxu0 0.0
      %2062 = vmatmul.mubr.f32.gmra.mxu0 %v1958
      %v2063 = vpop.f32.mrf.mxu0
      %v2064 = vadd.f32 0.0, %v2063
      %v2065 = vpop.f32.mrf.mxu0
      %2066 = vdwg.mxu0
      %v2067 = vadd.f32 %v1955, %v2059
      %v2068 = vadd.f32 %v1956, %v2064
      %v2069 = vld [vmem:[#allocation2 + $0xb0] sm:$0xff]
      %v2070 = vld [vmem:[#allocation2 + $0xb8] sm:$0xff]
      %s2071 = scalar_lea.vmem %s3, 704
      %v2072 = vld [vmem:[%s2071] sm:$0xf]
      %v2073 = vld [vmem:[%s2071 + $0x4] sm:$0xf]
      %v2074 = vld [vmem:[%s2071 + $0x8] sm:$0xf]
      %v2075 = vld [vmem:[%s2071 + $0xc] sm:$0xf]
      %v2076 = vld [vmem:[%s2071 + $0x10] sm:$0xf]
      %v2077 = vld [vmem:[%s2071 + $0x14] sm:$0xf]
      %v2078 = vld [vmem:[%s2071 + $0x18] sm:$0xf]
      %v2079 = vld [vmem:[%s2071 + $0x1c] sm:$0xf]
      %v2080 = vld [vmem:[%s2071 + $0x20] sm:$0xf]
      %v2081 = vld [vmem:[%s2071 + $0x24] sm:$0xf]
      %v2082 = vld [vmem:[%s2071 + $0x28] sm:$0xf]
      %v2083 = vld [vmem:[%s2071 + $0x2c] sm:$0xf]
      %v2084 = vld [vmem:[%s2071 + $0x30] sm:$0xf]
      %v2085 = vld [vmem:[%s2071 + $0x34] sm:$0xf]
      %v2086 = vld [vmem:[%s2071 + $0x38] sm:$0xf]
      %v2087 = vld [vmem:[%s2071 + $0x3c] sm:$0xf]
      %v2088 = vunpack.c.l.bf16 %v2072
      %v2089 = vunpack.c.l.bf16 %v2073
      %v2090 = vunpack.c.l.bf16 %v2074
      %v2091 = vunpack.c.l.bf16 %v2075
      %v2092 = vunpack.c.l.bf16 %v2076
      %v2093 = vunpack.c.l.bf16 %v2077
      %v2094 = vunpack.c.l.bf16 %v2078
      %v2095 = vunpack.c.l.bf16 %v2079
      %v2096 = vunpack.c.l.bf16 %v2080
      %v2097 = vunpack.c.l.bf16 %v2081
      %v2098 = vunpack.c.l.bf16 %v2082
      %v2099 = vunpack.c.l.bf16 %v2083
      %v2100 = vunpack.c.l.bf16 %v2084
      %v2101 = vunpack.c.l.bf16 %v2085
      %v2102 = vunpack.c.l.bf16 %v2086
      %v2103 = vunpack.c.l.bf16 %v2087
      %2104 = vmatprep.subr.mxu0 0.0
      %2105 = vmatpush1.msra.mxu0 %v2103
      %2106 = vmatprep.subr.mxu0 0.0
      %2107 = vmatpush1.msra.mxu0 %v2102
      %2108 = vmatprep.subr.mxu0 0.0
      %2109 = vmatpush1.msra.mxu0 %v2101
      %2110 = vmatprep.subr.mxu0 0.0
      %2111 = vmatpush1.msra.mxu0 %v2100
      %2112 = vmatprep.subr.mxu0 0.0
      %2113 = vmatpush1.msra.mxu0 %v2099
      %2114 = vmatprep.subr.mxu0 0.0
      %2115 = vmatpush1.msra.mxu0 %v2098
      %2116 = vmatprep.subr.mxu0 0.0
      %2117 = vmatpush1.msra.mxu0 %v2097
      %2118 = vmatprep.subr.mxu0 0.0
      %2119 = vmatpush1.msra.mxu0 %v2096
      %2120 = vmatprep.subr.mxu0 0.0
      %2121 = vmatpush1.msra.mxu0 %v2095
      %2122 = vmatprep.subr.mxu0 0.0
      %2123 = vmatpush1.msra.mxu0 %v2094
      %2124 = vmatprep.subr.mxu0 0.0
      %2125 = vmatpush1.msra.mxu0 %v2093
      %2126 = vmatprep.subr.mxu0 0.0
      %2127 = vmatpush1.msra.mxu0 %v2092
      %2128 = vmatprep.subr.mxu0 0.0
      %2129 = vmatpush1.msra.mxu0 %v2091
      %2130 = vmatprep.subr.mxu0 0.0
      %2131 = vmatpush1.msra.mxu0 %v2090
      %2132 = vmatprep.subr.mxu0 0.0
      %2133 = vmatpush1.msra.mxu0 %v2089
      %2134 = vmatprep.subr.mxu0 0.0
      %2135 = vmatpush1.msra.mxu0 %v2088
      %2136 = vmatprep.subr.mxu0 0.0
      %2137 = vmatpush2.msra.mxu0 0.0
      %2138 = vmatprep.subr.mxu0 0.0
      %2139 = vmatpush2.msra.mxu0 0.0
      %2140 = vmatprep.subr.mxu0 0.0
      %2141 = vmatpush2.msra.mxu0 0.0
      %2142 = vmatprep.subr.mxu0 0.0
      %2143 = vmatpush2.msra.mxu0 0.0
      %2144 = vmatprep.subr.mxu0 0.0
      %2145 = vmatpush2.msra.mxu0 0.0
      %2146 = vmatprep.subr.mxu0 0.0
      %2147 = vmatpush2.msra.mxu0 0.0
      %2148 = vmatprep.subr.mxu0 0.0
      %2149 = vmatpush2.msra.mxu0 0.0
      %2150 = vmatprep.subr.mxu0 0.0
      %2151 = vmatpush2.msra.mxu0 0.0
      %2152 = vmatprep.subr.mxu0 0.0
      %2153 = vmatpush2.msra.mxu0 0.0
      %2154 = vmatprep.subr.mxu0 0.0
      %2155 = vmatpush2.msra.mxu0 0.0
      %2156 = vmatprep.subr.mxu0 0.0
      %2157 = vmatpush2.msra.mxu0 0.0
      %2158 = vmatprep.subr.mxu0 0.0
      %2159 = vmatpush2.msra.mxu0 0.0
      %2160 = vmatprep.subr.mxu0 0.0
      %2161 = vmatpush2.msra.mxu0 0.0
      %2162 = vmatprep.subr.mxu0 0.0
      %2163 = vmatpush2.msra.mxu0 0.0
      %2164 = vmatprep.subr.mxu0 0.0
      %2165 = vmatpush2.msra.mxu0 0.0
      %2166 = vmatprep.subr.mxu0 0.0
      %2167 = vmatpush2.msra.mxu0 0.0
      %2168 = vmatprep.mubr.f32.mxu0 0.0
      %2169 = vmatmul.mubr.f32.gmra.mxu0 %v2069
      %v2170 = vpop.f32.mrf.mxu0
      %v2171 = vadd.f32 0.0, %v2170
      %v2172 = vpop.f32.mrf.mxu0
      %2173 = vmatprep.mubr.f32.mxu0 0.0
      %2174 = vmatmul.mubr.f32.gmra.mxu0 %v2070
      %v2175 = vpop.f32.mrf.mxu0
      %v2176 = vadd.f32 0.0, %v2175
      %v2177 = vpop.f32.mrf.mxu0
      %2178 = vdwg.mxu0
      %v2179 = vadd.f32 %v2067, %v2171
      %v2180 = vadd.f32 %v2068, %v2176
      %v2181 = vld [vmem:[#allocation2 + $0xc0] sm:$0xff]
      %v2182 = vld [vmem:[#allocation2 + $0xc8] sm:$0xff]
      %s2183 = scalar_lea.vmem %s3, 768
      %v2184 = vld [vmem:[%s2183] sm:$0xf]
      %v2185 = vld [vmem:[%s2183 + $0x4] sm:$0xf]
      %v2186 = vld [vmem:[%s2183 + $0x8] sm:$0xf]
      %v2187 = vld [vmem:[%s2183 + $0xc] sm:$0xf]
      %v2188 = vld [vmem:[%s2183 + $0x10] sm:$0xf]
      %v2189 = vld [vmem:[%s2183 + $0x14] sm:$0xf]
      %v2190 = vld [vmem:[%s2183 + $0x18] sm:$0xf]
      %v2191 = vld [vmem:[%s2183 + $0x1c] sm:$0xf]
      %v2192 = vld [vmem:[%s2183 + $0x20] sm:$0xf]
      %v2193 = vld [vmem:[%s2183 + $0x24] sm:$0xf]
      %v2194 = vld [vmem:[%s2183 + $0x28] sm:$0xf]
      %v2195 = vld [vmem:[%s2183 + $0x2c] sm:$0xf]
      %v2196 = vld [vmem:[%s2183 + $0x30] sm:$0xf]
      %v2197 = vld [vmem:[%s2183 + $0x34] sm:$0xf]
      %v2198 = vld [vmem:[%s2183 + $0x38] sm:$0xf]
      %v2199 = vld [vmem:[%s2183 + $0x3c] sm:$0xf]
      %v2200 = vunpack.c.l.bf16 %v2184
      %v2201 = vunpack.c.l.bf16 %v2185
      %v2202 = vunpack.c.l.bf16 %v2186
      %v2203 = vunpack.c.l.bf16 %v2187
      %v2204 = vunpack.c.l.bf16 %v2188
      %v2205 = vunpack.c.l.bf16 %v2189
      %v2206 = vunpack.c.l.bf16 %v2190
      %v2207 = vunpack.c.l.bf16 %v2191
      %v2208 = vunpack.c.l.bf16 %v2192
      %v2209 = vunpack.c.l.bf16 %v2193
      %v2210 = vunpack.c.l.bf16 %v2194
      %v2211 = vunpack.c.l.bf16 %v2195
      %v2212 = vunpack.c.l.bf16 %v2196
      %v2213 = vunpack.c.l.bf16 %v2197
      %v2214 = vunpack.c.l.bf16 %v2198
      %v2215 = vunpack.c.l.bf16 %v2199
      %2216 = vmatprep.subr.mxu0 0.0
      %2217 = vmatpush1.msra.mxu0 %v2215
      %2218 = vmatprep.subr.mxu0 0.0
      %2219 = vmatpush1.msra.mxu0 %v2214
      %2220 = vmatprep.subr.mxu0 0.0
      %2221 = vmatpush1.msra.mxu0 %v2213
      %2222 = vmatprep.subr.mxu0 0.0
      %2223 = vmatpush1.msra.mxu0 %v2212
      %2224 = vmatprep.subr.mxu0 0.0
      %2225 = vmatpush1.msra.mxu0 %v2211
      %2226 = vmatprep.subr.mxu0 0.0
      %2227 = vmatpush1.msra.mxu0 %v2210
      %2228 = vmatprep.subr.mxu0 0.0
      %2229 = vmatpush1.msra.mxu0 %v2209
      %2230 = vmatprep.subr.mxu0 0.0
      %2231 = vmatpush1.msra.mxu0 %v2208
      %2232 = vmatprep.subr.mxu0 0.0
      %2233 = vmatpush1.msra.mxu0 %v2207
      %2234 = vmatprep.subr.mxu0 0.0
      %2235 = vmatpush1.msra.mxu0 %v2206
      %2236 = vmatprep.subr.mxu0 0.0
      %2237 = vmatpush1.msra.mxu0 %v2205
      %2238 = vmatprep.subr.mxu0 0.0
      %2239 = vmatpush1.msra.mxu0 %v2204
      %2240 = vmatprep.subr.mxu0 0.0
      %2241 = vmatpush1.msra.mxu0 %v2203
      %2242 = vmatprep.subr.mxu0 0.0
      %2243 = vmatpush1.msra.mxu0 %v2202
      %2244 = vmatprep.subr.mxu0 0.0
      %2245 = vmatpush1.msra.mxu0 %v2201
      %2246 = vmatprep.subr.mxu0 0.0
      %2247 = vmatpush1.msra.mxu0 %v2200
      %2248 = vmatprep.subr.mxu0 0.0
      %2249 = vmatpush2.msra.mxu0 0.0
      %2250 = vmatprep.subr.mxu0 0.0
      %2251 = vmatpush2.msra.mxu0 0.0
      %2252 = vmatprep.subr.mxu0 0.0
      %2253 = vmatpush2.msra.mxu0 0.0
      %2254 = vmatprep.subr.mxu0 0.0
      %2255 = vmatpush2.msra.mxu0 0.0
      %2256 = vmatprep.subr.mxu0 0.0
      %2257 = vmatpush2.msra.mxu0 0.0
      %2258 = vmatprep.subr.mxu0 0.0
      %2259 = vmatpush2.msra.mxu0 0.0
      %2260 = vmatprep.subr.mxu0 0.0
      %2261 = vmatpush2.msra.mxu0 0.0
      %2262 = vmatprep.subr.mxu0 0.0
      %2263 = vmatpush2.msra.mxu0 0.0
      %2264 = vmatprep.subr.mxu0 0.0
      %2265 = vmatpush2.msra.mxu0 0.0
      %2266 = vmatprep.subr.mxu0 0.0
      %2267 = vmatpush2.msra.mxu0 0.0
      %2268 = vmatprep.subr.mxu0 0.0
      %2269 = vmatpush2.msra.mxu0 0.0
      %2270 = vmatprep.subr.mxu0 0.0
      %2271 = vmatpush2.msra.mxu0 0.0
      %2272 = vmatprep.subr.mxu0 0.0
      %2273 = vmatpush2.msra.mxu0 0.0
      %2274 = vmatprep.subr.mxu0 0.0
      %2275 = vmatpush2.msra.mxu0 0.0
      %2276 = vmatprep.subr.mxu0 0.0
      %2277 = vmatpush2.msra.mxu0 0.0
      %2278 = vmatprep.subr.mxu0 0.0
      %2279 = vmatpush2.msra.mxu0 0.0
      %2280 = vmatprep.mubr.f32.mxu0 0.0
      %2281 = vmatmul.mubr.f32.gmra.mxu0 %v2181
      %v2282 = vpop.f32.mrf.mxu0
      %v2283 = vadd.f32 0.0, %v2282
      %v2284 = vpop.f32.mrf.mxu0
      %2285 = vmatprep.mubr.f32.mxu0 0.0
      %2286 = vmatmul.mubr.f32.gmra.mxu0 %v2182
      %v2287 = vpop.f32.mrf.mxu0
      %v2288 = vadd.f32 0.0, %v2287
      %v2289 = vpop.f32.mrf.mxu0
      %2290 = vdwg.mxu0
      %v2291 = vadd.f32 %v2179, %v2283
      %v2292 = vadd.f32 %v2180, %v2288
      %v2293 = vld [vmem:[#allocation2 + $0xd0] sm:$0xff]
      %v2294 = vld [vmem:[#allocation2 + $0xd8] sm:$0xff]
      %s2295 = scalar_lea.vmem %s3, 832
      %v2296 = vld [vmem:[%s2295] sm:$0xf]
      %v2297 = vld [vmem:[%s2295 + $0x4] sm:$0xf]
      %v2298 = vld [vmem:[%s2295 + $0x8] sm:$0xf]
      %v2299 = vld [vmem:[%s2295 + $0xc] sm:$0xf]
      %v2300 = vld [vmem:[%s2295 + $0x10] sm:$0xf]
      %v2301 = vld [vmem:[%s2295 + $0x14] sm:$0xf]
      %v2302 = vld [vmem:[%s2295 + $0x18] sm:$0xf]
      %v2303 = vld [vmem:[%s2295 + $0x1c] sm:$0xf]
      %v2304 = vld [vmem:[%s2295 + $0x20] sm:$0xf]
      %v2305 = vld [vmem:[%s2295 + $0x24] sm:$0xf]
      %v2306 = vld [vmem:[%s2295 + $0x28] sm:$0xf]
      %v2307 = vld [vmem:[%s2295 + $0x2c] sm:$0xf]
      %v2308 = vld [vmem:[%s2295 + $0x30] sm:$0xf]
      %v2309 = vld [vmem:[%s2295 + $0x34] sm:$0xf]
      %v2310 = vld [vmem:[%s2295 + $0x38] sm:$0xf]
      %v2311 = vld [vmem:[%s2295 + $0x3c] sm:$0xf]
      %v2312 = vunpack.c.l.bf16 %v2296
      %v2313 = vunpack.c.l.bf16 %v2297
      %v2314 = vunpack.c.l.bf16 %v2298
      %v2315 = vunpack.c.l.bf16 %v2299
      %v2316 = vunpack.c.l.bf16 %v2300
      %v2317 = vunpack.c.l.bf16 %v2301
      %v2318 = vunpack.c.l.bf16 %v2302
      %v2319 = vunpack.c.l.bf16 %v2303
      %v2320 = vunpack.c.l.bf16 %v2304
      %v2321 = vunpack.c.l.bf16 %v2305
      %v2322 = vunpack.c.l.bf16 %v2306
      %v2323 = vunpack.c.l.bf16 %v2307
      %v2324 = vunpack.c.l.bf16 %v2308
      %v2325 = vunpack.c.l.bf16 %v2309
      %v2326 = vunpack.c.l.bf16 %v2310
      %v2327 = vunpack.c.l.bf16 %v2311
      %2328 = vmatprep.subr.mxu0 0.0
      %2329 = vmatpush1.msra.mxu0 %v2327
      %2330 = vmatprep.subr.mxu0 0.0
      %2331 = vmatpush1.msra.mxu0 %v2326
      %2332 = vmatprep.subr.mxu0 0.0
      %2333 = vmatpush1.msra.mxu0 %v2325
      %2334 = vmatprep.subr.mxu0 0.0
      %2335 = vmatpush1.msra.mxu0 %v2324
      %2336 = vmatprep.subr.mxu0 0.0
      %2337 = vmatpush1.msra.mxu0 %v2323
      %2338 = vmatprep.subr.mxu0 0.0
      %2339 = vmatpush1.msra.mxu0 %v2322
      %2340 = vmatprep.subr.mxu0 0.0
      %2341 = vmatpush1.msra.mxu0 %v2321
      %2342 = vmatprep.subr.mxu0 0.0
      %2343 = vmatpush1.msra.mxu0 %v2320
      %2344 = vmatprep.subr.mxu0 0.0
      %2345 = vmatpush1.msra.mxu0 %v2319
      %2346 = vmatprep.subr.mxu0 0.0
      %2347 = vmatpush1.msra.mxu0 %v2318
      %2348 = vmatprep.subr.mxu0 0.0
      %2349 = vmatpush1.msra.mxu0 %v2317
      %2350 = vmatprep.subr.mxu0 0.0
      %2351 = vmatpush1.msra.mxu0 %v2316
      %2352 = vmatprep.subr.mxu0 0.0
      %2353 = vmatpush1.msra.mxu0 %v2315
      %2354 = vmatprep.subr.mxu0 0.0
      %2355 = vmatpush1.msra.mxu0 %v2314
      %2356 = vmatprep.subr.mxu0 0.0
      %2357 = vmatpush1.msra.mxu0 %v2313
      %2358 = vmatprep.subr.mxu0 0.0
      %2359 = vmatpush1.msra.mxu0 %v2312
      %2360 = vmatprep.subr.mxu0 0.0
      %2361 = vmatpush2.msra.mxu0 0.0
      %2362 = vmatprep.subr.mxu0 0.0
      %2363 = vmatpush2.msra.mxu0 0.0
      %2364 = vmatprep.subr.mxu0 0.0
      %2365 = vmatpush2.msra.mxu0 0.0
      %2366 = vmatprep.subr.mxu0 0.0
      %2367 = vmatpush2.msra.mxu0 0.0
      %2368 = vmatprep.subr.mxu0 0.0
      %2369 = vmatpush2.msra.mxu0 0.0
      %2370 = vmatprep.subr.mxu0 0.0
      %2371 = vmatpush2.msra.mxu0 0.0
      %2372 = vmatprep.subr.mxu0 0.0
      %2373 = vmatpush2.msra.mxu0 0.0
      %2374 = vmatprep.subr.mxu0 0.0
      %2375 = vmatpush2.msra.mxu0 0.0
      %2376 = vmatprep.subr.mxu0 0.0
      %2377 = vmatpush2.msra.mxu0 0.0
      %2378 = vmatprep.subr.mxu0 0.0
      %2379 = vmatpush2.msra.mxu0 0.0
      %2380 = vmatprep.subr.mxu0 0.0
      %2381 = vmatpush2.msra.mxu0 0.0
      %2382 = vmatprep.subr.mxu0 0.0
      %2383 = vmatpush2.msra.mxu0 0.0
      %2384 = vmatprep.subr.mxu0 0.0
      %2385 = vmatpush2.msra.mxu0 0.0
      %2386 = vmatprep.subr.mxu0 0.0
      %2387 = vmatpush2.msra.mxu0 0.0
      %2388 = vmatprep.subr.mxu0 0.0
      %2389 = vmatpush2.msra.mxu0 0.0
      %2390 = vmatprep.subr.mxu0 0.0
      %2391 = vmatpush2.msra.mxu0 0.0
      %2392 = vmatprep.mubr.f32.mxu0 0.0
      %2393 = vmatmul.mubr.f32.gmra.mxu0 %v2293
      %v2394 = vpop.f32.mrf.mxu0
      %v2395 = vadd.f32 0.0, %v2394
      %v2396 = vpop.f32.mrf.mxu0
      %2397 = vmatprep.mubr.f32.mxu0 0.0
      %2398 = vmatmul.mubr.f32.gmra.mxu0 %v2294
      %v2399 = vpop.f32.mrf.mxu0
      %v2400 = vadd.f32 0.0, %v2399
      %v2401 = vpop.f32.mrf.mxu0
      %2402 = vdwg.mxu0
      %v2403 = vadd.f32 %v2291, %v2395
      %v2404 = vadd.f32 %v2292, %v2400
      %v2405 = vld [vmem:[#allocation2 + $0xe0] sm:$0xff]
      %v2406 = vld [vmem:[#allocation2 + $0xe8] sm:$0xff]
      %s2407 = scalar_lea.vmem %s3, 896
      %v2408 = vld [vmem:[%s2407] sm:$0xf]
      %v2409 = vld [vmem:[%s2407 + $0x4] sm:$0xf]
      %v2410 = vld [vmem:[%s2407 + $0x8] sm:$0xf]
      %v2411 = vld [vmem:[%s2407 + $0xc] sm:$0xf]
      %v2412 = vld [vmem:[%s2407 + $0x10] sm:$0xf]
      %v2413 = vld [vmem:[%s2407 + $0x14] sm:$0xf]
      %v2414 = vld [vmem:[%s2407 + $0x18] sm:$0xf]
      %v2415 = vld [vmem:[%s2407 + $0x1c] sm:$0xf]
      %v2416 = vld [vmem:[%s2407 + $0x20] sm:$0xf]
      %v2417 = vld [vmem:[%s2407 + $0x24] sm:$0xf]
      %v2418 = vld [vmem:[%s2407 + $0x28] sm:$0xf]
      %v2419 = vld [vmem:[%s2407 + $0x2c] sm:$0xf]
      %v2420 = vld [vmem:[%s2407 + $0x30] sm:$0xf]
      %v2421 = vld [vmem:[%s2407 + $0x34] sm:$0xf]
      %v2422 = vld [vmem:[%s2407 + $0x38] sm:$0xf]
      %v2423 = vld [vmem:[%s2407 + $0x3c] sm:$0xf]
      %v2424 = vunpack.c.l.bf16 %v2408
      %v2425 = vunpack.c.l.bf16 %v2409
      %v2426 = vunpack.c.l.bf16 %v2410
      %v2427 = vunpack.c.l.bf16 %v2411
      %v2428 = vunpack.c.l.bf16 %v2412
      %v2429 = vunpack.c.l.bf16 %v2413
      %v2430 = vunpack.c.l.bf16 %v2414
      %v2431 = vunpack.c.l.bf16 %v2415
      %v2432 = vunpack.c.l.bf16 %v2416
      %v2433 = vunpack.c.l.bf16 %v2417
      %v2434 = vunpack.c.l.bf16 %v2418
      %v2435 = vunpack.c.l.bf16 %v2419
      %v2436 = vunpack.c.l.bf16 %v2420
      %v2437 = vunpack.c.l.bf16 %v2421
      %v2438 = vunpack.c.l.bf16 %v2422
      %v2439 = vunpack.c.l.bf16 %v2423
      %2440 = vmatprep.subr.mxu0 0.0
      %2441 = vmatpush1.msra.mxu0 %v2439
      %2442 = vmatprep.subr.mxu0 0.0
      %2443 = vmatpush1.msra.mxu0 %v2438
      %2444 = vmatprep.subr.mxu0 0.0
      %2445 = vmatpush1.msra.mxu0 %v2437
      %2446 = vmatprep.subr.mxu0 0.0
      %2447 = vmatpush1.msra.mxu0 %v2436
      %2448 = vmatprep.subr.mxu0 0.0
      %2449 = vmatpush1.msra.mxu0 %v2435
      %2450 = vmatprep.subr.mxu0 0.0
      %2451 = vmatpush1.msra.mxu0 %v2434
      %2452 = vmatprep.subr.mxu0 0.0
      %2453 = vmatpush1.msra.mxu0 %v2433
      %2454 = vmatprep.subr.mxu0 0.0
      %2455 = vmatpush1.msra.mxu0 %v2432
      %2456 = vmatprep.subr.mxu0 0.0
      %2457 = vmatpush1.msra.mxu0 %v2431
      %2458 = vmatprep.subr.mxu0 0.0
      %2459 = vmatpush1.msra.mxu0 %v2430
      %2460 = vmatprep.subr.mxu0 0.0
      %2461 = vmatpush1.msra.mxu0 %v2429
      %2462 = vmatprep.subr.mxu0 0.0
      %2463 = vmatpush1.msra.mxu0 %v2428
      %2464 = vmatprep.subr.mxu0 0.0
      %2465 = vmatpush1.msra.mxu0 %v2427
      %2466 = vmatprep.subr.mxu0 0.0
      %2467 = vmatpush1.msra.mxu0 %v2426
      %2468 = vmatprep.subr.mxu0 0.0
      %2469 = vmatpush1.msra.mxu0 %v2425
      %2470 = vmatprep.subr.mxu0 0.0
      %2471 = vmatpush1.msra.mxu0 %v2424
      %2472 = vmatprep.subr.mxu0 0.0
      %2473 = vmatpush2.msra.mxu0 0.0
      %2474 = vmatprep.subr.mxu0 0.0
      %2475 = vmatpush2.msra.mxu0 0.0
      %2476 = vmatprep.subr.mxu0 0.0
      %2477 = vmatpush2.msra.mxu0 0.0
      %2478 = vmatprep.subr.mxu0 0.0
      %2479 = vmatpush2.msra.mxu0 0.0
      %2480 = vmatprep.subr.mxu0 0.0
      %2481 = vmatpush2.msra.mxu0 0.0
      %2482 = vmatprep.subr.mxu0 0.0
      %2483 = vmatpush2.msra.mxu0 0.0
      %2484 = vmatprep.subr.mxu0 0.0
      %2485 = vmatpush2.msra.mxu0 0.0
      %2486 = vmatprep.subr.mxu0 0.0
      %2487 = vmatpush2.msra.mxu0 0.0
      %2488 = vmatprep.subr.mxu0 0.0
      %2489 = vmatpush2.msra.mxu0 0.0
      %2490 = vmatprep.subr.mxu0 0.0
      %2491 = vmatpush2.msra.mxu0 0.0
      %2492 = vmatprep.subr.mxu0 0.0
      %2493 = vmatpush2.msra.mxu0 0.0
      %2494 = vmatprep.subr.mxu0 0.0
      %2495 = vmatpush2.msra.mxu0 0.0
      %2496 = vmatprep.subr.mxu0 0.0
      %2497 = vmatpush2.msra.mxu0 0.0
      %2498 = vmatprep.subr.mxu0 0.0
      %2499 = vmatpush2.msra.mxu0 0.0
      %2500 = vmatprep.subr.mxu0 0.0
      %2501 = vmatpush2.msra.mxu0 0.0
      %2502 = vmatprep.subr.mxu0 0.0
      %2503 = vmatpush2.msra.mxu0 0.0
      %2504 = vmatprep.mubr.f32.mxu0 0.0
      %2505 = vmatmul.mubr.f32.gmra.mxu0 %v2405
      %v2506 = vpop.f32.mrf.mxu0
      %v2507 = vadd.f32 0.0, %v2506
      %v2508 = vpop.f32.mrf.mxu0
      %2509 = vmatprep.mubr.f32.mxu0 0.0
      %2510 = vmatmul.mubr.f32.gmra.mxu0 %v2406
      %v2511 = vpop.f32.mrf.mxu0
      %v2512 = vadd.f32 0.0, %v2511
      %v2513 = vpop.f32.mrf.mxu0
      %2514 = vdwg.mxu0
      %v2515 = vadd.f32 %v2403, %v2507
      %v2516 = vadd.f32 %v2404, %v2512
      %v2517 = vld [vmem:[#allocation2 + $0xf0] sm:$0xff]
      %v2518 = vld [vmem:[#allocation2 + $0xf8] sm:$0xff]
      %s2519 = scalar_lea.vmem %s3, 960
      %v2520 = vld [vmem:[%s2519] sm:$0xf]
      %v2521 = vld [vmem:[%s2519 + $0x4] sm:$0xf]
      %v2522 = vld [vmem:[%s2519 + $0x8] sm:$0xf]
      %v2523 = vld [vmem:[%s2519 + $0xc] sm:$0xf]
      %v2524 = vld [vmem:[%s2519 + $0x10] sm:$0xf]
      %v2525 = vld [vmem:[%s2519 + $0x14] sm:$0xf]
      %v2526 = vld [vmem:[%s2519 + $0x18] sm:$0xf]
      %v2527 = vld [vmem:[%s2519 + $0x1c] sm:$0xf]
      %v2528 = vld [vmem:[%s2519 + $0x20] sm:$0xf]
      %v2529 = vld [vmem:[%s2519 + $0x24] sm:$0xf]
      %v2530 = vld [vmem:[%s2519 + $0x28] sm:$0xf]
      %v2531 = vld [vmem:[%s2519 + $0x2c] sm:$0xf]
      %v2532 = vld [vmem:[%s2519 + $0x30] sm:$0xf]
      %v2533 = vld [vmem:[%s2519 + $0x34] sm:$0xf]
      %v2534 = vld [vmem:[%s2519 + $0x38] sm:$0xf]
      %v2535 = vld [vmem:[%s2519 + $0x3c] sm:$0xf]
      %v2536 = vunpack.c.l.bf16 %v2520
      %v2537 = vunpack.c.l.bf16 %v2521
      %v2538 = vunpack.c.l.bf16 %v2522
      %v2539 = vunpack.c.l.bf16 %v2523
      %v2540 = vunpack.c.l.bf16 %v2524
      %v2541 = vunpack.c.l.bf16 %v2525
      %v2542 = vunpack.c.l.bf16 %v2526
      %v2543 = vunpack.c.l.bf16 %v2527
      %v2544 = vunpack.c.l.bf16 %v2528
      %v2545 = vunpack.c.l.bf16 %v2529
      %v2546 = vunpack.c.l.bf16 %v2530
      %v2547 = vunpack.c.l.bf16 %v2531
      %v2548 = vunpack.c.l.bf16 %v2532
      %v2549 = vunpack.c.l.bf16 %v2533
      %v2550 = vunpack.c.l.bf16 %v2534
      %v2551 = vunpack.c.l.bf16 %v2535
      %2552 = vmatprep.subr.mxu0 0.0
      %2553 = vmatpush1.msra.mxu0 %v2551
      %2554 = vmatprep.subr.mxu0 0.0
      %2555 = vmatpush1.msra.mxu0 %v2550
      %2556 = vmatprep.subr.mxu0 0.0
      %2557 = vmatpush1.msra.mxu0 %v2549
      %2558 = vmatprep.subr.mxu0 0.0
      %2559 = vmatpush1.msra.mxu0 %v2548
      %2560 = vmatprep.subr.mxu0 0.0
      %2561 = vmatpush1.msra.mxu0 %v2547
      %2562 = vmatprep.subr.mxu0 0.0
      %2563 = vmatpush1.msra.mxu0 %v2546
      %2564 = vmatprep.subr.mxu0 0.0
      %2565 = vmatpush1.msra.mxu0 %v2545
      %2566 = vmatprep.subr.mxu0 0.0
      %2567 = vmatpush1.msra.mxu0 %v2544
      %2568 = vmatprep.subr.mxu0 0.0
      %2569 = vmatpush1.msra.mxu0 %v2543
      %2570 = vmatprep.subr.mxu0 0.0
      %2571 = vmatpush1.msra.mxu0 %v2542
      %2572 = vmatprep.subr.mxu0 0.0
      %2573 = vmatpush1.msra.mxu0 %v2541
      %2574 = vmatprep.subr.mxu0 0.0
      %2575 = vmatpush1.msra.mxu0 %v2540
      %2576 = vmatprep.subr.mxu0 0.0
      %2577 = vmatpush1.msra.mxu0 %v2539
      %2578 = vmatprep.subr.mxu0 0.0
      %2579 = vmatpush1.msra.mxu0 %v2538
      %2580 = vmatprep.subr.mxu0 0.0
      %2581 = vmatpush1.msra.mxu0 %v2537
      %2582 = vmatprep.subr.mxu0 0.0
      %2583 = vmatpush1.msra.mxu0 %v2536
      %2584 = vmatprep.subr.mxu0 0.0
      %2585 = vmatpush2.msra.mxu0 0.0
      %2586 = vmatprep.subr.mxu0 0.0
      %2587 = vmatpush2.msra.mxu0 0.0
      %2588 = vmatprep.subr.mxu0 0.0
      %2589 = vmatpush2.msra.mxu0 0.0
      %2590 = vmatprep.subr.mxu0 0.0
      %2591 = vmatpush2.msra.mxu0 0.0
      %2592 = vmatprep.subr.mxu0 0.0
      %2593 = vmatpush2.msra.mxu0 0.0
      %2594 = vmatprep.subr.mxu0 0.0
      %2595 = vmatpush2.msra.mxu0 0.0
      %2596 = vmatprep.subr.mxu0 0.0
      %2597 = vmatpush2.msra.mxu0 0.0
      %2598 = vmatprep.subr.mxu0 0.0
      %2599 = vmatpush2.msra.mxu0 0.0
      %2600 = vmatprep.subr.mxu0 0.0
      %2601 = vmatpush2.msra.mxu0 0.0
      %2602 = vmatprep.subr.mxu0 0.0
      %2603 = vmatpush2.msra.mxu0 0.0
      %2604 = vmatprep.subr.mxu0 0.0
      %2605 = vmatpush2.msra.mxu0 0.0
      %2606 = vmatprep.subr.mxu0 0.0
      %2607 = vmatpush2.msra.mxu0 0.0
      %2608 = vmatprep.subr.mxu0 0.0
      %2609 = vmatpush2.msra.mxu0 0.0
      %2610 = vmatprep.subr.mxu0 0.0
      %2611 = vmatpush2.msra.mxu0 0.0
      %2612 = vmatprep.subr.mxu0 0.0
      %2613 = vmatpush2.msra.mxu0 0.0
      %2614 = vmatprep.subr.mxu0 0.0
      %2615 = vmatpush2.msra.mxu0 0.0
      %2616 = vmatprep.mubr.f32.mxu0 0.0
      %2617 = vmatmul.mubr.f32.gmra.mxu0 %v2517
      %v2618 = vpop.f32.mrf.mxu0
      %v2619 = vadd.f32 0.0, %v2618
      %v2620 = vpop.f32.mrf.mxu0
      %2621 = vmatprep.mubr.f32.mxu0 0.0
      %2622 = vmatmul.mubr.f32.gmra.mxu0 %v2518
      %v2623 = vpop.f32.mrf.mxu0
      %v2624 = vadd.f32 0.0, %v2623
      %v2625 = vpop.f32.mrf.mxu0
      %2626 = vdwg.mxu0
      %v2627 = vadd.f32 %v2515, %v2619
      %v2628 = vadd.f32 %v2516, %v2624
      %vm2629 = vcmask 261120
      %v2630 = vsel %vm2629, %v2627, 0.0
      %2631 = vadd.xlane.f32.xlu0 %v2630
      %v2632 = vpop.xlane.xlu0 %2631
      %v2633 = vsel %vm2629, %v2628, 0.0
      %2634 = vadd.xlane.f32.xlu0 %v2633
      %v2635 = vpop.xlane.xlu0 %2634
      %v2636 = vmul.f32 %v2632, 0.03125
      %v2637 = vmul.f32 %v2635, 0.03125
      %v2638 = vmul.f32 %v2627, %v2627
      %v2639 = vmul.f32 %v2628, %v2628
      %v2640 = vsel %vm2629, %v2638, 0.0
      %2641 = vadd.xlane.f32.xlu0 %v2640
      %v2642 = vpop.xlane.xlu0 %2641
      %v2643 = vsel %vm2629, %v2639, 0.0
      %2644 = vadd.xlane.f32.xlu0 %v2643
      %v2645 = vpop.xlane.xlu0 %2644
      %v2646 = vmul.f32 %v2642, 0.03125
      %v2647 = vmul.f32 %v2645, 0.03125
      %v2648 = vmul.f32 %v2636, %v2636
      %v2649 = vmul.f32 %v2637, %v2637
      %v2650 = vsub.f32 %v2646, %v2648
      %v2651 = vsub.f32 %v2647, %v2649
      %v2652 = vsub.f32 %v2627, %v2636
      %v2653 = vsub.f32 %v2628, %v2637
      %v2654 = vadd.f32 %v2650, 1e-05
      %v2655 = vadd.f32 %v2651, 1e-05
      %v2656 = vrsqrt.pop %v2654
      %v2657 = vrsqrt.pop %v2655
      %v2658 = vmul.f32 %v2652, %v2656
      %v2659 = vmul.f32 %v2653, %v2657
      %v2660 = vld [vmem:[%s358] sm:$0xff]
      %v2661 = vld [vmem:[%s358 + $0x8] sm:$0xff]
      %2663 = vset.pattern.permute.xlu0 0
      %2664 = vperm.xlu0 %2663, %v2660
      %v2665 = vpop.permute.xlu0 %2664
      %2668 = vset.pattern.permute.xlu0 0
      %2669 = vperm.xlu0 %2668, %v2661
      %v2670 = vpop.permute.xlu0 %2669
      %v2672 = vmul.f32 %v2658, %v2665
      %v2673 = vmul.f32 %v2659, %v2670
      %v2674 = vld [vmem:[%s363] sm:$0xff]
      %v2675 = vld [vmem:[%s363 + $0x8] sm:$0xff]
      %2677 = vset.pattern.permute.xlu0 0
      %2678 = vperm.xlu0 %2677, %v2674
      %v2679 = vpop.permute.xlu0 %2678
      %2682 = vset.pattern.permute.xlu0 0
      %2683 = vperm.xlu0 %2682, %v2675
      %v2684 = vpop.permute.xlu0 %2683
      %v2686 = vadd.f32 %v2672, %v2679
      %v2687 = vadd.f32 %v2673, %v2684
      %vm2688 = vcmp.gt.f32.partialorder %v2686, 0.0
      %vm2689 = vcmp.gt.f32.partialorder %v2687, 0.0
      %v2690 = vmul.f32 %v2686, 0.2
      %v2691 = vmul.f32 %v2687, 0.2
      %v2692 = vsel %vm2688, %v2686, %v2690
      %v2693 = vsel %vm2689, %v2687, %v2691
      %v2694 = vld [vmem:[%s368] sm:$0xff]
      %v2695 = vld [vmem:[%s368 + $0x8] sm:$0xff]
      %v2696 = vmul.f32 %v2692, %v2694
      %v2697 = vmul.f32 %v2693, %v2695
      %v2698 = vsel %vm2629, %v2696, 0.0
      %v2699 = vsel %vm2629, %v2697, 0.0
      %v2700 = vadd.f32 %v2698, %v2699
      %2701 = vadd.xlane.f32.xlu0 %v2700
      %v2702 = vpop.xlane.xlu0 %2701
      %v2703 = vrot.slane %v2702, 4
      %v2704 = vadd.f32 %v2702, %v2703
      %v2705 = vrot.slane %v2704, 2
      %v2706 = vadd.f32 %v2704, %v2705
      %v2707 = vrot.slane %v2706, 1
      %v2708 = vadd.f32 %v2706, %v2707
      %s2709 = vtos %v2708
      %v2710 = vstv %s2709
      %vm2711 = vcmask 0
      %2712 = vst.msk [vmem:[%s371] sm:$0x1] %vm2711, %v2710
      %p2713 = scmp.lt.s32.totalorder %s18, 1
      %s2714 = scalar_select %p2713, %s18, 1
      %s2715 = scalar_lea.vmem %s7, %s2714
      // Predicated region
      $region49: #{dcgan_d_starshaped_forward.1} parent=47 // pred_check
        %p2716 = pneg %p213
      $region50: #{dcgan_d_starshaped_forward.1} parent=47 // pred_check_branch
        %2718 = sbr.rel (%p2716) target = $region52
      $region51: #{dcgan_d_starshaped_forward.1} parent=47 // pred_region
        _
      $region52: #{dcgan_d_starshaped_forward.1} parent=47 // pred_fallthru
        _
    $region48: #{dcgan_d_starshaped_forward.1} parent=5 // pred_fallthru
      _
    %p2719 = scmp.le.s32.totalorder 2, %s13
    // Predicated region
    $region53: #{dcgan_d_starshaped_forward.1} parent=5 // pred_check
      %p2720 = pneg %p2719
    $region54: #{dcgan_d_starshaped_forward.1} parent=5 // pred_check_branch
      %2722 = sbr.rel (%p2720) target = $region56
    $region55: #{dcgan_d_starshaped_forward.1} parent=5 // pred_region
      %s2723 = ssub.s32 %s13, 2
      // Predicated region
      $region57: #{dcgan_d_starshaped_forward.1} parent=55 // pred_check
        %p2724 = pneg %p219
      $region58: #{dcgan_d_starshaped_forward.1} parent=55 // pred_check_branch
        %2726 = sbr.rel (%p2724) target = $region60
      $region59: #{dcgan_d_starshaped_forward.1} parent=55 // pred_region
        %p2727 = scmp.lt.s32.totalorder %s19, 1
        %s2728 = scalar_select %p2727, %s19, 1
        %s2729 = scalar_lea.vmem %s7, %s2728
      $region60: #{dcgan_d_starshaped_forward.1} parent=55 // pred_fallthru
        _
    $region56: #{dcgan_d_starshaped_forward.1} parent=5 // pred_fallthru
      _
  $region6: #{dcgan_d_starshaped_forward.1} parent=0 // loop_footer
    %s17 = sadd.s32 1, %s13
  $region7: #{dcgan_d_starshaped_forward.1} parent=0 // loop_footer_branch
    %12 = sbr.rel target = $region3
  $region8: #{dcgan_d_starshaped_forward.1} parent=0 // loop_exit
    _

</llo_original>
